<compile_context>
chip_gen: v6e
topology: v6e:2x2x1
jax: 0.10.0
libtpu: 0.0.40
codegen_flags: <defaults>
</compile_context>

<pallas_src>
import functools

import jax
import jax.numpy as jnp
import numpy as np
from jax.experimental import pallas as pl
from jax.experimental.pallas import tpu as pltpu

nc = 3
ndf = 32
BN_EPS = 1e-5
NEG_SLOPE = 0.2
KSIZE = 4


# ---------------------------------------------------------------------------
# Hardware-aware knobs (safe fallbacks when the query APIs are unavailable).
# ---------------------------------------------------------------------------
def _tpu_vmem_capacity():
    try:
        cap = int(getattr(pltpu.get_tpu_info(), "vmem_capacity_bytes", 0))
        if cap > 0:
            return cap
    except Exception:
        pass
    return 64 << 20                     # assume the smallest generation (v7x)


def _num_tensorcores():
    try:
        dev = jax.devices()[0]
        for attr in ("num_cores", "core_count"):
            n = getattr(dev, attr, None)
            if isinstance(n, int) and n > 0:
                return n
    except Exception:
        pass
    return 1                            # conservative: keep single-step grids


_VMEM_CAP = _tpu_vmem_capacity()
_VMEM_LIMIT = min(_VMEM_CAP // 2, 48 << 20)     # scoped VMEM handed to Mosaic
_BLOCK_BUDGET = min(_VMEM_CAP // 6, 16 << 20)   # budget for pipelined blocks
_MIN_GRID_STEPS = 2 if _num_tensorcores() >= 2 else 1   # shard M across TCs


# ---------------------------------------------------------------------------
# Pallas kernels
# ---------------------------------------------------------------------------
def conv_bn_lrelu_kernel(x_ref, w_ref, b_ref, o_ref, *, neg_slope):
    """Conv layer as a GEMM: (tm,K)@(K,N) on the MXU (bf16 in, f32 acc).
    BN scale is pre-folded into W; only the shift + LeakyReLU run here."""
    y = jnp.dot(x_ref[...], w_ref[...], preferred_element_type=jnp.float32)
    y = y + b_ref[...]
    o_ref[...] = jnp.maximum(y, neg_slope * y).astype(o_ref.dtype)


def conv4_tail_kernel(x_ref, w_ref, b_ref, wf_ref, o_ref, fm_ref, *,
                      neg_slope, rows_per_img):
    """Layer-4 GEMM + shift + LeakyReLU with the l1 4x4 valid conv + sigmoid and
    the MaxPool2d(4) tap fused into the epilogue (xx1 never leaves VMEM)."""
    y = jnp.dot(x_ref[...], w_ref[...], preferred_element_type=jnp.float32)
    y = y + b_ref[...]
    y = jnp.maximum(y, neg_slope * y)              # xx1: (n_img*16, 256) f32
    wf = wf_ref[...]                               # (16, 256) final-conv weights
    n_img = y.shape[0] // rows_per_img
    for b in range(n_img):                         # static unroll (tiny batch)
        yb = y[b * rows_per_img:(b + 1) * rows_per_img, :]        # (16, 256)
        fm_ref[b:b + 1, :] = jnp.max(yb, axis=0, keepdims=True)   # MaxPool2d(4)
        s = jnp.sum(yb * wf, axis=1, keepdims=True)               # (16, 1)
        logit = jnp.sum(s, axis=0, keepdims=True)                 # (1, 1)
        o_ref[b:b + 1, :] = 0.5 * (jnp.tanh(0.5 * logit) + 1.0)   # stable sigmoid


# ---------------------------------------------------------------------------
# Pallas wrappers
# ---------------------------------------------------------------------------
def _pick_tm(M, K, N, *, min_steps=1, in_bytes=2, out_bytes=2):
    """Largest tm (multiple of 8, divides M) whose double-buffered in/out blocks
    plus the resident weight fit the VMEM block budget; prefer >= min_steps grid
    steps so multi-TensorCore parts shard the parallel M axis."""
    if M < 8 or M % 8:
        return M
    resident = K * N * in_bytes + 8 * N            # weights + shift
    per_row = 2 * (K * in_bytes + N * out_bytes)   # double-buffered blocks
    cap = max(8, (_BLOCK_BUDGET - resident) // max(per_row, 1))
    best = None
    for t in range(8, M + 1, 8):
        if M % t == 0 and t <= cap and (M // t) >= min_steps:
            best = t
    if best is None:
        for t in range(8, M + 1, 8):
            if M % t == 0 and t <= cap:
                best = t
    return best if best is not None else M


def fused_conv_matmul(patches, wmat, shift, *, out_dtype=jnp.bfloat16):
    """(M,K)@(K,N) with per-column shift + LeakyReLU; single K block."""
    M, K = patches.shape
    N = wmat.shape[1]
    tm = _pick_tm(M, K, N, min_steps=_MIN_GRID_STEPS)
    return pl.pallas_call(
        functools.partial(conv_bn_lrelu_kernel, neg_slope=NEG_SLOPE),
        out_shape=jax.ShapeDtypeStruct((M, N), out_dtype),
        grid_spec=pltpu.PrefetchScalarGridSpec(
            num_scalar_prefetch=0,
            grid=(M // tm,),
            in_specs=[
                pl.BlockSpec((tm, K), lambda i: (i, 0)),   # activations (bf16)
                pl.BlockSpec((K, N), lambda i: (0, 0)),    # BN-folded weights
                pl.BlockSpec((1, N), lambda i: (0, 0)),    # BN shift (f32)
            ],
            out_specs=pl.BlockSpec((tm, N), lambda i: (i, 0)),
        ),
        compiler_params=pltpu.CompilerParams(
            dimension_semantics=("parallel",),
            vmem_limit_bytes=_VMEM_LIMIT,
        ),
    )(patches, wmat, shift.reshape(1, N))


def fused_conv4_tail(patches, w4, b4, wfin, *, rows_per_img):
    """Layer 4 + final conv + sigmoid + MaxPool(4) tap, one grid step."""
    M, K = patches.shape
    N = w4.shape[1]
    n_img = M // rows_per_img
    return pl.pallas_call(
        functools.partial(conv4_tail_kernel, neg_slope=NEG_SLOPE,
                          rows_per_img=rows_per_img),
        out_shape=(jax.ShapeDtypeStruct((n_img, 1), jnp.float32),     # sigmoid(l1)
                   jax.ShapeDtypeStruct((n_img, N), jnp.float32)),    # maxpool tap
        grid_spec=pltpu.PrefetchScalarGridSpec(
            num_scalar_prefetch=0,
            grid=(1,),
            in_specs=[
                pl.BlockSpec((M, K), lambda i: (0, 0)),
                pl.BlockSpec((K, N), lambda i: (0, 0)),
                pl.BlockSpec((1, N), lambda i: (0, 0)),
                pl.BlockSpec((rows_per_img, N), lambda i: (0, 0)),
            ],
            out_specs=[
                pl.BlockSpec((n_img, 1), lambda i: (0, 0)),
                pl.BlockSpec((n_img, N), lambda i: (0, 0)),
            ],
        ),
        compiler_params=pltpu.CompilerParams(
            dimension_semantics=("arbitrary",),
            vmem_limit_bytes=_VMEM_LIMIT,
        ),
    )(patches, w4, b4, wfin)


# ---------------------------------------------------------------------------
# Glue: im2col (NHWC) + parameter preparation
# ---------------------------------------------------------------------------
def im2col_nhwc(x, KH, KW, stride, pad):
    """x: (N,H,W,C) -> patches (N*OH*OW, KH*KW*C); rows ordered (n, oh, ow)."""
    N, H, W, C = x.shape
    OH = (H + 2 * pad - KH) // stride + 1
    OW = (W + 2 * pad - KW) // stride + 1
    xp = jnp.pad(x, ((0, 0), (pad, pad), (pad, pad), (0, 0))) if pad else x
    slabs = [
        xp[:, kh:kh + stride * (OH - 1) + 1:stride,
              kw:kw + stride * (OW - 1) + 1:stride, :]
        for kh in range(KH) for kw in range(KW)
    ]
    patches = jnp.stack(slabs, axis=3)              # (N, OH, OW, KH*KW, C)
    return patches.reshape(N * OH * OW, KH * KW * C), (N, OH, OW)


def _fold_bn(gamma, beta, mean, var):
    scale = gamma / jnp.sqrt(var + BN_EPS)
    return scale, beta - mean * scale


def _lane_pack(wmat, shift, r):
    """Block-diagonal weight so r consecutive output rows pack into a single
    128-lane output row (identical row-major bytes; built once at init)."""
    K, N = wmat.shape
    if r <= 1:
        return wmat, shift
    wb = jnp.zeros((r * K, r * N), wmat.dtype)
    for j in range(r):
        wb = wb.at[j * K:(j + 1) * K, j * N:(j + 1) * N].set(wmat)
    return wb, jnp.tile(shift, r)


def init_discriminator_params(key):
    """DCGAN-style init; eval-mode BN (fresh running stats) folded into the
    weights (scale) + a per-channel shift. Returns (kernel params, raw params
    for the pure-JAX reference)."""
    conv_dims = [(nc, ndf), (ndf, ndf * 2), (ndf * 2, ndf * 4), (ndf * 4, ndf * 8)]
    layers, raw_convs, raw_bns = [], [], []
    w4 = b4 = None
    for li, (cin, cout) in enumerate(conv_dims):
        key, kw, kg = jax.random.split(key, 3)
        w = 0.02 * jax.random.normal(kw, (cout, cin, KSIZE, KSIZE), jnp.float32)
        raw_convs.append(w)
        # (Cout,Cin,KH,KW) -> (KH,KW,Cin,Cout) -> (KH*KW*Cin, Cout)
        wmat = jnp.transpose(w, (2, 3, 1, 0)).reshape(KSIZE * KSIZE * cin, cout)
        if li == 0:                                   # first conv has no BatchNorm
            raw_bns.append(None)
            scale = jnp.ones((cout,), jnp.float32)
            shift = jnp.zeros((cout,), jnp.float32)
        else:
            gamma = 1.0 + 0.02 * jax.random.normal(kg, (cout,), jnp.float32)
            beta = jnp.zeros((cout,), jnp.float32)
            rmean = jnp.zeros((cout,), jnp.float32)
            rvar = jnp.ones((cout,), jnp.float32)
            raw_bns.append((gamma, beta, rmean, rvar))
            scale, shift = _fold_bn(gamma, beta, rmean, rvar)
        wmat = wmat * scale[None, :]                  # fold BN scale into weights
        if li < 3:
            r = max(1, 128 // cout)                   # lane-dense output packing
            wpack, spack = _lane_pack(wmat, shift, r)
            layers.append((wpack.astype(jnp.bfloat16), spack.astype(jnp.float32)))
        else:
            w4 = wmat.astype(jnp.bfloat16)
            b4 = shift.reshape(1, cout).astype(jnp.float32)
    key, kw = jax.random.split(key)
    wl1 = 0.02 * jax.random.normal(kw, (1, ndf * 8, KSIZE, KSIZE), jnp.float32)
    wfin = jnp.transpose(wl1, (2, 3, 1, 0)).reshape(KSIZE * KSIZE, ndf * 8)  # f32
    params = {"layers": layers, "w4": w4, "b4": b4, "wfin": wfin}
    raw = {"convs": raw_convs, "bns": raw_bns, "wl1": wl1}
    return params, raw


# ---------------------------------------------------------------------------
# Forward pass (matches Discriminator.forward; also returns the feature_map tap)
# ---------------------------------------------------------------------------
def discriminator_forward(x_nchw, params):
    x = jnp.transpose(x_nchw, (0, 2, 3, 1)).astype(jnp.bfloat16)      # NHWC, bf16
    for wpack, spack in params["layers"]:                             # layers 1-3
        patches, (n, oh, ow) = im2col_nhwc(x, KSIZE, KSIZE, stride=2, pad=1)
        M, K = patches.shape
        r = wpack.shape[0] // K                                       # pack factor
        cout = wpack.shape[1] // r
        assert M % r == 0
        patches = patches.reshape(M // r, r * K)                      # same bytes
        y = fused_conv_matmul(patches, wpack, spack)                  # (M//r, r*cout)
        x = y.reshape(n, oh, ow, cout)                                # stay NHWC
    # layer 4 + l1 (4x4 valid conv + sigmoid) + MaxPool2d(4) tap in one kernel
    patches, (n, oh, ow) = im2col_nhwc(x, KSIZE, KSIZE, stride=2, pad=1)
    xx2, fm = fused_conv4_tail(patches, params["w4"], params["b4"],
                               params["wfin"], rows_per_img=oh * ow)
    xx2 = xx2.reshape(n, 1, 1, 1)                                     # (N,1,1,1)
    feature_map = fm.reshape(n, fm.shape[1], 1, 1)                    # (N,256,1,1)
    return xx2, feature_map


# ---------------------------------------------------------------------------
# Pure-JAX float32 reference (correctness oracle)
# ---------------------------------------------------------------------------
def reference_forward(x, raw):
    y = x
    for i, w in enumerate(raw["convs"]):
        y = jax.lax.conv_general_dilated(
            y, w, window_strides=(2, 2), padding=((1, 1), (1, 1)),
            dimension_numbers=("NCHW", "OIHW", "NCHW"))
        if raw["bns"][i] is not None:
            gamma, beta, mean, var = raw["bns"][i]
            s = gamma / jnp.sqrt(var + BN_EPS)
            b = beta - mean * s
            y = y * s[None, :, None, None] + b[None, :, None, None]
        y = jnp.where(y >= 0, y, NEG_SLOPE * y)
    feature_map = jnp.max(y, axis=(2, 3), keepdims=True)              # MaxPool2d(4)
    logits = jax.lax.conv_general_dilated(
        y, raw["wl1"], window_strides=(1, 1), padding="VALID",
        dimension_numbers=("NCHW", "OIHW", "NCHW"))
    return jax.nn.sigmoid(logits), feature_map


if __name__ == "__main__":
    key = jax.random.PRNGKey(0)
    kp, kx = jax.random.split(key)
    params, raw = init_discriminator_params(kp)
    x = jax.random.normal(kx, (2, nc, 64, 64), jnp.float32)   # 64x64 -> 1x1 logits

    fwd = jax.jit(discriminator_forward)
    xx2, feature_map = jax.block_until_ready(fwd(x, params))

    assert xx2.shape == (2, 1, 1, 1), xx2.shape
    assert feature_map.shape == (2, ndf * 8, 1, 1), feature_map.shape
    assert bool(jnp.all(jnp.isfinite(xx2)))
    assert bool(jnp.all((xx2 >= 0.0) & (xx2 <= 1.0)))          # sigmoid range
    assert bool(jnp.all(jnp.isfinite(feature_map)))

    # Compare against the pure-JAX f32 reference (bf16 activations -> loose tol).
    ref_xx2, ref_fm = jax.block_until_ready(jax.jit(reference_forward)(x, raw))
    np.testing.assert_allclose(np.asarray(xx2), np.asarray(ref_xx2),
                               rtol=0.05, atol=5e-3)
    np.testing.assert_allclose(np.asarray(feature_map), np.asarray(ref_fm),
                               rtol=0.1, atol=1e-3)
    print("KERNEL_OK")
</pallas_src>

<mosaic_0001>
module attributes {stable_mosaic.version = 11 : i64} {
  func.func @conv_bn_lrelu_kernel(%arg0: i32, %arg1: memref<512x192xbf16, #tpu.memory_space<vmem>>, %arg2: memref<192x128xbf16, #tpu.memory_space<vmem>>, %arg3: memref<1x128xf32, #tpu.memory_space<vmem>>, %arg4: memref<512x128xbf16, #tpu.memory_space<vmem>>) attributes {dimension_semantics = [#tpu.dimension_semantics<parallel>], iteration_bounds = array<i64: 1>, scalar_prefetch = 0 : i64, scratch_operands = 0 : i64, tpu.core_type = #tpu.core_type<tc>, window_params = [{transform_indices = @transform_0, window_bounds = array<i64: 512, 192>}, {pipeline_mode = #tpu.pipeline_mode<synchronous>, transform_indices = @transform_1, window_bounds = array<i64: 192, 128>}, {pipeline_mode = #tpu.pipeline_mode<synchronous>, transform_indices = @transform_2, window_bounds = array<i64: 1, 128>}, {transform_indices = @transform_3, window_bounds = array<i64: 512, 128>}]} {
    %c0 = arith.constant 0 : index
    %c0_0 = arith.constant 0 : index
    %0 = vector.load %arg1[%c0, %c0_0] : memref<512x192xbf16, #tpu.memory_space<vmem>>, vector<512x192xbf16>
    %c0_1 = arith.constant 0 : index
    %c0_2 = arith.constant 0 : index
    %1 = vector.load %arg2[%c0_1, %c0_2] : memref<192x128xbf16, #tpu.memory_space<vmem>>, vector<192x128xbf16>
    %cst = arith.constant dense<0.000000e+00> : vector<512x128xf32>
    %2 = tpu.matmul %0, %1, %cst {dimension_numbers = #tpu.dot_dimension_numbers<[1], [0], [0], [1], [0, 0, 1, 1], [], []>} : vector<512x192xbf16>, vector<192x128xbf16>, vector<512x128xf32> -> vector<512x128xf32>
    %c0_3 = arith.constant 0 : index
    %c0_4 = arith.constant 0 : index
    %3 = vector.load %arg3[%c0_3, %c0_4] : memref<1x128xf32, #tpu.memory_space<vmem>>, vector<1x128xf32>
    %4 = vector.broadcast %3 : vector<1x128xf32> to vector<512x128xf32>
    %5 = arith.addf %2, %4 : vector<512x128xf32>
    %cst_5 = arith.constant 2.000000e-01 : f32
    %6 = vector.broadcast %cst_5 : f32 to vector<512x128xf32>
    %7 = arith.mulf %6, %5 : vector<512x128xf32>
    %8 = arith.maximumf %5, %7 : vector<512x128xf32>
    %9 = arith.truncf %8 : vector<512x128xf32> to vector<512x128xbf16>
    %c0_6 = arith.constant 0 : index
    %c0_7 = arith.constant 0 : index
    %10 = vector.load %arg4[%c0_6, %c0_7] : memref<512x128xbf16, #tpu.memory_space<vmem>>, vector<512x128xbf16>
    tpu.vector_store %arg4[%c0_6, %c0_7], %9 {strides = array<i32>} : memref<512x128xbf16, #tpu.memory_space<vmem>>, vector<512x128xbf16>,
    return
  }
  func.func @transform_0(%arg0: i32) -> (i32, i32) {
    %c0_i32 = arith.constant 0 : i32
    %c0_i32_0 = arith.constant 0 : i32
    return %arg0, %c0_i32 : i32, i32
  }
  func.func @transform_1(%arg0: i32) -> (i32, i32) {
    %c0_i32 = arith.constant 0 : i32
    %c0_i32_0 = arith.constant 0 : i32
    %c0_i32_1 = arith.constant 0 : i32
    return %c0_i32, %c0_i32_0 : i32, i32
  }
  func.func @transform_2(%arg0: i32) -> (i32, i32) {
    %c0_i32 = arith.constant 0 : i32
    %c0_i32_0 = arith.constant 0 : i32
    %c0_i32_1 = arith.constant 0 : i32
    return %c0_i32, %c0_i32_0 : i32, i32
  }
  func.func @transform_3(%arg0: i32) -> (i32, i32) {
    %c0_i32 = arith.constant 0 : i32
    %c0_i32_0 = arith.constant 0 : i32
    return %arg0, %c0_i32 : i32, i32
  }
}

module attributes {stable_mosaic.version = 11 : i64} {
  func.func @conv_bn_lrelu_kernel(%arg0: i32, %arg1: memref<256x1024xbf16, #tpu.memory_space<vmem>>, %arg2: memref<1024x128xbf16, #tpu.memory_space<vmem>>, %arg3: memref<1x128xf32, #tpu.memory_space<vmem>>, %arg4: memref<256x128xbf16, #tpu.memory_space<vmem>>) attributes {dimension_semantics = [#tpu.dimension_semantics<parallel>], iteration_bounds = array<i64: 1>, scalar_prefetch = 0 : i64, scratch_operands = 0 : i64, tpu.core_type = #tpu.core_type<tc>, window_params = [{transform_indices = @transform_0, window_bounds = array<i64: 256, 1024>}, {pipeline_mode = #tpu.pipeline_mode<synchronous>, transform_indices = @transform_1, window_bounds = array<i64: 1024, 128>}, {pipeline_mode = #tpu.pipeline_mode<synchronous>, transform_indices = @transform_2, window_bounds = array<i64: 1, 128>}, {transform_indices = @transform_3, window_bounds = array<i64: 256, 128>}]} {
    %c0 = arith.constant 0 : index
    %c0_0 = arith.constant 0 : index
    %0 = vector.load %arg1[%c0, %c0_0] : memref<256x1024xbf16, #tpu.memory_space<vmem>>, vector<256x1024xbf16>
    %c0_1 = arith.constant 0 : index
    %c0_2 = arith.constant 0 : index
    %1 = vector.load %arg2[%c0_1, %c0_2] : memref<1024x128xbf16, #tpu.memory_space<vmem>>, vector<1024x128xbf16>
    %cst = arith.constant dense<0.000000e+00> : vector<256x128xf32>
    %2 = tpu.matmul %0, %1, %cst {dimension_numbers = #tpu.dot_dimension_numbers<[1], [0], [0], [1], [0, 0, 1, 1], [], []>} : vector<256x1024xbf16>, vector<1024x128xbf16>, vector<256x128xf32> -> vector<256x128xf32>
    %c0_3 = arith.constant 0 : index
    %c0_4 = arith.constant 0 : index
    %3 = vector.load %arg3[%c0_3, %c0_4] : memref<1x128xf32, #tpu.memory_space<vmem>>, vector<1x128xf32>
    %4 = vector.broadcast %3 : vector<1x128xf32> to vector<256x128xf32>
    %5 = arith.addf %2, %4 : vector<256x128xf32>
    %cst_5 = arith.constant 2.000000e-01 : f32
    %6 = vector.broadcast %cst_5 : f32 to vector<256x128xf32>
    %7 = arith.mulf %6, %5 : vector<256x128xf32>
    %8 = arith.maximumf %5, %7 : vector<256x128xf32>
    %9 = arith.truncf %8 : vector<256x128xf32> to vector<256x128xbf16>
    %c0_6 = arith.constant 0 : index
    %c0_7 = arith.constant 0 : index
    %10 = vector.load %arg4[%c0_6, %c0_7] : memref<256x128xbf16, #tpu.memory_space<vmem>>, vector<256x128xbf16>
    tpu.vector_store %arg4[%c0_6, %c0_7], %9 {strides = array<i32>} : memref<256x128xbf16, #tpu.memory_space<vmem>>, vector<256x128xbf16>,
    return
  }
  func.func @transform_0(%arg0: i32) -> (i32, i32) {
    %c0_i32 = arith.constant 0 : i32
    %c0_i32_0 = arith.constant 0 : i32
    return %arg0, %c0_i32 : i32, i32
  }
  func.func @transform_1(%arg0: i32) -> (i32, i32) {
    %c0_i32 = arith.constant 0 : i32
    %c0_i32_0 = arith.constant 0 : i32
    %c0_i32_1 = arith.constant 0 : i32
    return %c0_i32, %c0_i32_0 : i32, i32
  }
  func.func @transform_2(%arg0: i32) -> (i32, i32) {
    %c0_i32 = arith.constant 0 : i32
    %c0_i32_0 = arith.constant 0 : i32
    %c0_i32_1 = arith.constant 0 : i32
    return %c0_i32, %c0_i32_0 : i32, i32
  }
  func.func @transform_3(%arg0: i32) -> (i32, i32) {
    %c0_i32 = arith.constant 0 : i32
    %c0_i32_0 = arith.constant 0 : i32
    return %arg0, %c0_i32 : i32, i32
  }
}

module attributes {stable_mosaic.version = 11 : i64} {
  func.func @conv_bn_lrelu_kernel(%arg0: i32, %arg1: memref<128x1024xbf16, #tpu.memory_space<vmem>>, %arg2: memref<1024x128xbf16, #tpu.memory_space<vmem>>, %arg3: memref<1x128xf32, #tpu.memory_space<vmem>>, %arg4: memref<128x128xbf16, #tpu.memory_space<vmem>>) attributes {dimension_semantics = [#tpu.dimension_semantics<parallel>], iteration_bounds = array<i64: 1>, scalar_prefetch = 0 : i64, scratch_operands = 0 : i64, tpu.core_type = #tpu.core_type<tc>, window_params = [{transform_indices = @transform_0, window_bounds = array<i64: 128, 1024>}, {pipeline_mode = #tpu.pipeline_mode<synchronous>, transform_indices = @transform_1, window_bounds = array<i64: 1024, 128>}, {pipeline_mode = #tpu.pipeline_mode<synchronous>, transform_indices = @transform_2, window_bounds = array<i64: 1, 128>}, {transform_indices = @transform_3, window_bounds = array<i64: 128, 128>}]} {
    %c0 = arith.constant 0 : index
    %c0_0 = arith.constant 0 : index
    %0 = vector.load %arg1[%c0, %c0_0] : memref<128x1024xbf16, #tpu.memory_space<vmem>>, vector<128x1024xbf16>
    %c0_1 = arith.constant 0 : index
    %c0_2 = arith.constant 0 : index
    %1 = vector.load %arg2[%c0_1, %c0_2] : memref<1024x128xbf16, #tpu.memory_space<vmem>>, vector<1024x128xbf16>
    %cst = arith.constant dense<0.000000e+00> : vector<128x128xf32>
    %2 = tpu.matmul %0, %1, %cst {dimension_numbers = #tpu.dot_dimension_numbers<[1], [0], [0], [1], [0, 0, 1, 1], [], []>} : vector<128x1024xbf16>, vector<1024x128xbf16>, vector<128x128xf32> -> vector<128x128xf32>
    %c0_3 = arith.constant 0 : index
    %c0_4 = arith.constant 0 : index
    %3 = vector.load %arg3[%c0_3, %c0_4] : memref<1x128xf32, #tpu.memory_space<vmem>>, vector<1x128xf32>
    %4 = vector.broadcast %3 : vector<1x128xf32> to vector<128x128xf32>
    %5 = arith.addf %2, %4 : vector<128x128xf32>
    %cst_5 = arith.constant 2.000000e-01 : f32
    %6 = vector.broadcast %cst_5 : f32 to vector<128x128xf32>
    %7 = arith.mulf %6, %5 : vector<128x128xf32>
    %8 = arith.maximumf %5, %7 : vector<128x128xf32>
    %9 = arith.truncf %8 : vector<128x128xf32> to vector<128x128xbf16>
    %c0_6 = arith.constant 0 : index
    %c0_7 = arith.constant 0 : index
    %10 = vector.load %arg4[%c0_6, %c0_7] : memref<128x128xbf16, #tpu.memory_space<vmem>>, vector<128x128xbf16>
    tpu.vector_store %arg4[%c0_6, %c0_7], %9 {strides = array<i32>} : memref<128x128xbf16, #tpu.memory_space<vmem>>, vector<128x128xbf16>,
    return
  }
  func.func @transform_0(%arg0: i32) -> (i32, i32) {
    %c0_i32 = arith.constant 0 : i32
    %c0_i32_0 = arith.constant 0 : i32
    return %arg0, %c0_i32 : i32, i32
  }
  func.func @transform_1(%arg0: i32) -> (i32, i32) {
    %c0_i32 = arith.constant 0 : i32
    %c0_i32_0 = arith.constant 0 : i32
    %c0_i32_1 = arith.constant 0 : i32
    return %c0_i32, %c0_i32_0 : i32, i32
  }
  func.func @transform_2(%arg0: i32) -> (i32, i32) {
    %c0_i32 = arith.constant 0 : i32
    %c0_i32_0 = arith.constant 0 : i32
    %c0_i32_1 = arith.constant 0 : i32
    return %c0_i32, %c0_i32_0 : i32, i32
  }
  func.func @transform_3(%arg0: i32) -> (i32, i32) {
    %c0_i32 = arith.constant 0 : i32
    %c0_i32_0 = arith.constant 0 : i32
    return %arg0, %c0_i32 : i32, i32
  }
}

module attributes {stable_mosaic.version = 11 : i64} {
  func.func @conv4_tail_kernel(%arg0: i32, %arg1: memref<32x2048xbf16, #tpu.memory_space<vmem>>, %arg2: memref<2048x256xbf16, #tpu.memory_space<vmem>>, %arg3: memref<1x256xf32, #tpu.memory_space<vmem>>, %arg4: memref<16x256xf32, #tpu.memory_space<vmem>>, %arg5: memref<2x1xf32, #tpu.memory_space<vmem>>, %arg6: memref<2x256xf32, #tpu.memory_space<vmem>>) attributes {dimension_semantics = [#tpu.dimension_semantics<arbitrary>], iteration_bounds = array<i64: 1>, scalar_prefetch = 0 : i64, scratch_operands = 0 : i64, tpu.core_type = #tpu.core_type<tc>, window_params = [{pipeline_mode = #tpu.pipeline_mode<synchronous>, transform_indices = @transform_0, window_bounds = array<i64: 32, 2048>}, {pipeline_mode = #tpu.pipeline_mode<synchronous>, transform_indices = @transform_1, window_bounds = array<i64: 2048, 256>}, {pipeline_mode = #tpu.pipeline_mode<synchronous>, transform_indices = @transform_2, window_bounds = array<i64: 1, 256>}, {pipeline_mode = #tpu.pipeline_mode<synchronous>, transform_indices = @transform_3, window_bounds = array<i64: 16, 256>}, {pipeline_mode = #tpu.pipeline_mode<synchronous>, transform_indices = @transform_4, window_bounds = array<i64: 2, 1>}, {pipeline_mode = #tpu.pipeline_mode<synchronous>, transform_indices = @transform_5, window_bounds = array<i64: 2, 256>}]} {
    %c0 = arith.constant 0 : index
    %c0_0 = arith.constant 0 : index
    %0 = vector.load %arg1[%c0, %c0_0] : memref<32x2048xbf16, #tpu.memory_space<vmem>>, vector<32x2048xbf16>
    %c0_1 = arith.constant 0 : index
    %c0_2 = arith.constant 0 : index
    %1 = vector.load %arg2[%c0_1, %c0_2] : memref<2048x256xbf16, #tpu.memory_space<vmem>>, vector<2048x256xbf16>
    %cst = arith.constant dense<0.000000e+00> : vector<32x256xf32>
    %2 = tpu.matmul %0, %1, %cst {dimension_numbers = #tpu.dot_dimension_numbers<[1], [0], [0], [1], [0, 0, 1, 1], [], []>} : vector<32x2048xbf16>, vector<2048x256xbf16>, vector<32x256xf32> -> vector<32x256xf32>
    %c0_3 = arith.constant 0 : index
    %c0_4 = arith.constant 0 : index
    %3 = vector.load %arg3[%c0_3, %c0_4] : memref<1x256xf32, #tpu.memory_space<vmem>>, vector<1x256xf32>
    %4 = vector.broadcast %3 : vector<1x256xf32> to vector<32x256xf32>
    %5 = arith.addf %2, %4 : vector<32x256xf32>
    %cst_5 = arith.constant 2.000000e-01 : f32
    %6 = vector.broadcast %cst_5 : f32 to vector<32x256xf32>
    %7 = arith.mulf %6, %5 : vector<32x256xf32>
    %8 = arith.maximumf %5, %7 : vector<32x256xf32>
    %c0_6 = arith.constant 0 : index
    %c0_7 = arith.constant 0 : index
    %9 = vector.load %arg4[%c0_6, %c0_7] : memref<16x256xf32, #tpu.memory_space<vmem>>, vector<16x256xf32>
    %10 = vector.extract_strided_slice %8 {offsets = [0, 0], sizes = [16, 256], strides = [1, 1]} : vector<32x256xf32> to vector<16x256xf32>
    %cst_8 = arith.constant dense<0xFF800000> : vector<256xf32>
    %11 = vector.multi_reduction <maximumf>, %10, %cst_8 [0] : vector<16x256xf32> to vector<256xf32>
    %12 = vector.shape_cast %11 : vector<256xf32> to vector<1x256xf32>
    %c0_9 = arith.constant 0 : index
    %c0_10 = arith.constant 0 : index
    %13 = vector.load %arg6[%c0_9, %c0_10] : memref<2x256xf32, #tpu.memory_space<vmem>>, vector<1x256xf32>
    tpu.vector_store %arg6[%c0_9, %c0_10], %12 {strides = array<i32>} : memref<2x256xf32, #tpu.memory_space<vmem>>, vector<1x256xf32>,
    %14 = arith.mulf %10, %9 : vector<16x256xf32>
    %cst_11 = arith.constant dense<0.000000e+00> : vector<16xf32>
    %15 = vector.multi_reduction <add>, %14, %cst_11 [1] : vector<16x256xf32> to vector<16xf32>
    %16 = vector.shape_cast %15 : vector<16xf32> to vector<16x1xf32>
    %cst_12 = arith.constant dense<0.000000e+00> : vector<1xf32>
    %17 = vector.multi_reduction <add>, %16, %cst_12 [0] : vector<16x1xf32> to vector<1xf32>
    %18 = vector.shape_cast %17 : vector<1xf32> to vector<1x1xf32>
    %cst_13 = arith.constant 5.000000e-01 : f32
    %19 = vector.broadcast %cst_13 : f32 to vector<1x1xf32>
    %20 = arith.mulf %19, %18 : vector<1x1xf32>
    %21 = math.tanh %20 : vector<1x1xf32>
    %cst_14 = arith.constant 1.000000e+00 : f32
    %22 = vector.broadcast %cst_14 : f32 to vector<1x1xf32>
    %23 = arith.addf %21, %22 : vector<1x1xf32>
    %cst_15 = arith.constant 5.000000e-01 : f32
    %24 = vector.broadcast %cst_15 : f32 to vector<1x1xf32>
    %25 = arith.mulf %24, %23 : vector<1x1xf32>
    %c0_16 = arith.constant 0 : index
    %c0_17 = arith.constant 0 : index
    %26 = vector.load %arg5[%c0_16, %c0_17] : memref<2x1xf32, #tpu.memory_space<vmem>>, vector<1x1xf32>
    tpu.vector_store %arg5[%c0_16, %c0_17], %25 {strides = array<i32>} : memref<2x1xf32, #tpu.memory_space<vmem>>, vector<1x1xf32>,
    %27 = vector.extract_strided_slice %8 {offsets = [16, 0], sizes = [16, 256], strides = [1, 1]} : vector<32x256xf32> to vector<16x256xf32>
    %cst_18 = arith.constant dense<0xFF800000> : vector<256xf32>
    %28 = vector.multi_reduction <maximumf>, %27, %cst_18 [0] : vector<16x256xf32> to vector<256xf32>
    %29 = vector.shape_cast %28 : vector<256xf32> to vector<1x256xf32>
    %c1 = arith.constant 1 : index
    %c0_19 = arith.constant 0 : index
    %30 = vector.load %arg6[%c1, %c0_19] : memref<2x256xf32, #tpu.memory_space<vmem>>, vector<1x256xf32>
    tpu.vector_store %arg6[%c1, %c0_19], %29 {strides = array<i32>} : memref<2x256xf32, #tpu.memory_space<vmem>>, vector<1x256xf32>,
    %31 = arith.mulf %27, %9 : vector<16x256xf32>
    %cst_20 = arith.constant dense<0.000000e+00> : vector<16xf32>
    %32 = vector.multi_reduction <add>, %31, %cst_20 [1] : vector<16x256xf32> to vector<16xf32>
    %33 = vector.shape_cast %32 : vector<16xf32> to vector<16x1xf32>
    %cst_21 = arith.constant dense<0.000000e+00> : vector<1xf32>
    %34 = vector.multi_reduction <add>, %33, %cst_21 [0] : vector<16x1xf32> to vector<1xf32>
    %35 = vector.shape_cast %34 : vector<1xf32> to vector<1x1xf32>
    %cst_22 = arith.constant 5.000000e-01 : f32
    %36 = vector.broadcast %cst_22 : f32 to vector<1x1xf32>
    %37 = arith.mulf %36, %35 : vector<1x1xf32>
    %38 = math.tanh %37 : vector<1x1xf32>
    %cst_23 = arith.constant 1.000000e+00 : f32
    %39 = vector.broadcast %cst_23 : f32 to vector<1x1xf32>
    %40 = arith.addf %38, %39 : vector<1x1xf32>
    %cst_24 = arith.constant 5.000000e-01 : f32
    %41 = vector.broadcast %cst_24 : f32 to vector<1x1xf32>
    %42 = arith.mulf %41, %40 : vector<1x1xf32>
    %c1_25 = arith.constant 1 : index
    %c0_26 = arith.constant 0 : index
    %43 = vector.load %arg5[%c1_25, %c0_26] : memref<2x1xf32, #tpu.memory_space<vmem>>, vector<1x1xf32>
    tpu.vector_store %arg5[%c1_25, %c0_26], %42 {strides = array<i32>} : memref<2x1xf32, #tpu.memory_space<vmem>>, vector<1x1xf32>,
    return
  }
  func.func @transform_0(%arg0: i32) -> (i32, i32) {
    %c0_i32 = arith.constant 0 : i32
    %c0_i32_0 = arith.constant 0 : i32
    %c0_i32_1 = arith.constant 0 : i32
    return %c0_i32, %c0_i32_0 : i32, i32
  }
  func.func @transform_1(%arg0: i32) -> (i32, i32) {
    %c0_i32 = arith.constant 0 : i32
    %c0_i32_0 = arith.constant 0 : i32
    %c0_i32_1 = arith.constant 0 : i32
    return %c0_i32, %c0_i32_0 : i32, i32
  }
  func.func @transform_2(%arg0: i32) -> (i32, i32) {
    %c0_i32 = arith.constant 0 : i32
    %c0_i32_0 = arith.constant 0 : i32
    %c0_i32_1 = arith.constant 0 : i32
    return %c0_i32, %c0_i32_0 : i32, i32
  }
  func.func @transform_3(%arg0: i32) -> (i32, i32) {
    %c0_i32 = arith.constant 0 : i32
    %c0_i32_0 = arith.constant 0 : i32
    %c0_i32_1 = arith.constant 0 : i32
    return %c0_i32, %c0_i32_0 : i32, i32
  }
  func.func @transform_4(%arg0: i32) -> (i32, i32) {
    %c0_i32 = arith.constant 0 : i32
    %c0_i32_0 = arith.constant 0 : i32
    %c0_i32_1 = arith.constant 0 : i32
    return %c0_i32, %c0_i32_0 : i32, i32
  }
  func.func @transform_5(%arg0: i32) -> (i32, i32) {
    %c0_i32 = arith.constant 0 : i32
    %c0_i32_0 = arith.constant 0 : i32
    %c0_i32_1 = arith.constant 0 : i32
    return %c0_i32, %c0_i32_0 : i32, i32
  }
}

</mosaic_0001>

<llo_original>
// kernel: discriminator_forward.4
$region0: #{discriminator_forward.4}
  #allocation0 [shape = 'u32[]', space=smem, size = 0x4, offset = 0x4, fixed_abs, tag = 'smem constant byte address 0x4 - core index']
  #allocation1 [shape = 'u32[144,128]{1,0:T(1,128)}', space=vmem, size = 0x12000, scoped, tag = 'internal scratch']
  %s0 = inlined_call_operand.vmem [shape: bf16[512,192], index: 0, kind: input, shape index: {}]
  %s1 = inlined_call_operand.vmem [shape: bf16[192,128], index: 1, kind: input, shape index: {}]
  %s2 = inlined_call_operand.vmem [shape: f32[1,128], index: 2, kind: input, shape index: {}]
  %s3 = inlined_call_operand.vmem [shape: bf16[512,128], index: 3, kind: output, shape index: {}]
  %s4 = sld [smem:[#allocation0]]
  $region22: #{discriminator_forward.4} parent=0
    _
  %s6 = ssub.s32 1, %s4
  %s7 = scalar_select 0, %s6, %s4
  // Predicated region
  $region2: #{discriminator_forward.4} parent=0 // pred_check
    _
  $region3: #{discriminator_forward.4} parent=0 // pred_check_branch
    %9 = sbr.rel (0) target = $region5
  $region4: #{discriminator_forward.4} parent=0 // pred_region
    _
  $region5: #{discriminator_forward.4} parent=0 // pred_fallthru
    _
  // Predicated region
  $region6: #{discriminator_forward.4} parent=0 // pred_check
    _
  $region7: #{discriminator_forward.4} parent=0 // pred_check_branch
    %11 = sbr.rel (0) target = $region9
  $region8: #{discriminator_forward.4} parent=0 // pred_region
    _
  $region9: #{discriminator_forward.4} parent=0 // pred_fallthru
    _
  // Predicated region
  $region10: #{discriminator_forward.4} parent=0 // pred_check
    _
  $region11: #{discriminator_forward.4} parent=0 // pred_check_branch
    %13 = sbr.rel (0) target = $region13
  $region12: #{discriminator_forward.4} parent=0 // pred_region
    _
  $region13: #{discriminator_forward.4} parent=0 // pred_fallthru
    _
  %v15 = vld [vmem:[%s0] sm:$0xff]
  %v16 = vld [vmem:[%s0 + $0x8] sm:$0xff]
  %v17 = vld [vmem:[%s0 + $0x10] sm:$0xff]
  %v18 = vld [vmem:[%s0 + $0x18] sm:$0xff]
  %v19 = vld [vmem:[%s0 + $0x20] sm:$0xff]
  %v20 = vld [vmem:[%s0 + $0x28] sm:$0xff]
  %v21 = vld [vmem:[%s0 + $0x30] sm:$0xff]
  %v22 = vld [vmem:[%s0 + $0x38] sm:$0xff]
  %v23 = vld [vmem:[%s0 + $0x40] sm:$0xff]
  %v24 = vld [vmem:[%s0 + $0x48] sm:$0xff]
  %v25 = vld [vmem:[%s0 + $0x50] sm:$0xff]
  %v26 = vld [vmem:[%s0 + $0x58] sm:$0xff]
  %v27 = vld [vmem:[%s0 + $0x60] sm:$0xff]
  %v28 = vld [vmem:[%s0 + $0x68] sm:$0xff]
  %v29 = vld [vmem:[%s0 + $0x70] sm:$0xff]
  %v30 = vld [vmem:[%s0 + $0x78] sm:$0xff]
  %v31 = vld [vmem:[%s0 + $0x80] sm:$0xff]
  %v32 = vld [vmem:[%s0 + $0x88] sm:$0xff]
  %v33 = vld [vmem:[%s0 + $0x90] sm:$0xff]
  %v34 = vld [vmem:[%s0 + $0x98] sm:$0xff]
  %v35 = vld [vmem:[%s0 + $0xa0] sm:$0xff]
  %v36 = vld [vmem:[%s0 + $0xa8] sm:$0xff]
  %v37 = vld [vmem:[%s0 + $0xb0] sm:$0xff]
  %v38 = vld [vmem:[%s0 + $0xb8] sm:$0xff]
  %v39 = vld [vmem:[%s0 + $0xc0] sm:$0xff]
  %v40 = vld [vmem:[%s0 + $0xc8] sm:$0xff]
  %v41 = vld [vmem:[%s0 + $0xd0] sm:$0xff]
  %v42 = vld [vmem:[%s0 + $0xd8] sm:$0xff]
  %v43 = vld [vmem:[%s0 + $0xe0] sm:$0xff]
  %v44 = vld [vmem:[%s0 + $0xe8] sm:$0xff]
  %v45 = vld [vmem:[%s0 + $0xf0] sm:$0xff]
  %v46 = vld [vmem:[%s0 + $0xf8] sm:$0xff]
  %v47 = vld [vmem:[%s0 + $0x100] sm:$0xff]
  %v48 = vld [vmem:[%s0 + $0x108] sm:$0xff]
  %v49 = vld [vmem:[%s0 + $0x110] sm:$0xff]
  %v50 = vld [vmem:[%s0 + $0x118] sm:$0xff]
  %v51 = vld [vmem:[%s0 + $0x120] sm:$0xff]
  %v52 = vld [vmem:[%s0 + $0x128] sm:$0xff]
  %v53 = vld [vmem:[%s0 + $0x130] sm:$0xff]
  %v54 = vld [vmem:[%s0 + $0x138] sm:$0xff]
  %v55 = vld [vmem:[%s0 + $0x140] sm:$0xff]
  %v56 = vld [vmem:[%s0 + $0x148] sm:$0xff]
  %v57 = vld [vmem:[%s0 + $0x150] sm:$0xff]
  %v58 = vld [vmem:[%s0 + $0x158] sm:$0xff]
  %v59 = vld [vmem:[%s0 + $0x160] sm:$0xff]
  %v60 = vld [vmem:[%s0 + $0x168] sm:$0xff]
  %v61 = vld [vmem:[%s0 + $0x170] sm:$0xff]
  %v62 = vld [vmem:[%s0 + $0x178] sm:$0xff]
  %v63 = vld [vmem:[%s0 + $0x180] sm:$0xff]
  %v64 = vld [vmem:[%s0 + $0x188] sm:$0xff]
  %v65 = vld [vmem:[%s0 + $0x190] sm:$0xff]
  %v66 = vld [vmem:[%s0 + $0x198] sm:$0xff]
  %v67 = vld [vmem:[%s0 + $0x1a0] sm:$0xff]
  %v68 = vld [vmem:[%s0 + $0x1a8] sm:$0xff]
  %v69 = vld [vmem:[%s0 + $0x1b0] sm:$0xff]
  %v70 = vld [vmem:[%s0 + $0x1b8] sm:$0xff]
  %v71 = vld [vmem:[%s0 + $0x1c0] sm:$0xff]
  %v72 = vld [vmem:[%s0 + $0x1c8] sm:$0xff]
  %v73 = vld [vmem:[%s0 + $0x1d0] sm:$0xff]
  %v74 = vld [vmem:[%s0 + $0x1d8] sm:$0xff]
  %v75 = vld [vmem:[%s0 + $0x1e0] sm:$0xff]
  %v76 = vld [vmem:[%s0 + $0x1e8] sm:$0xff]
  %v77 = vld [vmem:[%s0 + $0x1f0] sm:$0xff]
  %v78 = vld [vmem:[%s0 + $0x1f8] sm:$0xff]
  %v79 = vld [vmem:[%s1] sm:$0xf]
  %v80 = vld [vmem:[%s1 + $0x4] sm:$0xf]
  %v81 = vld [vmem:[%s1 + $0x8] sm:$0xf]
  %v82 = vld [vmem:[%s1 + $0xc] sm:$0xf]
  %v83 = vld [vmem:[%s1 + $0x10] sm:$0xf]
  %v84 = vld [vmem:[%s1 + $0x14] sm:$0xf]
  %v85 = vld [vmem:[%s1 + $0x18] sm:$0xf]
  %v86 = vld [vmem:[%s1 + $0x1c] sm:$0xf]
  %v87 = vld [vmem:[%s1 + $0x20] sm:$0xf]
  %v88 = vld [vmem:[%s1 + $0x24] sm:$0xf]
  %v89 = vld [vmem:[%s1 + $0x28] sm:$0xf]
  %v90 = vld [vmem:[%s1 + $0x2c] sm:$0xf]
  %v91 = vld [vmem:[%s1 + $0x30] sm:$0xf]
  %v92 = vld [vmem:[%s1 + $0x34] sm:$0xf]
  %v93 = vld [vmem:[%s1 + $0x38] sm:$0xf]
  %v94 = vld [vmem:[%s1 + $0x3c] sm:$0xf]
  %v95 = vld [vmem:[%s1 + $0x40] sm:$0xf]
  %v96 = vld [vmem:[%s1 + $0x44] sm:$0xf]
  %v97 = vld [vmem:[%s1 + $0x48] sm:$0xf]
  %v98 = vld [vmem:[%s1 + $0x4c] sm:$0xf]
  %v99 = vld [vmem:[%s1 + $0x50] sm:$0xf]
  %v100 = vld [vmem:[%s1 + $0x54] sm:$0xf]
  %v101 = vld [vmem:[%s1 + $0x58] sm:$0xf]
  %v102 = vld [vmem:[%s1 + $0x5c] sm:$0xf]
  %v103 = vld [vmem:[%s2] sm:$0x1]
  %v105 = vlaneseq
  %v106 = vshrl.u32 %v105, 7
  %v107 = vsub.s32 0, %v106
  %v108 = vrot.slane %v103, %v107
  %v174 = vunpack.c.l.b16 %v15
  %v175 = vunpack.c.h.b16 %v15
  %v176 = vunpack.c.l.b16 %v16
  %v177 = vunpack.c.h.b16 %v16
  %v178 = vunpack.c.l.b16 %v17
  %v179 = vunpack.c.h.b16 %v17
  %v180 = vunpack.c.l.b16 %v18
  %v181 = vunpack.c.h.b16 %v18
  %v182 = vunpack.c.l.b16 %v19
  %v183 = vunpack.c.h.b16 %v19
  %v184 = vunpack.c.l.b16 %v20
  %v185 = vunpack.c.h.b16 %v20
  %v186 = vunpack.c.l.b16 %v21
  %v187 = vunpack.c.h.b16 %v21
  %v188 = vunpack.c.l.b16 %v22
  %v189 = vunpack.c.h.b16 %v22
  %v190 = vunpack.c.l.b16 %v23
  %v191 = vunpack.c.h.b16 %v23
  %v192 = vunpack.c.l.b16 %v24
  %v193 = vunpack.c.h.b16 %v24
  %v194 = vunpack.c.l.b16 %v25
  %v195 = vunpack.c.h.b16 %v25
  %v196 = vunpack.c.l.b16 %v26
  %v197 = vunpack.c.h.b16 %v26
  %v198 = vunpack.c.l.b16 %v27
  %v199 = vunpack.c.h.b16 %v27
  %v200 = vunpack.c.l.b16 %v28
  %v201 = vunpack.c.h.b16 %v28
  %v202 = vunpack.c.l.b16 %v29
  %v203 = vunpack.c.h.b16 %v29
  %v204 = vunpack.c.l.b16 %v30
  %v205 = vunpack.c.h.b16 %v30
  %v206 = vunpack.c.l.b16 %v31
  %v207 = vunpack.c.h.b16 %v31
  %v208 = vunpack.c.l.b16 %v32
  %v209 = vunpack.c.h.b16 %v32
  %v210 = vunpack.c.l.b16 %v33
  %v211 = vunpack.c.h.b16 %v33
  %v212 = vunpack.c.l.b16 %v34
  %v213 = vunpack.c.h.b16 %v34
  %v214 = vunpack.c.l.b16 %v35
  %v215 = vunpack.c.h.b16 %v35
  %v216 = vunpack.c.l.b16 %v36
  %v217 = vunpack.c.h.b16 %v36
  %v218 = vunpack.c.l.b16 %v37
  %v219 = vunpack.c.h.b16 %v37
  %v220 = vunpack.c.l.b16 %v38
  %v221 = vunpack.c.h.b16 %v38
  %v222 = vunpack.c.l.b16 %v39
  %v223 = vunpack.c.h.b16 %v39
  %v224 = vunpack.c.l.b16 %v40
  %v225 = vunpack.c.h.b16 %v40
  %v226 = vunpack.c.l.b16 %v41
  %v227 = vunpack.c.h.b16 %v41
  %v228 = vunpack.c.l.b16 %v42
  %v229 = vunpack.c.h.b16 %v42
  %v230 = vunpack.c.l.b16 %v43
  %v231 = vunpack.c.h.b16 %v43
  %v232 = vunpack.c.l.b16 %v44
  %v233 = vunpack.c.h.b16 %v44
  %v234 = vunpack.c.l.b16 %v45
  %v235 = vunpack.c.h.b16 %v45
  %v236 = vunpack.c.l.b16 %v46
  %v237 = vunpack.c.h.b16 %v46
  %v238 = vunpack.c.l.b16 %v47
  %v239 = vunpack.c.h.b16 %v47
  %v240 = vunpack.c.l.b16 %v48
  %v241 = vunpack.c.h.b16 %v48
  %v242 = vunpack.c.l.b16 %v49
  %v243 = vunpack.c.h.b16 %v49
  %v244 = vunpack.c.l.b16 %v50
  %v245 = vunpack.c.h.b16 %v50
  %v246 = vunpack.c.l.b16 %v51
  %v247 = vunpack.c.h.b16 %v51
  %v248 = vunpack.c.l.b16 %v52
  %v249 = vunpack.c.h.b16 %v52
  %v250 = vunpack.c.l.b16 %v53
  %v251 = vunpack.c.h.b16 %v53
  %v252 = vunpack.c.l.b16 %v54
  %v253 = vunpack.c.h.b16 %v54
  %v254 = vunpack.c.l.b16 %v55
  %v255 = vunpack.c.h.b16 %v55
  %v256 = vunpack.c.l.b16 %v56
  %v257 = vunpack.c.h.b16 %v56
  %v258 = vunpack.c.l.b16 %v57
  %v259 = vunpack.c.h.b16 %v57
  %v260 = vunpack.c.l.b16 %v58
  %v261 = vunpack.c.h.b16 %v58
  %v262 = vunpack.c.l.b16 %v59
  %v263 = vunpack.c.h.b16 %v59
  %v264 = vunpack.c.l.b16 %v60
  %v265 = vunpack.c.h.b16 %v60
  %v266 = vunpack.c.l.b16 %v61
  %v267 = vunpack.c.h.b16 %v61
  %v268 = vunpack.c.l.b16 %v62
  %v269 = vunpack.c.h.b16 %v62
  %v270 = vunpack.c.l.b16 %v63
  %v271 = vunpack.c.h.b16 %v63
  %v272 = vunpack.c.l.b16 %v64
  %v273 = vunpack.c.h.b16 %v64
  %v274 = vunpack.c.l.b16 %v65
  %v275 = vunpack.c.h.b16 %v65
  %v276 = vunpack.c.l.b16 %v66
  %v277 = vunpack.c.h.b16 %v66
  %v278 = vunpack.c.l.b16 %v67
  %v279 = vunpack.c.h.b16 %v67
  %v280 = vunpack.c.l.b16 %v68
  %v281 = vunpack.c.h.b16 %v68
  %v282 = vunpack.c.l.b16 %v69
  %v283 = vunpack.c.h.b16 %v69
  %v284 = vunpack.c.l.b16 %v70
  %v285 = vunpack.c.h.b16 %v70
  %v286 = vunpack.c.l.b16 %v71
  %v287 = vunpack.c.h.b16 %v71
  %v288 = vunpack.c.l.b16 %v72
  %v289 = vunpack.c.h.b16 %v72
  %v290 = vunpack.c.l.b16 %v73
  %v291 = vunpack.c.h.b16 %v73
  %v292 = vunpack.c.l.b16 %v74
  %v293 = vunpack.c.h.b16 %v74
  %v294 = vunpack.c.l.b16 %v75
  %v295 = vunpack.c.h.b16 %v75
  %v296 = vunpack.c.l.b16 %v76
  %v297 = vunpack.c.h.b16 %v76
  %v298 = vunpack.c.l.b16 %v77
  %v299 = vunpack.c.h.b16 %v77
  %v300 = vunpack.c.l.b16 %v78
  %v301 = vunpack.c.h.b16 %v78
  %v302 = vpack.c.b16 %v176, %v174
  %v303 = vpack.c.b16 %v177, %v175
  %v304 = vpack.c.b16 %v180, %v178
  %v305 = vpack.c.b16 %v181, %v179
  %v306 = vpack.c.b16 %v184, %v182
  %v307 = vpack.c.b16 %v185, %v183
  %v308 = vpack.c.b16 %v188, %v186
  %v309 = vpack.c.b16 %v189, %v187
  %v310 = vpack.c.b16 %v192, %v190
  %v311 = vpack.c.b16 %v193, %v191
  %v312 = vpack.c.b16 %v196, %v194
  %v313 = vpack.c.b16 %v197, %v195
  %v314 = vpack.c.b16 %v200, %v198
  %v315 = vpack.c.b16 %v201, %v199
  %v316 = vpack.c.b16 %v204, %v202
  %v317 = vpack.c.b16 %v205, %v203
  %v318 = vpack.c.b16 %v208, %v206
  %v319 = vpack.c.b16 %v209, %v207
  %v320 = vpack.c.b16 %v212, %v210
  %v321 = vpack.c.b16 %v213, %v211
  %v322 = vpack.c.b16 %v216, %v214
  %v323 = vpack.c.b16 %v217, %v215
  %v324 = vpack.c.b16 %v220, %v218
  %v325 = vpack.c.b16 %v221, %v219
  %v326 = vpack.c.b16 %v224, %v222
  %v327 = vpack.c.b16 %v225, %v223
  %v328 = vpack.c.b16 %v228, %v226
  %v329 = vpack.c.b16 %v229, %v227
  %v330 = vpack.c.b16 %v232, %v230
  %v331 = vpack.c.b16 %v233, %v231
  %v332 = vpack.c.b16 %v236, %v234
  %v333 = vpack.c.b16 %v237, %v235
  %v334 = vpack.c.b16 %v240, %v238
  %v335 = vpack.c.b16 %v241, %v239
  %v336 = vpack.c.b16 %v244, %v242
  %v337 = vpack.c.b16 %v245, %v243
  %v338 = vpack.c.b16 %v248, %v246
  %v339 = vpack.c.b16 %v249, %v247
  %v340 = vpack.c.b16 %v252, %v250
  %v341 = vpack.c.b16 %v253, %v251
  %v342 = vpack.c.b16 %v256, %v254
  %v343 = vpack.c.b16 %v257, %v255
  %v344 = vpack.c.b16 %v260, %v258
  %v345 = vpack.c.b16 %v261, %v259
  %v346 = vpack.c.b16 %v264, %v262
  %v347 = vpack.c.b16 %v265, %v263
  %v348 = vpack.c.b16 %v268, %v266
  %v349 = vpack.c.b16 %v269, %v267
  %v350 = vpack.c.b16 %v272, %v270
  %v351 = vpack.c.b16 %v273, %v271
  %v352 = vpack.c.b16 %v276, %v274
  %v353 = vpack.c.b16 %v277, %v275
  %v354 = vpack.c.b16 %v280, %v278
  %v355 = vpack.c.b16 %v281, %v279
  %v356 = vpack.c.b16 %v284, %v282
  %v357 = vpack.c.b16 %v285, %v283
  %v358 = vpack.c.b16 %v288, %v286
  %v359 = vpack.c.b16 %v289, %v287
  %v360 = vpack.c.b16 %v292, %v290
  %v361 = vpack.c.b16 %v293, %v291
  %v362 = vpack.c.b16 %v296, %v294
  %v363 = vpack.c.b16 %v297, %v295
  %v364 = vpack.c.b16 %v300, %v298
  %v365 = vpack.c.b16 %v301, %v299
  %v422 = vunpack.c.l.b16 %v79
  %v423 = vunpack.c.l.b16 %v80
  %v424 = vunpack.c.l.b16 %v81
  %v425 = vunpack.c.l.b16 %v82
  %v426 = vunpack.c.l.b16 %v83
  %v427 = vunpack.c.l.b16 %v84
  %v428 = vunpack.c.l.b16 %v85
  %v429 = vunpack.c.l.b16 %v86
  %v430 = vunpack.c.l.b16 %v87
  %v431 = vunpack.c.l.b16 %v88
  %v432 = vunpack.c.l.b16 %v89
  %v433 = vunpack.c.l.b16 %v90
  %v434 = vunpack.c.l.b16 %v91
  %v435 = vunpack.c.l.b16 %v92
  %v436 = vunpack.c.l.b16 %v93
  %v437 = vunpack.c.l.b16 %v94
  %v438 = vunpack.c.l.b16 %v95
  %v439 = vunpack.c.l.b16 %v96
  %v440 = vunpack.c.l.b16 %v97
  %v441 = vunpack.c.l.b16 %v98
  %v442 = vunpack.c.l.b16 %v99
  %v443 = vunpack.c.l.b16 %v100
  %v444 = vunpack.c.l.b16 %v101
  %v445 = vunpack.c.l.b16 %v102
  %v446 = vpack.c.b16 %v423, %v422
  %v447 = vpack.c.b16 %v425, %v424
  %v448 = vpack.c.b16 %v427, %v426
  %v449 = vpack.c.b16 %v429, %v428
  %v450 = vpack.c.b16 %v431, %v430
  %v451 = vpack.c.b16 %v433, %v432
  %v452 = vpack.c.b16 %v435, %v434
  %v453 = vpack.c.b16 %v437, %v436
  %v454 = vpack.c.b16 %v439, %v438
  %v455 = vpack.c.b16 %v441, %v440
  %v456 = vpack.c.b16 %v443, %v442
  %v457 = vpack.c.b16 %v445, %v444
  %vm470 = vcmask 523264
  %v472 = vsel %vm470, %v303, 0
  %v475 = vsel %vm470, %v305, 0
  %v478 = vsel %vm470, %v307, 0
  %v481 = vsel %vm470, %v309, 0
  %v484 = vsel %vm470, %v311, 0
  %v487 = vsel %vm470, %v313, 0
  %v490 = vsel %vm470, %v315, 0
  %v493 = vsel %vm470, %v317, 0
  %v496 = vsel %vm470, %v319, 0
  %v499 = vsel %vm470, %v321, 0
  %v502 = vsel %vm470, %v323, 0
  %v505 = vsel %vm470, %v325, 0
  %v508 = vsel %vm470, %v327, 0
  %v511 = vsel %vm470, %v329, 0
  %v514 = vsel %vm470, %v331, 0
  %v517 = vsel %vm470, %v333, 0
  %v520 = vsel %vm470, %v335, 0
  %v523 = vsel %vm470, %v337, 0
  %v526 = vsel %vm470, %v339, 0
  %v529 = vsel %vm470, %v341, 0
  %v532 = vsel %vm470, %v343, 0
  %v535 = vsel %vm470, %v345, 0
  %v538 = vsel %vm470, %v347, 0
  %v541 = vsel %vm470, %v349, 0
  %v544 = vsel %vm470, %v351, 0
  %v547 = vsel %vm470, %v353, 0
  %v550 = vsel %vm470, %v355, 0
  %v553 = vsel %vm470, %v357, 0
  %v556 = vsel %vm470, %v359, 0
  %v559 = vsel %vm470, %v361, 0
  %v562 = vsel %vm470, %v363, 0
  %v565 = vsel %vm470, %v365, 0
  %567 = vmatprep.subr.bf16.mxu0 0
  %568 = vmatpush1.bf16.msra.mxu0 %v453
  %569 = vmatprep.subr.bf16.mxu0 0
  %570 = vmatpush1.bf16.msra.mxu0 %v452
  %571 = vmatprep.subr.bf16.mxu0 0
  %572 = vmatpush1.bf16.msra.mxu0 %v451
  %573 = vmatprep.subr.bf16.mxu0 0
  %574 = vmatpush1.bf16.msra.mxu0 %v450
  %575 = vmatprep.subr.bf16.mxu0 0
  %576 = vmatpush1.bf16.msra.mxu0 %v449
  %577 = vmatprep.subr.bf16.mxu0 0
  %578 = vmatpush1.bf16.msra.mxu0 %v448
  %579 = vmatprep.subr.bf16.mxu0 0
  %580 = vmatpush1.bf16.msra.mxu0 %v447
  %581 = vmatprep.subr.bf16.mxu0 0
  %582 = vmatpush1.bf16.msra.mxu0 %v446
  %583 = vmatprep.subr.bf16.mxu0 0
  %584 = vmatpush2.bf16.msra.mxu0 0
  %585 = vmatprep.subr.bf16.mxu0 0
  %586 = vmatpush2.bf16.msra.mxu0 0
  %587 = vmatprep.subr.bf16.mxu0 0
  %588 = vmatpush2.bf16.msra.mxu0 0
  %589 = vmatprep.subr.bf16.mxu0 0
  %590 = vmatpush2.bf16.msra.mxu0 0
  %591 = vmatprep.subr.bf16.mxu0 0
  %592 = vmatpush2.bf16.msra.mxu0 %v457
  %593 = vmatprep.subr.bf16.mxu0 0
  %594 = vmatpush2.bf16.msra.mxu0 %v456
  %595 = vmatprep.subr.bf16.mxu0 0
  %596 = vmatpush2.bf16.msra.mxu0 %v455
  %597 = vmatprep.subr.bf16.mxu0 0
  %598 = vmatpush2.bf16.msra.mxu0 %v454
  %599 = vmatprep.mubr.bf16.mxu0 %v472
  %600 = vmatmul.mubr.bf16.gmra.mxu0 %v302
  %v601 = vpop.f32.mrf.mxu0
  %v602 = vadd.f32 %v108, %v601
  %v603 = vpop.f32.mrf.mxu0
  %v604 = vpop.f32.mrf.mxu0
  %v605 = vadd.f32 %v108, %v604
  %v606 = vpop.f32.mrf.mxu0
  %607 = vmatprep.mubr.bf16.mxu0 %v475
  %608 = vmatmul.mubr.bf16.gmra.mxu0 %v304
  %v609 = vpop.f32.mrf.mxu0
  %v610 = vadd.f32 %v108, %v609
  %v611 = vpop.f32.mrf.mxu0
  %v612 = vpop.f32.mrf.mxu0
  %v613 = vadd.f32 %v108, %v612
  %v614 = vpop.f32.mrf.mxu0
  %615 = vmatprep.mubr.bf16.mxu0 %v478
  %616 = vmatmul.mubr.bf16.gmra.mxu0 %v306
  %v617 = vpop.f32.mrf.mxu0
  %v618 = vadd.f32 %v108, %v617
  %v619 = vpop.f32.mrf.mxu0
  %v620 = vpop.f32.mrf.mxu0
  %v621 = vadd.f32 %v108, %v620
  %v622 = vpop.f32.mrf.mxu0
  %623 = vmatprep.mubr.bf16.mxu0 %v481
  %624 = vmatmul.mubr.bf16.gmra.mxu0 %v308
  %v625 = vpop.f32.mrf.mxu0
  %v626 = vadd.f32 %v108, %v625
  %v627 = vpop.f32.mrf.mxu0
  %v628 = vpop.f32.mrf.mxu0
  %v629 = vadd.f32 %v108, %v628
  %v630 = vpop.f32.mrf.mxu0
  %631 = vmatprep.mubr.bf16.mxu0 %v484
  %632 = vmatmul.mubr.bf16.gmra.mxu0 %v310
  %v633 = vpop.f32.mrf.mxu0
  %v634 = vadd.f32 %v108, %v633
  %v635 = vpop.f32.mrf.mxu0
  %v636 = vpop.f32.mrf.mxu0
  %v637 = vadd.f32 %v108, %v636
  %v638 = vpop.f32.mrf.mxu0
  %639 = vmatprep.mubr.bf16.mxu0 %v487
  %640 = vmatmul.mubr.bf16.gmra.mxu0 %v312
  %v641 = vpop.f32.mrf.mxu0
  %v642 = vadd.f32 %v108, %v641
  %v643 = vpop.f32.mrf.mxu0
  %v644 = vpop.f32.mrf.mxu0
  %v645 = vadd.f32 %v108, %v644
  %v646 = vpop.f32.mrf.mxu0
  %647 = vmatprep.mubr.bf16.mxu0 %v490
  %648 = vmatmul.mubr.bf16.gmra.mxu0 %v314
  %v649 = vpop.f32.mrf.mxu0
  %v650 = vadd.f32 %v108, %v649
  %v651 = vpop.f32.mrf.mxu0
  %v652 = vpop.f32.mrf.mxu0
  %v653 = vadd.f32 %v108, %v652
  %v654 = vpop.f32.mrf.mxu0
  %655 = vmatprep.mubr.bf16.mxu0 %v493
  %656 = vmatmul.mubr.bf16.gmra.mxu0 %v316
  %v657 = vpop.f32.mrf.mxu0
  %v658 = vadd.f32 %v108, %v657
  %v659 = vpop.f32.mrf.mxu0
  %v660 = vpop.f32.mrf.mxu0
  %v661 = vadd.f32 %v108, %v660
  %v662 = vpop.f32.mrf.mxu0
  %663 = vmatprep.mubr.bf16.mxu0 %v496
  %664 = vmatmul.mubr.bf16.gmra.mxu0 %v318
  %v665 = vpop.f32.mrf.mxu0
  %v666 = vadd.f32 %v108, %v665
  %v667 = vpop.f32.mrf.mxu0
  %v668 = vpop.f32.mrf.mxu0
  %v669 = vadd.f32 %v108, %v668
  %v670 = vpop.f32.mrf.mxu0
  %671 = vmatprep.mubr.bf16.mxu0 %v499
  %672 = vmatmul.mubr.bf16.gmra.mxu0 %v320
  %v673 = vpop.f32.mrf.mxu0
  %v674 = vadd.f32 %v108, %v673
  %v675 = vpop.f32.mrf.mxu0
  %v676 = vpop.f32.mrf.mxu0
  %v677 = vadd.f32 %v108, %v676
  %v678 = vpop.f32.mrf.mxu0
  %679 = vmatprep.mubr.bf16.mxu0 %v502
  %680 = vmatmul.mubr.bf16.gmra.mxu0 %v322
  %v681 = vpop.f32.mrf.mxu0
  %v682 = vadd.f32 %v108, %v681
  %v683 = vpop.f32.mrf.mxu0
  %v684 = vpop.f32.mrf.mxu0
  %v685 = vadd.f32 %v108, %v684
  %v686 = vpop.f32.mrf.mxu0
  %687 = vmatprep.mubr.bf16.mxu0 %v505
  %688 = vmatmul.mubr.bf16.gmra.mxu0 %v324
  %v689 = vpop.f32.mrf.mxu0
  %v690 = vadd.f32 %v108, %v689
  %v691 = vpop.f32.mrf.mxu0
  %v692 = vpop.f32.mrf.mxu0
  %v693 = vadd.f32 %v108, %v692
  %v694 = vpop.f32.mrf.mxu0
  %695 = vmatprep.mubr.bf16.mxu0 %v508
  %696 = vmatmul.mubr.bf16.gmra.mxu0 %v326
  %v697 = vpop.f32.mrf.mxu0
  %v698 = vadd.f32 %v108, %v697
  %v699 = vpop.f32.mrf.mxu0
  %v700 = vpop.f32.mrf.mxu0
  %v701 = vadd.f32 %v108, %v700
  %v702 = vpop.f32.mrf.mxu0
  %703 = vmatprep.mubr.bf16.mxu0 %v511
  %704 = vmatmul.mubr.bf16.gmra.mxu0 %v328
  %v705 = vpop.f32.mrf.mxu0
  %v706 = vadd.f32 %v108, %v705
  %v707 = vpop.f32.mrf.mxu0
  %v708 = vpop.f32.mrf.mxu0
  %v709 = vadd.f32 %v108, %v708
  %v710 = vpop.f32.mrf.mxu0
  %711 = vmatprep.mubr.bf16.mxu0 %v514
  %712 = vmatmul.mubr.bf16.gmra.mxu0 %v330
  %v713 = vpop.f32.mrf.mxu0
  %v714 = vadd.f32 %v108, %v713
  %v715 = vpop.f32.mrf.mxu0
  %v716 = vpop.f32.mrf.mxu0
  %v717 = vadd.f32 %v108, %v716
  %v718 = vpop.f32.mrf.mxu0
  %719 = vmatprep.mubr.bf16.mxu0 %v517
  %720 = vmatmul.mubr.bf16.gmra.mxu0 %v332
  %v721 = vpop.f32.mrf.mxu0
  %v722 = vadd.f32 %v108, %v721
  %v723 = vpop.f32.mrf.mxu0
  %v724 = vpop.f32.mrf.mxu0
  %v725 = vadd.f32 %v108, %v724
  %v726 = vpop.f32.mrf.mxu0
  %727 = vmatprep.mubr.bf16.mxu0 %v520
  %728 = vmatmul.mubr.bf16.gmra.mxu0 %v334
  %v729 = vpop.f32.mrf.mxu0
  %v730 = vadd.f32 %v108, %v729
  %v731 = vpop.f32.mrf.mxu0
  %v732 = vpop.f32.mrf.mxu0
  %v733 = vadd.f32 %v108, %v732
  %v734 = vpop.f32.mrf.mxu0
  %735 = vmatprep.mubr.bf16.mxu0 %v523
  %736 = vmatmul.mubr.bf16.gmra.mxu0 %v336
  %v737 = vpop.f32.mrf.mxu0
  %v738 = vadd.f32 %v108, %v737
  %v739 = vpop.f32.mrf.mxu0
  %v740 = vpop.f32.mrf.mxu0
  %v741 = vadd.f32 %v108, %v740
  %v742 = vpop.f32.mrf.mxu0
  %743 = vmatprep.mubr.bf16.mxu0 %v526
  %744 = vmatmul.mubr.bf16.gmra.mxu0 %v338
  %v745 = vpop.f32.mrf.mxu0
  %v746 = vadd.f32 %v108, %v745
  %v747 = vpop.f32.mrf.mxu0
  %v748 = vpop.f32.mrf.mxu0
  %v749 = vadd.f32 %v108, %v748
  %v750 = vpop.f32.mrf.mxu0
  %751 = vmatprep.mubr.bf16.mxu0 %v529
  %752 = vmatmul.mubr.bf16.gmra.mxu0 %v340
  %v753 = vpop.f32.mrf.mxu0
  %v754 = vadd.f32 %v108, %v753
  %v755 = vpop.f32.mrf.mxu0
  %v756 = vpop.f32.mrf.mxu0
  %v757 = vadd.f32 %v108, %v756
  %v758 = vpop.f32.mrf.mxu0
  %759 = vmatprep.mubr.bf16.mxu0 %v532
  %760 = vmatmul.mubr.bf16.gmra.mxu0 %v342
  %v761 = vpop.f32.mrf.mxu0
  %v762 = vadd.f32 %v108, %v761
  %v763 = vpop.f32.mrf.mxu0
  %v764 = vpop.f32.mrf.mxu0
  %v765 = vadd.f32 %v108, %v764
  %v766 = vpop.f32.mrf.mxu0
  %767 = vmatprep.mubr.bf16.mxu0 %v535
  %768 = vmatmul.mubr.bf16.gmra.mxu0 %v344
  %v769 = vpop.f32.mrf.mxu0
  %v770 = vadd.f32 %v108, %v769
  %v771 = vpop.f32.mrf.mxu0
  %v772 = vpop.f32.mrf.mxu0
  %v773 = vadd.f32 %v108, %v772
  %v774 = vpop.f32.mrf.mxu0
  %775 = vmatprep.mubr.bf16.mxu0 %v538
  %776 = vmatmul.mubr.bf16.gmra.mxu0 %v346
  %v777 = vpop.f32.mrf.mxu0
  %v778 = vadd.f32 %v108, %v777
  %v779 = vpop.f32.mrf.mxu0
  %v780 = vpop.f32.mrf.mxu0
  %v781 = vadd.f32 %v108, %v780
  %v782 = vpop.f32.mrf.mxu0
  %783 = vmatprep.mubr.bf16.mxu0 %v541
  %784 = vmatmul.mubr.bf16.gmra.mxu0 %v348
  %v785 = vpop.f32.mrf.mxu0
  %v786 = vadd.f32 %v108, %v785
  %v787 = vpop.f32.mrf.mxu0
  %v788 = vpop.f32.mrf.mxu0
  %v789 = vadd.f32 %v108, %v788
  %v790 = vpop.f32.mrf.mxu0
  %791 = vmatprep.mubr.bf16.mxu0 %v544
  %792 = vmatmul.mubr.bf16.gmra.mxu0 %v350
  %v793 = vpop.f32.mrf.mxu0
  %v794 = vadd.f32 %v108, %v793
  %v795 = vpop.f32.mrf.mxu0
  %v796 = vpop.f32.mrf.mxu0
  %v797 = vadd.f32 %v108, %v796
  %v798 = vpop.f32.mrf.mxu0
  %799 = vmatprep.mubr.bf16.mxu0 %v547
  %800 = vmatmul.mubr.bf16.gmra.mxu0 %v352
  %v801 = vpop.f32.mrf.mxu0
  %v802 = vadd.f32 %v108, %v801
  %v803 = vpop.f32.mrf.mxu0
  %v804 = vpop.f32.mrf.mxu0
  %v805 = vadd.f32 %v108, %v804
  %v806 = vpop.f32.mrf.mxu0
  %807 = vmatprep.mubr.bf16.mxu0 %v550
  %808 = vmatmul.mubr.bf16.gmra.mxu0 %v354
  %v809 = vpop.f32.mrf.mxu0
  %v810 = vadd.f32 %v108, %v809
  %v811 = vpop.f32.mrf.mxu0
  %v812 = vpop.f32.mrf.mxu0
  %v813 = vadd.f32 %v108, %v812
  %v814 = vpop.f32.mrf.mxu0
  %815 = vmatprep.mubr.bf16.mxu0 %v553
  %816 = vmatmul.mubr.bf16.gmra.mxu0 %v356
  %v817 = vpop.f32.mrf.mxu0
  %v818 = vadd.f32 %v108, %v817
  %v819 = vpop.f32.mrf.mxu0
  %v820 = vpop.f32.mrf.mxu0
  %v821 = vadd.f32 %v108, %v820
  %v822 = vpop.f32.mrf.mxu0
  %823 = vmatprep.mubr.bf16.mxu0 %v556
  %824 = vmatmul.mubr.bf16.gmra.mxu0 %v358
  %v825 = vpop.f32.mrf.mxu0
  %v826 = vadd.f32 %v108, %v825
  %v827 = vpop.f32.mrf.mxu0
  %v828 = vpop.f32.mrf.mxu0
  %v829 = vadd.f32 %v108, %v828
  %v830 = vpop.f32.mrf.mxu0
  %831 = vmatprep.mubr.bf16.mxu0 %v559
  %832 = vmatmul.mubr.bf16.gmra.mxu0 %v360
  %v833 = vpop.f32.mrf.mxu0
  %v834 = vadd.f32 %v108, %v833
  %v835 = vpop.f32.mrf.mxu0
  %v836 = vpop.f32.mrf.mxu0
  %v837 = vadd.f32 %v108, %v836
  %v838 = vpop.f32.mrf.mxu0
  %839 = vmatprep.mubr.bf16.mxu0 %v562
  %840 = vmatmul.mubr.bf16.gmra.mxu0 %v362
  %v841 = vpop.f32.mrf.mxu0
  %v842 = vadd.f32 %v108, %v841
  %v843 = vpop.f32.mrf.mxu0
  %v844 = vpop.f32.mrf.mxu0
  %v845 = vadd.f32 %v108, %v844
  %v846 = vpop.f32.mrf.mxu0
  %847 = vmatprep.mubr.bf16.mxu0 %v565
  %848 = vmatmul.mubr.bf16.gmra.mxu0 %v364
  %v849 = vpop.f32.mrf.mxu0
  %v850 = vadd.f32 %v108, %v849
  %v851 = vpop.f32.mrf.mxu0
  %v852 = vpop.f32.mrf.mxu0
  %v853 = vadd.f32 %v108, %v852
  %v854 = vpop.f32.mrf.mxu0
  %855 = vdwg.mxu0
  %v856 = vmul.f32 %v602, 0.2
  %v857 = vmul.f32 %v605, 0.2
  %v858 = vmul.f32 %v610, 0.2
  %v859 = vmul.f32 %v613, 0.2
  %v860 = vmul.f32 %v618, 0.2
  %v861 = vmul.f32 %v621, 0.2
  %v862 = vmul.f32 %v626, 0.2
  %v863 = vmul.f32 %v629, 0.2
  %v864 = vmul.f32 %v634, 0.2
  %v865 = vmul.f32 %v637, 0.2
  %v866 = vmul.f32 %v642, 0.2
  %v867 = vmul.f32 %v645, 0.2
  %v868 = vmul.f32 %v650, 0.2
  %v869 = vmul.f32 %v653, 0.2
  %v870 = vmul.f32 %v658, 0.2
  %v871 = vmul.f32 %v661, 0.2
  %v872 = vmul.f32 %v666, 0.2
  %v873 = vmul.f32 %v669, 0.2
  %v874 = vmul.f32 %v674, 0.2
  %v875 = vmul.f32 %v677, 0.2
  %v876 = vmul.f32 %v682, 0.2
  %v877 = vmul.f32 %v685, 0.2
  %v878 = vmul.f32 %v690, 0.2
  %v879 = vmul.f32 %v693, 0.2
  %v880 = vmul.f32 %v698, 0.2
  %v881 = vmul.f32 %v701, 0.2
  %v882 = vmul.f32 %v706, 0.2
  %v883 = vmul.f32 %v709, 0.2
  %v884 = vmul.f32 %v714, 0.2
  %v885 = vmul.f32 %v717, 0.2
  %v886 = vmul.f32 %v722, 0.2
  %v887 = vmul.f32 %v725, 0.2
  %v888 = vmul.f32 %v730, 0.2
  %v889 = vmul.f32 %v733, 0.2
  %v890 = vmul.f32 %v738, 0.2
  %v891 = vmul.f32 %v741, 0.2
  %v892 = vmul.f32 %v746, 0.2
  %v893 = vmul.f32 %v749, 0.2
  %v894 = vmul.f32 %v754, 0.2
  %v895 = vmul.f32 %v757, 0.2
  %v896 = vmul.f32 %v762, 0.2
  %v897 = vmul.f32 %v765, 0.2
  %v898 = vmul.f32 %v770, 0.2
  %v899 = vmul.f32 %v773, 0.2
  %v900 = vmul.f32 %v778, 0.2
  %v901 = vmul.f32 %v781, 0.2
  %v902 = vmul.f32 %v786, 0.2
  %v903 = vmul.f32 %v789, 0.2
  %v904 = vmul.f32 %v794, 0.2
  %v905 = vmul.f32 %v797, 0.2
  %v906 = vmul.f32 %v802, 0.2
  %v907 = vmul.f32 %v805, 0.2
  %v908 = vmul.f32 %v810, 0.2
  %v909 = vmul.f32 %v813, 0.2
  %v910 = vmul.f32 %v818, 0.2
  %v911 = vmul.f32 %v821, 0.2
  %v912 = vmul.f32 %v826, 0.2
  %v913 = vmul.f32 %v829, 0.2
  %v914 = vmul.f32 %v834, 0.2
  %v915 = vmul.f32 %v837, 0.2
  %v916 = vmul.f32 %v842, 0.2
  %v917 = vmul.f32 %v845, 0.2
  %v918 = vmul.f32 %v850, 0.2
  %v919 = vmul.f32 %v853, 0.2
  %v920 = vmax.f32 %v602, %v856
  %v921 = vmax.f32 %v605, %v857
  %v922 = vmax.f32 %v610, %v858
  %v923 = vmax.f32 %v613, %v859
  %v924 = vmax.f32 %v618, %v860
  %v925 = vmax.f32 %v621, %v861
  %v926 = vmax.f32 %v626, %v862
  %v927 = vmax.f32 %v629, %v863
  %v928 = vmax.f32 %v634, %v864
  %v929 = vmax.f32 %v637, %v865
  %v930 = vmax.f32 %v642, %v866
  %v931 = vmax.f32 %v645, %v867
  %v932 = vmax.f32 %v650, %v868
  %v933 = vmax.f32 %v653, %v869
  %v934 = vmax.f32 %v658, %v870
  %v935 = vmax.f32 %v661, %v871
  %v936 = vmax.f32 %v666, %v872
  %v937 = vmax.f32 %v669, %v873
  %v938 = vmax.f32 %v674, %v874
  %v939 = vmax.f32 %v677, %v875
  %v940 = vmax.f32 %v682, %v876
  %v941 = vmax.f32 %v685, %v877
  %v942 = vmax.f32 %v690, %v878
  %v943 = vmax.f32 %v693, %v879
  %v944 = vmax.f32 %v698, %v880
  %v945 = vmax.f32 %v701, %v881
  %v946 = vmax.f32 %v706, %v882
  %v947 = vmax.f32 %v709, %v883
  %v948 = vmax.f32 %v714, %v884
  %v949 = vmax.f32 %v717, %v885
  %v950 = vmax.f32 %v722, %v886
  %v951 = vmax.f32 %v725, %v887
  %v952 = vmax.f32 %v730, %v888
  %v953 = vmax.f32 %v733, %v889
  %v954 = vmax.f32 %v738, %v890
  %v955 = vmax.f32 %v741, %v891
  %v956 = vmax.f32 %v746, %v892
  %v957 = vmax.f32 %v749, %v893
  %v958 = vmax.f32 %v754, %v894
  %v959 = vmax.f32 %v757, %v895
  %v960 = vmax.f32 %v762, %v896
  %v961 = vmax.f32 %v765, %v897
  %v962 = vmax.f32 %v770, %v898
  %v963 = vmax.f32 %v773, %v899
  %v964 = vmax.f32 %v778, %v900
  %v965 = vmax.f32 %v781, %v901
  %v966 = vmax.f32 %v786, %v902
  %v967 = vmax.f32 %v789, %v903
  %v968 = vmax.f32 %v794, %v904
  %v969 = vmax.f32 %v797, %v905
  %v970 = vmax.f32 %v802, %v906
  %v971 = vmax.f32 %v805, %v907
  %v972 = vmax.f32 %v810, %v908
  %v973 = vmax.f32 %v813, %v909
  %v974 = vmax.f32 %v818, %v910
  %v975 = vmax.f32 %v821, %v911
  %v976 = vmax.f32 %v826, %v912
  %v977 = vmax.f32 %v829, %v913
  %v978 = vmax.f32 %v834, %v914
  %v979 = vmax.f32 %v837, %v915
  %v980 = vmax.f32 %v842, %v916
  %v981 = vmax.f32 %v845, %v917
  %v982 = vmax.f32 %v850, %v918
  %v983 = vmax.f32 %v853, %v919
  %v984 = vpack.c.bf16 %v921, %v920
  %v985 = vpack.c.bf16 %v923, %v922
  %v986 = vpack.c.bf16 %v925, %v924
  %v987 = vpack.c.bf16 %v927, %v926
  %v988 = vpack.c.bf16 %v929, %v928
  %v989 = vpack.c.bf16 %v931, %v930
  %v990 = vpack.c.bf16 %v933, %v932
  %v991 = vpack.c.bf16 %v935, %v934
  %v992 = vpack.c.bf16 %v937, %v936
  %v993 = vpack.c.bf16 %v939, %v938
  %v994 = vpack.c.bf16 %v941, %v940
  %v995 = vpack.c.bf16 %v943, %v942
  %v996 = vpack.c.bf16 %v945, %v944
  %v997 = vpack.c.bf16 %v947, %v946
  %v998 = vpack.c.bf16 %v949, %v948
  %v999 = vpack.c.bf16 %v951, %v950
  %v1000 = vpack.c.bf16 %v953, %v952
  %v1001 = vpack.c.bf16 %v955, %v954
  %v1002 = vpack.c.bf16 %v957, %v956
  %v1003 = vpack.c.bf16 %v959, %v958
  %v1004 = vpack.c.bf16 %v961, %v960
  %v1005 = vpack.c.bf16 %v963, %v962
  %v1006 = vpack.c.bf16 %v965, %v964
  %v1007 = vpack.c.bf16 %v967, %v966
  %v1008 = vpack.c.bf16 %v969, %v968
  %v1009 = vpack.c.bf16 %v971, %v970
  %v1010 = vpack.c.bf16 %v973, %v972
  %v1011 = vpack.c.bf16 %v975, %v974
  %v1012 = vpack.c.bf16 %v977, %v976
  %v1013 = vpack.c.bf16 %v979, %v978
  %v1014 = vpack.c.bf16 %v981, %v980
  %v1015 = vpack.c.bf16 %v983, %v982
  %v1048 = vunpack.c.l.b16 %v984
  %v1049 = vunpack.c.h.b16 %v984
  %v1050 = vunpack.c.l.b16 %v985
  %v1051 = vunpack.c.h.b16 %v985
  %v1052 = vunpack.c.l.b16 %v986
  %v1053 = vunpack.c.h.b16 %v986
  %v1054 = vunpack.c.l.b16 %v987
  %v1055 = vunpack.c.h.b16 %v987
  %v1056 = vunpack.c.l.b16 %v988
  %v1057 = vunpack.c.h.b16 %v988
  %v1058 = vunpack.c.l.b16 %v989
  %v1059 = vunpack.c.h.b16 %v989
  %v1060 = vunpack.c.l.b16 %v990
  %v1061 = vunpack.c.h.b16 %v990
  %v1062 = vunpack.c.l.b16 %v991
  %v1063 = vunpack.c.h.b16 %v991
  %v1064 = vunpack.c.l.b16 %v992
  %v1065 = vunpack.c.h.b16 %v992
  %v1066 = vunpack.c.l.b16 %v993
  %v1067 = vunpack.c.h.b16 %v993
  %v1068 = vunpack.c.l.b16 %v994
  %v1069 = vunpack.c.h.b16 %v994
  %v1070 = vunpack.c.l.b16 %v995
  %v1071 = vunpack.c.h.b16 %v995
  %v1072 = vunpack.c.l.b16 %v996
  %v1073 = vunpack.c.h.b16 %v996
  %v1074 = vunpack.c.l.b16 %v997
  %v1075 = vunpack.c.h.b16 %v997
  %v1076 = vunpack.c.l.b16 %v998
  %v1077 = vunpack.c.h.b16 %v998
  %v1078 = vunpack.c.l.b16 %v999
  %v1079 = vunpack.c.h.b16 %v999
  %v1080 = vunpack.c.l.b16 %v1000
  %v1081 = vunpack.c.h.b16 %v1000
  %v1082 = vunpack.c.l.b16 %v1001
  %v1083 = vunpack.c.h.b16 %v1001
  %v1084 = vunpack.c.l.b16 %v1002
  %v1085 = vunpack.c.h.b16 %v1002
  %v1086 = vunpack.c.l.b16 %v1003
  %v1087 = vunpack.c.h.b16 %v1003
  %v1088 = vunpack.c.l.b16 %v1004
  %v1089 = vunpack.c.h.b16 %v1004
  %v1090 = vunpack.c.l.b16 %v1005
  %v1091 = vunpack.c.h.b16 %v1005
  %v1092 = vunpack.c.l.b16 %v1006
  %v1093 = vunpack.c.h.b16 %v1006
  %v1094 = vunpack.c.l.b16 %v1007
  %v1095 = vunpack.c.h.b16 %v1007
  %v1096 = vunpack.c.l.b16 %v1008
  %v1097 = vunpack.c.h.b16 %v1008
  %v1098 = vunpack.c.l.b16 %v1009
  %v1099 = vunpack.c.h.b16 %v1009
  %v1100 = vunpack.c.l.b16 %v1010
  %v1101 = vunpack.c.h.b16 %v1010
  %v1102 = vunpack.c.l.b16 %v1011
  %v1103 = vunpack.c.h.b16 %v1011
  %v1104 = vunpack.c.l.b16 %v1012
  %v1105 = vunpack.c.h.b16 %v1012
  %v1106 = vunpack.c.l.b16 %v1013
  %v1107 = vunpack.c.h.b16 %v1013
  %v1108 = vunpack.c.l.b16 %v1014
  %v1109 = vunpack.c.h.b16 %v1014
  %v1110 = vunpack.c.l.b16 %v1015
  %v1111 = vunpack.c.h.b16 %v1015
  %v1112 = vpack.c.b16 %v1048, %v1048
  %v1113 = vpack.c.b16 %v1049, %v1049
  %v1114 = vpack.c.b16 %v1050, %v1050
  %v1115 = vpack.c.b16 %v1051, %v1051
  %v1116 = vpack.c.b16 %v1052, %v1052
  %v1117 = vpack.c.b16 %v1053, %v1053
  %v1118 = vpack.c.b16 %v1054, %v1054
  %v1119 = vpack.c.b16 %v1055, %v1055
  %v1120 = vpack.c.b16 %v1056, %v1056
  %v1121 = vpack.c.b16 %v1057, %v1057
  %v1122 = vpack.c.b16 %v1058, %v1058
  %v1123 = vpack.c.b16 %v1059, %v1059
  %v1124 = vpack.c.b16 %v1060, %v1060
  %v1125 = vpack.c.b16 %v1061, %v1061
  %v1126 = vpack.c.b16 %v1062, %v1062
  %v1127 = vpack.c.b16 %v1063, %v1063
  %v1128 = vpack.c.b16 %v1064, %v1064
  %v1129 = vpack.c.b16 %v1065, %v1065
  %v1130 = vpack.c.b16 %v1066, %v1066
  %v1131 = vpack.c.b16 %v1067, %v1067
  %v1132 = vpack.c.b16 %v1068, %v1068
  %v1133 = vpack.c.b16 %v1069, %v1069
  %v1134 = vpack.c.b16 %v1070, %v1070
  %v1135 = vpack.c.b16 %v1071, %v1071
  %v1136 = vpack.c.b16 %v1072, %v1072
  %v1137 = vpack.c.b16 %v1073, %v1073
  %v1138 = vpack.c.b16 %v1074, %v1074
  %v1139 = vpack.c.b16 %v1075, %v1075
  %v1140 = vpack.c.b16 %v1076, %v1076
  %v1141 = vpack.c.b16 %v1077, %v1077
  %v1142 = vpack.c.b16 %v1078, %v1078
  %v1143 = vpack.c.b16 %v1079, %v1079
  %v1144 = vpack.c.b16 %v1080, %v1080
  %v1145 = vpack.c.b16 %v1081, %v1081
  %v1146 = vpack.c.b16 %v1082, %v1082
  %v1147 = vpack.c.b16 %v1083, %v1083
  %v1148 = vpack.c.b16 %v1084, %v1084
  %v1149 = vpack.c.b16 %v1085, %v1085
  %v1150 = vpack.c.b16 %v1086, %v1086
  %v1151 = vpack.c.b16 %v1087, %v1087
  %v1152 = vpack.c.b16 %v1088, %v1088
  %v1153 = vpack.c.b16 %v1089, %v1089
  %v1154 = vpack.c.b16 %v1090, %v1090
  %v1155 = vpack.c.b16 %v1091, %v1091
  %v1156 = vpack.c.b16 %v1092, %v1092
  %v1157 = vpack.c.b16 %v1093, %v1093
  %v1158 = vpack.c.b16 %v1094, %v1094
  %v1159 = vpack.c.b16 %v1095, %v1095
  %v1160 = vpack.c.b16 %v1096, %v1096
  %v1161 = vpack.c.b16 %v1097, %v1097
  %v1162 = vpack.c.b16 %v1098, %v1098
  %v1163 = vpack.c.b16 %v1099, %v1099
  %v1164 = vpack.c.b16 %v1100, %v1100
  %v1165 = vpack.c.b16 %v1101, %v1101
  %v1166 = vpack.c.b16 %v1102, %v1102
  %v1167 = vpack.c.b16 %v1103, %v1103
  %v1168 = vpack.c.b16 %v1104, %v1104
  %v1169 = vpack.c.b16 %v1105, %v1105
  %v1170 = vpack.c.b16 %v1106, %v1106
  %v1171 = vpack.c.b16 %v1107, %v1107
  %v1172 = vpack.c.b16 %v1108, %v1108
  %v1173 = vpack.c.b16 %v1109, %v1109
  %v1174 = vpack.c.b16 %v1110, %v1110
  %v1175 = vpack.c.b16 %v1111, %v1111
  %1240 = vst [vmem:[%s3] sm:$0xf] %v1112
  %1241 = vst [vmem:[%s3 + $0x4] sm:$0xf] %v1113
  %1242 = vst [vmem:[%s3 + $0x8] sm:$0xf] %v1114
  %1243 = vst [vmem:[%s3 + $0xc] sm:$0xf] %v1115
  %1244 = vst [vmem:[%s3 + $0x10] sm:$0xf] %v1116
  %1245 = vst [vmem:[%s3 + $0x14] sm:$0xf] %v1117
  %1246 = vst [vmem:[%s3 + $0x18] sm:$0xf] %v1118
  %1247 = vst [vmem:[%s3 + $0x1c] sm:$0xf] %v1119
  %1248 = vst [vmem:[%s3 + $0x20] sm:$0xf] %v1120
  %1249 = vst [vmem:[%s3 + $0x24] sm:$0xf] %v1121
  %1250 = vst [vmem:[%s3 + $0x28] sm:$0xf] %v1122
  %1251 = vst [vmem:[%s3 + $0x2c] sm:$0xf] %v1123
  %1252 = vst [vmem:[%s3 + $0x30] sm:$0xf] %v1124
  %1253 = vst [vmem:[%s3 + $0x34] sm:$0xf] %v1125
  %1254 = vst [vmem:[%s3 + $0x38] sm:$0xf] %v1126
  %1255 = vst [vmem:[%s3 + $0x3c] sm:$0xf] %v1127
  %1256 = vst [vmem:[%s3 + $0x40] sm:$0xf] %v1128
  %1257 = vst [vmem:[%s3 + $0x44] sm:$0xf] %v1129
  %1258 = vst [vmem:[%s3 + $0x48] sm:$0xf] %v1130
  %1259 = vst [vmem:[%s3 + $0x4c] sm:$0xf] %v1131
  %1260 = vst [vmem:[%s3 + $0x50] sm:$0xf] %v1132
  %1261 = vst [vmem:[%s3 + $0x54] sm:$0xf] %v1133
  %1262 = vst [vmem:[%s3 + $0x58] sm:$0xf] %v1134
  %1263 = vst [vmem:[%s3 + $0x5c] sm:$0xf] %v1135
  %1264 = vst [vmem:[%s3 + $0x60] sm:$0xf] %v1136
  %1265 = vst [vmem:[%s3 + $0x64] sm:$0xf] %v1137
  %1266 = vst [vmem:[%s3 + $0x68] sm:$0xf] %v1138
  %1267 = vst [vmem:[%s3 + $0x6c] sm:$0xf] %v1139
  %1268 = vst [vmem:[%s3 + $0x70] sm:$0xf] %v1140
  %1269 = vst [vmem:[%s3 + $0x74] sm:$0xf] %v1141
  %1270 = vst [vmem:[%s3 + $0x78] sm:$0xf] %v1142
  %1271 = vst [vmem:[%s3 + $0x7c] sm:$0xf] %v1143
  %1272 = vst [vmem:[%s3 + $0x80] sm:$0xf] %v1144
  %1273 = vst [vmem:[%s3 + $0x84] sm:$0xf] %v1145
  %1274 = vst [vmem:[%s3 + $0x88] sm:$0xf] %v1146
  %1275 = vst [vmem:[%s3 + $0x8c] sm:$0xf] %v1147
  %1276 = vst [vmem:[%s3 + $0x90] sm:$0xf] %v1148
  %1277 = vst [vmem:[%s3 + $0x94] sm:$0xf] %v1149
  %1278 = vst [vmem:[%s3 + $0x98] sm:$0xf] %v1150
  %1279 = vst [vmem:[%s3 + $0x9c] sm:$0xf] %v1151
  %1280 = vst [vmem:[%s3 + $0xa0] sm:$0xf] %v1152
  %1281 = vst [vmem:[%s3 + $0xa4] sm:$0xf] %v1153
  %1282 = vst [vmem:[%s3 + $0xa8] sm:$0xf] %v1154
  %1283 = vst [vmem:[%s3 + $0xac] sm:$0xf] %v1155
  %1284 = vst [vmem:[%s3 + $0xb0] sm:$0xf] %v1156
  %1285 = vst [vmem:[%s3 + $0xb4] sm:$0xf] %v1157
  %1286 = vst [vmem:[%s3 + $0xb8] sm:$0xf] %v1158
  %1287 = vst [vmem:[%s3 + $0xbc] sm:$0xf] %v1159
  %1288 = vst [vmem:[%s3 + $0xc0] sm:$0xf] %v1160
  %1289 = vst [vmem:[%s3 + $0xc4] sm:$0xf] %v1161
  %1290 = vst [vmem:[%s3 + $0xc8] sm:$0xf] %v1162
  %1291 = vst [vmem:[%s3 + $0xcc] sm:$0xf] %v1163
  %1292 = vst [vmem:[%s3 + $0xd0] sm:$0xf] %v1164
  %1293 = vst [vmem:[%s3 + $0xd4] sm:$0xf] %v1165
  %1294 = vst [vmem:[%s3 + $0xd8] sm:$0xf] %v1166
  %1295 = vst [vmem:[%s3 + $0xdc] sm:$0xf] %v1167
  %1296 = vst [vmem:[%s3 + $0xe0] sm:$0xf] %v1168
  %1297 = vst [vmem:[%s3 + $0xe4] sm:$0xf] %v1169
  %1298 = vst [vmem:[%s3 + $0xe8] sm:$0xf] %v1170
  %1299 = vst [vmem:[%s3 + $0xec] sm:$0xf] %v1171
  %1300 = vst [vmem:[%s3 + $0xf0] sm:$0xf] %v1172
  %1301 = vst [vmem:[%s3 + $0xf4] sm:$0xf] %v1173
  %1302 = vst [vmem:[%s3 + $0xf8] sm:$0xf] %v1174
  %1303 = vst [vmem:[%s3 + $0xfc] sm:$0xf] %v1175
  // Predicated region
  $region14: #{discriminator_forward.4} parent=0 // pred_check
    _
  $region15: #{discriminator_forward.4} parent=0 // pred_check_branch
    %1305 = sbr.rel (0) target = $region17
  $region16: #{discriminator_forward.4} parent=0 // pred_region
    _
  $region17: #{discriminator_forward.4} parent=0 // pred_fallthru
    _
  // Predicated region
  $region18: #{discriminator_forward.4} parent=0 // pred_check
    _
  $region19: #{discriminator_forward.4} parent=0 // pred_check_branch
    %1307 = sbr.rel (0) target = $region21
  $region20: #{discriminator_forward.4} parent=0 // pred_region
    _
  $region21: #{discriminator_forward.4} parent=0 // pred_fallthru
    _

// kernel: discriminator_forward.5
$region0: #{discriminator_forward.5}
  #allocation0 [shape = 'u32[]', space=smem, size = 0x4, offset = 0x4, fixed_abs, tag = 'smem constant byte address 0x4 - core index']
  #allocation1 [shape = 'u32[144,128]{1,0:T(1,128)}', space=vmem, size = 0x12000, scoped, tag = 'internal scratch']
  %s0 = inlined_call_operand.vmem [shape: bf16[256,1024], index: 0, kind: input, shape index: {}]
  %s1 = inlined_call_operand.vmem [shape: bf16[1024,128], index: 1, kind: input, shape index: {}]
  %s2 = inlined_call_operand.vmem [shape: f32[1,128], index: 2, kind: input, shape index: {}]
  %s3 = inlined_call_operand.vmem [shape: bf16[256,128], index: 3, kind: output, shape index: {}]
  %s4 = sld [smem:[#allocation0]]
  $region22: #{discriminator_forward.5} parent=0
    _
  %s6 = ssub.s32 1, %s4
  %s7 = scalar_select 0, %s6, %s4
  // Predicated region
  $region2: #{discriminator_forward.5} parent=0 // pred_check
    _
  $region3: #{discriminator_forward.5} parent=0 // pred_check_branch
    %9 = sbr.rel (0) target = $region5
  $region4: #{discriminator_forward.5} parent=0 // pred_region
    _
  $region5: #{discriminator_forward.5} parent=0 // pred_fallthru
    _
  // Predicated region
  $region6: #{discriminator_forward.5} parent=0 // pred_check
    _
  $region7: #{discriminator_forward.5} parent=0 // pred_check_branch
    %11 = sbr.rel (0) target = $region9
  $region8: #{discriminator_forward.5} parent=0 // pred_region
    _
  $region9: #{discriminator_forward.5} parent=0 // pred_fallthru
    _
  // Predicated region
  $region10: #{discriminator_forward.5} parent=0 // pred_check
    _
  $region11: #{discriminator_forward.5} parent=0 // pred_check_branch
    %13 = sbr.rel (0) target = $region13
  $region12: #{discriminator_forward.5} parent=0 // pred_region
    _
  $region13: #{discriminator_forward.5} parent=0 // pred_fallthru
    _
  %v15 = vld [vmem:[%s0] sm:$0xff]
  %v16 = vld [vmem:[%s0 + $0x8] sm:$0xff]
  %v17 = vld [vmem:[%s0 + $0x10] sm:$0xff]
  %v18 = vld [vmem:[%s0 + $0x18] sm:$0xff]
  %v19 = vld [vmem:[%s0 + $0x20] sm:$0xff]
  %v20 = vld [vmem:[%s0 + $0x28] sm:$0xff]
  %v21 = vld [vmem:[%s0 + $0x30] sm:$0xff]
  %v22 = vld [vmem:[%s0 + $0x38] sm:$0xff]
  %v23 = vld [vmem:[%s0 + $0x40] sm:$0xff]
  %v24 = vld [vmem:[%s0 + $0x48] sm:$0xff]
  %v25 = vld [vmem:[%s0 + $0x50] sm:$0xff]
  %v26 = vld [vmem:[%s0 + $0x58] sm:$0xff]
  %v27 = vld [vmem:[%s0 + $0x60] sm:$0xff]
  %v28 = vld [vmem:[%s0 + $0x68] sm:$0xff]
  %v29 = vld [vmem:[%s0 + $0x70] sm:$0xff]
  %v30 = vld [vmem:[%s0 + $0x78] sm:$0xff]
  %v31 = vld [vmem:[%s0 + $0x80] sm:$0xff]
  %v32 = vld [vmem:[%s0 + $0x88] sm:$0xff]
  %v33 = vld [vmem:[%s0 + $0x90] sm:$0xff]
  %v34 = vld [vmem:[%s0 + $0x98] sm:$0xff]
  %v35 = vld [vmem:[%s0 + $0xa0] sm:$0xff]
  %v36 = vld [vmem:[%s0 + $0xa8] sm:$0xff]
  %v37 = vld [vmem:[%s0 + $0xb0] sm:$0xff]
  %v38 = vld [vmem:[%s0 + $0xb8] sm:$0xff]
  %v39 = vld [vmem:[%s0 + $0xc0] sm:$0xff]
  %v40 = vld [vmem:[%s0 + $0xc8] sm:$0xff]
  %v41 = vld [vmem:[%s0 + $0xd0] sm:$0xff]
  %v42 = vld [vmem:[%s0 + $0xd8] sm:$0xff]
  %v43 = vld [vmem:[%s0 + $0xe0] sm:$0xff]
  %v44 = vld [vmem:[%s0 + $0xe8] sm:$0xff]
  %v45 = vld [vmem:[%s0 + $0xf0] sm:$0xff]
  %v46 = vld [vmem:[%s0 + $0xf8] sm:$0xff]
  %v47 = vld [vmem:[%s0 + $0x100] sm:$0xff]
  %v48 = vld [vmem:[%s0 + $0x108] sm:$0xff]
  %v49 = vld [vmem:[%s0 + $0x110] sm:$0xff]
  %v50 = vld [vmem:[%s0 + $0x118] sm:$0xff]
  %v51 = vld [vmem:[%s0 + $0x120] sm:$0xff]
  %v52 = vld [vmem:[%s0 + $0x128] sm:$0xff]
  %v53 = vld [vmem:[%s0 + $0x130] sm:$0xff]
  %v54 = vld [vmem:[%s0 + $0x138] sm:$0xff]
  %v55 = vld [vmem:[%s0 + $0x140] sm:$0xff]
  %v56 = vld [vmem:[%s0 + $0x148] sm:$0xff]
  %v57 = vld [vmem:[%s0 + $0x150] sm:$0xff]
  %v58 = vld [vmem:[%s0 + $0x158] sm:$0xff]
  %v59 = vld [vmem:[%s0 + $0x160] sm:$0xff]
  %v60 = vld [vmem:[%s0 + $0x168] sm:$0xff]
  %v61 = vld [vmem:[%s0 + $0x170] sm:$0xff]
  %v62 = vld [vmem:[%s0 + $0x178] sm:$0xff]
  %v63 = vld [vmem:[%s0 + $0x180] sm:$0xff]
  %v64 = vld [vmem:[%s0 + $0x188] sm:$0xff]
  %v65 = vld [vmem:[%s0 + $0x190] sm:$0xff]
  %v66 = vld [vmem:[%s0 + $0x198] sm:$0xff]
  %v67 = vld [vmem:[%s0 + $0x1a0] sm:$0xff]
  %v68 = vld [vmem:[%s0 + $0x1a8] sm:$0xff]
  %v69 = vld [vmem:[%s0 + $0x1b0] sm:$0xff]
  %v70 = vld [vmem:[%s0 + $0x1b8] sm:$0xff]
  %v71 = vld [vmem:[%s0 + $0x1c0] sm:$0xff]
  %v72 = vld [vmem:[%s0 + $0x1c8] sm:$0xff]
  %v73 = vld [vmem:[%s0 + $0x1d0] sm:$0xff]
  %v74 = vld [vmem:[%s0 + $0x1d8] sm:$0xff]
  %v75 = vld [vmem:[%s0 + $0x1e0] sm:$0xff]
  %v76 = vld [vmem:[%s0 + $0x1e8] sm:$0xff]
  %v77 = vld [vmem:[%s0 + $0x1f0] sm:$0xff]
  %v78 = vld [vmem:[%s0 + $0x1f8] sm:$0xff]
  %v79 = vld [vmem:[%s0 + $0x200] sm:$0xff]
  %v80 = vld [vmem:[%s0 + $0x208] sm:$0xff]
  %v81 = vld [vmem:[%s0 + $0x210] sm:$0xff]
  %v82 = vld [vmem:[%s0 + $0x218] sm:$0xff]
  %v83 = vld [vmem:[%s0 + $0x220] sm:$0xff]
  %v84 = vld [vmem:[%s0 + $0x228] sm:$0xff]
  %v85 = vld [vmem:[%s0 + $0x230] sm:$0xff]
  %v86 = vld [vmem:[%s0 + $0x238] sm:$0xff]
  %v87 = vld [vmem:[%s0 + $0x240] sm:$0xff]
  %v88 = vld [vmem:[%s0 + $0x248] sm:$0xff]
  %v89 = vld [vmem:[%s0 + $0x250] sm:$0xff]
  %v90 = vld [vmem:[%s0 + $0x258] sm:$0xff]
  %v91 = vld [vmem:[%s0 + $0x260] sm:$0xff]
  %v92 = vld [vmem:[%s0 + $0x268] sm:$0xff]
  %v93 = vld [vmem:[%s0 + $0x270] sm:$0xff]
  %v94 = vld [vmem:[%s0 + $0x278] sm:$0xff]
  %v95 = vld [vmem:[%s0 + $0x280] sm:$0xff]
  %v96 = vld [vmem:[%s0 + $0x288] sm:$0xff]
  %v97 = vld [vmem:[%s0 + $0x290] sm:$0xff]
  %v98 = vld [vmem:[%s0 + $0x298] sm:$0xff]
  %v99 = vld [vmem:[%s0 + $0x2a0] sm:$0xff]
  %v100 = vld [vmem:[%s0 + $0x2a8] sm:$0xff]
  %v101 = vld [vmem:[%s0 + $0x2b0] sm:$0xff]
  %v102 = vld [vmem:[%s0 + $0x2b8] sm:$0xff]
  %v103 = vld [vmem:[%s0 + $0x2c0] sm:$0xff]
  %v104 = vld [vmem:[%s0 + $0x2c8] sm:$0xff]
  %v105 = vld [vmem:[%s0 + $0x2d0] sm:$0xff]
  %v106 = vld [vmem:[%s0 + $0x2d8] sm:$0xff]
  %v107 = vld [vmem:[%s0 + $0x2e0] sm:$0xff]
  %v108 = vld [vmem:[%s0 + $0x2e8] sm:$0xff]
  %v109 = vld [vmem:[%s0 + $0x2f0] sm:$0xff]
  %v110 = vld [vmem:[%s0 + $0x2f8] sm:$0xff]
  %v111 = vld [vmem:[%s0 + $0x300] sm:$0xff]
  %v112 = vld [vmem:[%s0 + $0x308] sm:$0xff]
  %v113 = vld [vmem:[%s0 + $0x310] sm:$0xff]
  %v114 = vld [vmem:[%s0 + $0x318] sm:$0xff]
  %v115 = vld [vmem:[%s0 + $0x320] sm:$0xff]
  %v116 = vld [vmem:[%s0 + $0x328] sm:$0xff]
  %v117 = vld [vmem:[%s0 + $0x330] sm:$0xff]
  %v118 = vld [vmem:[%s0 + $0x338] sm:$0xff]
  %v119 = vld [vmem:[%s0 + $0x340] sm:$0xff]
  %v120 = vld [vmem:[%s0 + $0x348] sm:$0xff]
  %v121 = vld [vmem:[%s0 + $0x350] sm:$0xff]
  %v122 = vld [vmem:[%s0 + $0x358] sm:$0xff]
  %v123 = vld [vmem:[%s0 + $0x360] sm:$0xff]
  %v124 = vld [vmem:[%s0 + $0x368] sm:$0xff]
  %v125 = vld [vmem:[%s0 + $0x370] sm:$0xff]
  %v126 = vld [vmem:[%s0 + $0x378] sm:$0xff]
  %v127 = vld [vmem:[%s0 + $0x380] sm:$0xff]
  %v128 = vld [vmem:[%s0 + $0x388] sm:$0xff]
  %v129 = vld [vmem:[%s0 + $0x390] sm:$0xff]
  %v130 = vld [vmem:[%s0 + $0x398] sm:$0xff]
  %v131 = vld [vmem:[%s0 + $0x3a0] sm:$0xff]
  %v132 = vld [vmem:[%s0 + $0x3a8] sm:$0xff]
  %v133 = vld [vmem:[%s0 + $0x3b0] sm:$0xff]
  %v134 = vld [vmem:[%s0 + $0x3b8] sm:$0xff]
  %v135 = vld [vmem:[%s0 + $0x3c0] sm:$0xff]
  %v136 = vld [vmem:[%s0 + $0x3c8] sm:$0xff]
  %v137 = vld [vmem:[%s0 + $0x3d0] sm:$0xff]
  %v138 = vld [vmem:[%s0 + $0x3d8] sm:$0xff]
  %v139 = vld [vmem:[%s0 + $0x3e0] sm:$0xff]
  %v140 = vld [vmem:[%s0 + $0x3e8] sm:$0xff]
  %v141 = vld [vmem:[%s0 + $0x3f0] sm:$0xff]
  %v142 = vld [vmem:[%s0 + $0x3f8] sm:$0xff]
  %v143 = vld [vmem:[%s1] sm:$0xf]
  %v144 = vld [vmem:[%s1 + $0x4] sm:$0xf]
  %v145 = vld [vmem:[%s1 + $0x8] sm:$0xf]
  %v146 = vld [vmem:[%s1 + $0xc] sm:$0xf]
  %v147 = vld [vmem:[%s1 + $0x10] sm:$0xf]
  %v148 = vld [vmem:[%s1 + $0x14] sm:$0xf]
  %v149 = vld [vmem:[%s1 + $0x18] sm:$0xf]
  %v150 = vld [vmem:[%s1 + $0x1c] sm:$0xf]
  %v151 = vld [vmem:[%s1 + $0x20] sm:$0xf]
  %v152 = vld [vmem:[%s1 + $0x24] sm:$0xf]
  %v153 = vld [vmem:[%s1 + $0x28] sm:$0xf]
  %v154 = vld [vmem:[%s1 + $0x2c] sm:$0xf]
  %v155 = vld [vmem:[%s1 + $0x30] sm:$0xf]
  %v156 = vld [vmem:[%s1 + $0x34] sm:$0xf]
  %v157 = vld [vmem:[%s1 + $0x38] sm:$0xf]
  %v158 = vld [vmem:[%s1 + $0x3c] sm:$0xf]
  %v159 = vld [vmem:[%s1 + $0x40] sm:$0xf]
  %v160 = vld [vmem:[%s1 + $0x44] sm:$0xf]
  %v161 = vld [vmem:[%s1 + $0x48] sm:$0xf]
  %v162 = vld [vmem:[%s1 + $0x4c] sm:$0xf]
  %v163 = vld [vmem:[%s1 + $0x50] sm:$0xf]
  %v164 = vld [vmem:[%s1 + $0x54] sm:$0xf]
  %v165 = vld [vmem:[%s1 + $0x58] sm:$0xf]
  %v166 = vld [vmem:[%s1 + $0x5c] sm:$0xf]
  %v167 = vld [vmem:[%s1 + $0x60] sm:$0xf]
  %v168 = vld [vmem:[%s1 + $0x64] sm:$0xf]
  %v169 = vld [vmem:[%s1 + $0x68] sm:$0xf]
  %v170 = vld [vmem:[%s1 + $0x6c] sm:$0xf]
  %v171 = vld [vmem:[%s1 + $0x70] sm:$0xf]
  %v172 = vld [vmem:[%s1 + $0x74] sm:$0xf]
  %v173 = vld [vmem:[%s1 + $0x78] sm:$0xf]
  %v174 = vld [vmem:[%s1 + $0x7c] sm:$0xf]
  %v175 = vld [vmem:[%s1 + $0x80] sm:$0xf]
  %v176 = vld [vmem:[%s1 + $0x84] sm:$0xf]
  %v177 = vld [vmem:[%s1 + $0x88] sm:$0xf]
  %v178 = vld [vmem:[%s1 + $0x8c] sm:$0xf]
  %v179 = vld [vmem:[%s1 + $0x90] sm:$0xf]
  %v180 = vld [vmem:[%s1 + $0x94] sm:$0xf]
  %v181 = vld [vmem:[%s1 + $0x98] sm:$0xf]
  %v182 = vld [vmem:[%s1 + $0x9c] sm:$0xf]
  %v183 = vld [vmem:[%s1 + $0xa0] sm:$0xf]
  %v184 = vld [vmem:[%s1 + $0xa4] sm:$0xf]
  %v185 = vld [vmem:[%s1 + $0xa8] sm:$0xf]
  %v186 = vld [vmem:[%s1 + $0xac] sm:$0xf]
  %v187 = vld [vmem:[%s1 + $0xb0] sm:$0xf]
  %v188 = vld [vmem:[%s1 + $0xb4] sm:$0xf]
  %v189 = vld [vmem:[%s1 + $0xb8] sm:$0xf]
  %v190 = vld [vmem:[%s1 + $0xbc] sm:$0xf]
  %v191 = vld [vmem:[%s1 + $0xc0] sm:$0xf]
  %v192 = vld [vmem:[%s1 + $0xc4] sm:$0xf]
  %v193 = vld [vmem:[%s1 + $0xc8] sm:$0xf]
  %v194 = vld [vmem:[%s1 + $0xcc] sm:$0xf]
  %v195 = vld [vmem:[%s1 + $0xd0] sm:$0xf]
  %v196 = vld [vmem:[%s1 + $0xd4] sm:$0xf]
  %v197 = vld [vmem:[%s1 + $0xd8] sm:$0xf]
  %v198 = vld [vmem:[%s1 + $0xdc] sm:$0xf]
  %v199 = vld [vmem:[%s1 + $0xe0] sm:$0xf]
  %v200 = vld [vmem:[%s1 + $0xe4] sm:$0xf]
  %v201 = vld [vmem:[%s1 + $0xe8] sm:$0xf]
  %v202 = vld [vmem:[%s1 + $0xec] sm:$0xf]
  %v203 = vld [vmem:[%s1 + $0xf0] sm:$0xf]
  %v204 = vld [vmem:[%s1 + $0xf4] sm:$0xf]
  %v205 = vld [vmem:[%s1 + $0xf8] sm:$0xf]
  %v206 = vld [vmem:[%s1 + $0xfc] sm:$0xf]
  %v207 = vld [vmem:[%s1 + $0x100] sm:$0xf]
  %v208 = vld [vmem:[%s1 + $0x104] sm:$0xf]
  %v209 = vld [vmem:[%s1 + $0x108] sm:$0xf]
  %v210 = vld [vmem:[%s1 + $0x10c] sm:$0xf]
  %v211 = vld [vmem:[%s1 + $0x110] sm:$0xf]
  %v212 = vld [vmem:[%s1 + $0x114] sm:$0xf]
  %v213 = vld [vmem:[%s1 + $0x118] sm:$0xf]
  %v214 = vld [vmem:[%s1 + $0x11c] sm:$0xf]
  %v215 = vld [vmem:[%s1 + $0x120] sm:$0xf]
  %v216 = vld [vmem:[%s1 + $0x124] sm:$0xf]
  %v217 = vld [vmem:[%s1 + $0x128] sm:$0xf]
  %v218 = vld [vmem:[%s1 + $0x12c] sm:$0xf]
  %v219 = vld [vmem:[%s1 + $0x130] sm:$0xf]
  %v220 = vld [vmem:[%s1 + $0x134] sm:$0xf]
  %v221 = vld [vmem:[%s1 + $0x138] sm:$0xf]
  %v222 = vld [vmem:[%s1 + $0x13c] sm:$0xf]
  %v223 = vld [vmem:[%s1 + $0x140] sm:$0xf]
  %v224 = vld [vmem:[%s1 + $0x144] sm:$0xf]
  %v225 = vld [vmem:[%s1 + $0x148] sm:$0xf]
  %v226 = vld [vmem:[%s1 + $0x14c] sm:$0xf]
  %v227 = vld [vmem:[%s1 + $0x150] sm:$0xf]
  %v228 = vld [vmem:[%s1 + $0x154] sm:$0xf]
  %v229 = vld [vmem:[%s1 + $0x158] sm:$0xf]
  %v230 = vld [vmem:[%s1 + $0x15c] sm:$0xf]
  %v231 = vld [vmem:[%s1 + $0x160] sm:$0xf]
  %v232 = vld [vmem:[%s1 + $0x164] sm:$0xf]
  %v233 = vld [vmem:[%s1 + $0x168] sm:$0xf]
  %v234 = vld [vmem:[%s1 + $0x16c] sm:$0xf]
  %v235 = vld [vmem:[%s1 + $0x170] sm:$0xf]
  %v236 = vld [vmem:[%s1 + $0x174] sm:$0xf]
  %v237 = vld [vmem:[%s1 + $0x178] sm:$0xf]
  %v238 = vld [vmem:[%s1 + $0x17c] sm:$0xf]
  %v239 = vld [vmem:[%s1 + $0x180] sm:$0xf]
  %v240 = vld [vmem:[%s1 + $0x184] sm:$0xf]
  %v241 = vld [vmem:[%s1 + $0x188] sm:$0xf]
  %v242 = vld [vmem:[%s1 + $0x18c] sm:$0xf]
  %v243 = vld [vmem:[%s1 + $0x190] sm:$0xf]
  %v244 = vld [vmem:[%s1 + $0x194] sm:$0xf]
  %v245 = vld [vmem:[%s1 + $0x198] sm:$0xf]
  %v246 = vld [vmem:[%s1 + $0x19c] sm:$0xf]
  %v247 = vld [vmem:[%s1 + $0x1a0] sm:$0xf]
  %v248 = vld [vmem:[%s1 + $0x1a4] sm:$0xf]
  %v249 = vld [vmem:[%s1 + $0x1a8] sm:$0xf]
  %v250 = vld [vmem:[%s1 + $0x1ac] sm:$0xf]
  %v251 = vld [vmem:[%s1 + $0x1b0] sm:$0xf]
  %v252 = vld [vmem:[%s1 + $0x1b4] sm:$0xf]
  %v253 = vld [vmem:[%s1 + $0x1b8] sm:$0xf]
  %v254 = vld [vmem:[%s1 + $0x1bc] sm:$0xf]
  %v255 = vld [vmem:[%s1 + $0x1c0] sm:$0xf]
  %v256 = vld [vmem:[%s1 + $0x1c4] sm:$0xf]
  %v257 = vld [vmem:[%s1 + $0x1c8] sm:$0xf]
  %v258 = vld [vmem:[%s1 + $0x1cc] sm:$0xf]
  %v259 = vld [vmem:[%s1 + $0x1d0] sm:$0xf]
  %v260 = vld [vmem:[%s1 + $0x1d4] sm:$0xf]
  %v261 = vld [vmem:[%s1 + $0x1d8] sm:$0xf]
  %v262 = vld [vmem:[%s1 + $0x1dc] sm:$0xf]
  %v263 = vld [vmem:[%s1 + $0x1e0] sm:$0xf]
  %v264 = vld [vmem:[%s1 + $0x1e4] sm:$0xf]
  %v265 = vld [vmem:[%s1 + $0x1e8] sm:$0xf]
  %v266 = vld [vmem:[%s1 + $0x1ec] sm:$0xf]
  %v267 = vld [vmem:[%s1 + $0x1f0] sm:$0xf]
  %v268 = vld [vmem:[%s1 + $0x1f4] sm:$0xf]
  %v269 = vld [vmem:[%s1 + $0x1f8] sm:$0xf]
  %v270 = vld [vmem:[%s1 + $0x1fc] sm:$0xf]
  %v271 = vld [vmem:[%s2] sm:$0x1]
  %v273 = vlaneseq
  %v274 = vshrl.u32 %v273, 7
  %v275 = vsub.s32 0, %v274
  %v276 = vrot.slane %v271, %v275
  %v406 = vunpack.c.l.b16 %v15
  %v407 = vunpack.c.h.b16 %v15
  %v408 = vunpack.c.l.b16 %v16
  %v409 = vunpack.c.h.b16 %v16
  %v410 = vunpack.c.l.b16 %v17
  %v411 = vunpack.c.h.b16 %v17
  %v412 = vunpack.c.l.b16 %v18
  %v413 = vunpack.c.h.b16 %v18
  %v414 = vunpack.c.l.b16 %v19
  %v415 = vunpack.c.h.b16 %v19
  %v416 = vunpack.c.l.b16 %v20
  %v417 = vunpack.c.h.b16 %v20
  %v418 = vunpack.c.l.b16 %v21
  %v419 = vunpack.c.h.b16 %v21
  %v420 = vunpack.c.l.b16 %v22
  %v421 = vunpack.c.h.b16 %v22
  %v422 = vunpack.c.l.b16 %v23
  %v423 = vunpack.c.h.b16 %v23
  %v424 = vunpack.c.l.b16 %v24
  %v425 = vunpack.c.h.b16 %v24
  %v426 = vunpack.c.l.b16 %v25
  %v427 = vunpack.c.h.b16 %v25
  %v428 = vunpack.c.l.b16 %v26
  %v429 = vunpack.c.h.b16 %v26
  %v430 = vunpack.c.l.b16 %v27
  %v431 = vunpack.c.h.b16 %v27
  %v432 = vunpack.c.l.b16 %v28
  %v433 = vunpack.c.h.b16 %v28
  %v434 = vunpack.c.l.b16 %v29
  %v435 = vunpack.c.h.b16 %v29
  %v436 = vunpack.c.l.b16 %v30
  %v437 = vunpack.c.h.b16 %v30
  %v438 = vunpack.c.l.b16 %v31
  %v439 = vunpack.c.h.b16 %v31
  %v440 = vunpack.c.l.b16 %v32
  %v441 = vunpack.c.h.b16 %v32
  %v442 = vunpack.c.l.b16 %v33
  %v443 = vunpack.c.h.b16 %v33
  %v444 = vunpack.c.l.b16 %v34
  %v445 = vunpack.c.h.b16 %v34
  %v446 = vunpack.c.l.b16 %v35
  %v447 = vunpack.c.h.b16 %v35
  %v448 = vunpack.c.l.b16 %v36
  %v449 = vunpack.c.h.b16 %v36
  %v450 = vunpack.c.l.b16 %v37
  %v451 = vunpack.c.h.b16 %v37
  %v452 = vunpack.c.l.b16 %v38
  %v453 = vunpack.c.h.b16 %v38
  %v454 = vunpack.c.l.b16 %v39
  %v455 = vunpack.c.h.b16 %v39
  %v456 = vunpack.c.l.b16 %v40
  %v457 = vunpack.c.h.b16 %v40
  %v458 = vunpack.c.l.b16 %v41
  %v459 = vunpack.c.h.b16 %v41
  %v460 = vunpack.c.l.b16 %v42
  %v461 = vunpack.c.h.b16 %v42
  %v462 = vunpack.c.l.b16 %v43
  %v463 = vunpack.c.h.b16 %v43
  %v464 = vunpack.c.l.b16 %v44
  %v465 = vunpack.c.h.b16 %v44
  %v466 = vunpack.c.l.b16 %v45
  %v467 = vunpack.c.h.b16 %v45
  %v468 = vunpack.c.l.b16 %v46
  %v469 = vunpack.c.h.b16 %v46
  %v470 = vunpack.c.l.b16 %v47
  %v471 = vunpack.c.h.b16 %v47
  %v472 = vunpack.c.l.b16 %v48
  %v473 = vunpack.c.h.b16 %v48
  %v474 = vunpack.c.l.b16 %v49
  %v475 = vunpack.c.h.b16 %v49
  %v476 = vunpack.c.l.b16 %v50
  %v477 = vunpack.c.h.b16 %v50
  %v478 = vunpack.c.l.b16 %v51
  %v479 = vunpack.c.h.b16 %v51
  %v480 = vunpack.c.l.b16 %v52
  %v481 = vunpack.c.h.b16 %v52
  %v482 = vunpack.c.l.b16 %v53
  %v483 = vunpack.c.h.b16 %v53
  %v484 = vunpack.c.l.b16 %v54
  %v485 = vunpack.c.h.b16 %v54
  %v486 = vunpack.c.l.b16 %v55
  %v487 = vunpack.c.h.b16 %v55
  %v488 = vunpack.c.l.b16 %v56
  %v489 = vunpack.c.h.b16 %v56
  %v490 = vunpack.c.l.b16 %v57
  %v491 = vunpack.c.h.b16 %v57
  %v492 = vunpack.c.l.b16 %v58
  %v493 = vunpack.c.h.b16 %v58
  %v494 = vunpack.c.l.b16 %v59
  %v495 = vunpack.c.h.b16 %v59
  %v496 = vunpack.c.l.b16 %v60
  %v497 = vunpack.c.h.b16 %v60
  %v498 = vunpack.c.l.b16 %v61
  %v499 = vunpack.c.h.b16 %v61
  %v500 = vunpack.c.l.b16 %v62
  %v501 = vunpack.c.h.b16 %v62
  %v502 = vunpack.c.l.b16 %v63
  %v503 = vunpack.c.h.b16 %v63
  %v504 = vunpack.c.l.b16 %v64
  %v505 = vunpack.c.h.b16 %v64
  %v506 = vunpack.c.l.b16 %v65
  %v507 = vunpack.c.h.b16 %v65
  %v508 = vunpack.c.l.b16 %v66
  %v509 = vunpack.c.h.b16 %v66
  %v510 = vunpack.c.l.b16 %v67
  %v511 = vunpack.c.h.b16 %v67
  %v512 = vunpack.c.l.b16 %v68
  %v513 = vunpack.c.h.b16 %v68
  %v514 = vunpack.c.l.b16 %v69
  %v515 = vunpack.c.h.b16 %v69
  %v516 = vunpack.c.l.b16 %v70
  %v517 = vunpack.c.h.b16 %v70
  %v518 = vunpack.c.l.b16 %v71
  %v519 = vunpack.c.h.b16 %v71
  %v520 = vunpack.c.l.b16 %v72
  %v521 = vunpack.c.h.b16 %v72
  %v522 = vunpack.c.l.b16 %v73
  %v523 = vunpack.c.h.b16 %v73
  %v524 = vunpack.c.l.b16 %v74
  %v525 = vunpack.c.h.b16 %v74
  %v526 = vunpack.c.l.b16 %v75
  %v527 = vunpack.c.h.b16 %v75
  %v528 = vunpack.c.l.b16 %v76
  %v529 = vunpack.c.h.b16 %v76
  %v530 = vunpack.c.l.b16 %v77
  %v531 = vunpack.c.h.b16 %v77
  %v532 = vunpack.c.l.b16 %v78
  %v533 = vunpack.c.h.b16 %v78
  %v534 = vunpack.c.l.b16 %v79
  %v535 = vunpack.c.h.b16 %v79
  %v536 = vunpack.c.l.b16 %v80
  %v537 = vunpack.c.h.b16 %v80
  %v538 = vunpack.c.l.b16 %v81
  %v539 = vunpack.c.h.b16 %v81
  %v540 = vunpack.c.l.b16 %v82
  %v541 = vunpack.c.h.b16 %v82
  %v542 = vunpack.c.l.b16 %v83
  %v543 = vunpack.c.h.b16 %v83
  %v544 = vunpack.c.l.b16 %v84
  %v545 = vunpack.c.h.b16 %v84
  %v546 = vunpack.c.l.b16 %v85
  %v547 = vunpack.c.h.b16 %v85
  %v548 = vunpack.c.l.b16 %v86
  %v549 = vunpack.c.h.b16 %v86
  %v550 = vunpack.c.l.b16 %v87
  %v551 = vunpack.c.h.b16 %v87
  %v552 = vunpack.c.l.b16 %v88
  %v553 = vunpack.c.h.b16 %v88
  %v554 = vunpack.c.l.b16 %v89
  %v555 = vunpack.c.h.b16 %v89
  %v556 = vunpack.c.l.b16 %v90
  %v557 = vunpack.c.h.b16 %v90
  %v558 = vunpack.c.l.b16 %v91
  %v559 = vunpack.c.h.b16 %v91
  %v560 = vunpack.c.l.b16 %v92
  %v561 = vunpack.c.h.b16 %v92
  %v562 = vunpack.c.l.b16 %v93
  %v563 = vunpack.c.h.b16 %v93
  %v564 = vunpack.c.l.b16 %v94
  %v565 = vunpack.c.h.b16 %v94
  %v566 = vunpack.c.l.b16 %v95
  %v567 = vunpack.c.h.b16 %v95
  %v568 = vunpack.c.l.b16 %v96
  %v569 = vunpack.c.h.b16 %v96
  %v570 = vunpack.c.l.b16 %v97
  %v571 = vunpack.c.h.b16 %v97
  %v572 = vunpack.c.l.b16 %v98
  %v573 = vunpack.c.h.b16 %v98
  %v574 = vunpack.c.l.b16 %v99
  %v575 = vunpack.c.h.b16 %v99
  %v576 = vunpack.c.l.b16 %v100
  %v577 = vunpack.c.h.b16 %v100
  %v578 = vunpack.c.l.b16 %v101
  %v579 = vunpack.c.h.b16 %v101
  %v580 = vunpack.c.l.b16 %v102
  %v581 = vunpack.c.h.b16 %v102
  %v582 = vunpack.c.l.b16 %v103
  %v583 = vunpack.c.h.b16 %v103
  %v584 = vunpack.c.l.b16 %v104
  %v585 = vunpack.c.h.b16 %v104
  %v586 = vunpack.c.l.b16 %v105
  %v587 = vunpack.c.h.b16 %v105
  %v588 = vunpack.c.l.b16 %v106
  %v589 = vunpack.c.h.b16 %v106
  %v590 = vunpack.c.l.b16 %v107
  %v591 = vunpack.c.h.b16 %v107
  %v592 = vunpack.c.l.b16 %v108
  %v593 = vunpack.c.h.b16 %v108
  %v594 = vunpack.c.l.b16 %v109
  %v595 = vunpack.c.h.b16 %v109
  %v596 = vunpack.c.l.b16 %v110
  %v597 = vunpack.c.h.b16 %v110
  %v598 = vunpack.c.l.b16 %v111
  %v599 = vunpack.c.h.b16 %v111
  %v600 = vunpack.c.l.b16 %v112
  %v601 = vunpack.c.h.b16 %v112
  %v602 = vunpack.c.l.b16 %v113
  %v603 = vunpack.c.h.b16 %v113
  %v604 = vunpack.c.l.b16 %v114
  %v605 = vunpack.c.h.b16 %v114
  %v606 = vunpack.c.l.b16 %v115
  %v607 = vunpack.c.h.b16 %v115
  %v608 = vunpack.c.l.b16 %v116
  %v609 = vunpack.c.h.b16 %v116
  %v610 = vunpack.c.l.b16 %v117
  %v611 = vunpack.c.h.b16 %v117
  %v612 = vunpack.c.l.b16 %v118
  %v613 = vunpack.c.h.b16 %v118
  %v614 = vunpack.c.l.b16 %v119
  %v615 = vunpack.c.h.b16 %v119
  %v616 = vunpack.c.l.b16 %v120
  %v617 = vunpack.c.h.b16 %v120
  %v618 = vunpack.c.l.b16 %v121
  %v619 = vunpack.c.h.b16 %v121
  %v620 = vunpack.c.l.b16 %v122
  %v621 = vunpack.c.h.b16 %v122
  %v622 = vunpack.c.l.b16 %v123
  %v623 = vunpack.c.h.b16 %v123
  %v624 = vunpack.c.l.b16 %v124
  %v625 = vunpack.c.h.b16 %v124
  %v626 = vunpack.c.l.b16 %v125
  %v627 = vunpack.c.h.b16 %v125
  %v628 = vunpack.c.l.b16 %v126
  %v629 = vunpack.c.h.b16 %v126
  %v630 = vunpack.c.l.b16 %v127
  %v631 = vunpack.c.h.b16 %v127
  %v632 = vunpack.c.l.b16 %v128
  %v633 = vunpack.c.h.b16 %v128
  %v634 = vunpack.c.l.b16 %v129
  %v635 = vunpack.c.h.b16 %v129
  %v636 = vunpack.c.l.b16 %v130
  %v637 = vunpack.c.h.b16 %v130
  %v638 = vunpack.c.l.b16 %v131
  %v639 = vunpack.c.h.b16 %v131
  %v640 = vunpack.c.l.b16 %v132
  %v641 = vunpack.c.h.b16 %v132
  %v642 = vunpack.c.l.b16 %v133
  %v643 = vunpack.c.h.b16 %v133
  %v644 = vunpack.c.l.b16 %v134
  %v645 = vunpack.c.h.b16 %v134
  %v646 = vunpack.c.l.b16 %v135
  %v647 = vunpack.c.h.b16 %v135
  %v648 = vunpack.c.l.b16 %v136
  %v649 = vunpack.c.h.b16 %v136
  %v650 = vunpack.c.l.b16 %v137
  %v651 = vunpack.c.h.b16 %v137
  %v652 = vunpack.c.l.b16 %v138
  %v653 = vunpack.c.h.b16 %v138
  %v654 = vunpack.c.l.b16 %v139
  %v655 = vunpack.c.h.b16 %v139
  %v656 = vunpack.c.l.b16 %v140
  %v657 = vunpack.c.h.b16 %v140
  %v658 = vunpack.c.l.b16 %v141
  %v659 = vunpack.c.h.b16 %v141
  %v660 = vunpack.c.l.b16 %v142
  %v661 = vunpack.c.h.b16 %v142
  %v662 = vpack.c.b16 %v414, %v406
  %v663 = vpack.c.b16 %v415, %v407
  %v664 = vpack.c.b16 %v416, %v408
  %v665 = vpack.c.b16 %v417, %v409
  %v666 = vpack.c.b16 %v418, %v410
  %v667 = vpack.c.b16 %v419, %v411
  %v668 = vpack.c.b16 %v420, %v412
  %v669 = vpack.c.b16 %v421, %v413
  %v670 = vpack.c.b16 %v430, %v422
  %v671 = vpack.c.b16 %v431, %v423
  %v672 = vpack.c.b16 %v432, %v424
  %v673 = vpack.c.b16 %v433, %v425
  %v674 = vpack.c.b16 %v434, %v426
  %v675 = vpack.c.b16 %v435, %v427
  %v676 = vpack.c.b16 %v436, %v428
  %v677 = vpack.c.b16 %v437, %v429
  %v678 = vpack.c.b16 %v446, %v438
  %v679 = vpack.c.b16 %v447, %v439
  %v680 = vpack.c.b16 %v448, %v440
  %v681 = vpack.c.b16 %v449, %v441
  %v682 = vpack.c.b16 %v450, %v442
  %v683 = vpack.c.b16 %v451, %v443
  %v684 = vpack.c.b16 %v452, %v444
  %v685 = vpack.c.b16 %v453, %v445
  %v686 = vpack.c.b16 %v462, %v454
  %v687 = vpack.c.b16 %v463, %v455
  %v688 = vpack.c.b16 %v464, %v456
  %v689 = vpack.c.b16 %v465, %v457
  %v690 = vpack.c.b16 %v466, %v458
  %v691 = vpack.c.b16 %v467, %v459
  %v692 = vpack.c.b16 %v468, %v460
  %v693 = vpack.c.b16 %v469, %v461
  %v694 = vpack.c.b16 %v478, %v470
  %v695 = vpack.c.b16 %v479, %v471
  %v696 = vpack.c.b16 %v480, %v472
  %v697 = vpack.c.b16 %v481, %v473
  %v698 = vpack.c.b16 %v482, %v474
  %v699 = vpack.c.b16 %v483, %v475
  %v700 = vpack.c.b16 %v484, %v476
  %v701 = vpack.c.b16 %v485, %v477
  %v702 = vpack.c.b16 %v494, %v486
  %v703 = vpack.c.b16 %v495, %v487
  %v704 = vpack.c.b16 %v496, %v488
  %v705 = vpack.c.b16 %v497, %v489
  %v706 = vpack.c.b16 %v498, %v490
  %v707 = vpack.c.b16 %v499, %v491
  %v708 = vpack.c.b16 %v500, %v492
  %v709 = vpack.c.b16 %v501, %v493
  %v710 = vpack.c.b16 %v510, %v502
  %v711 = vpack.c.b16 %v511, %v503
  %v712 = vpack.c.b16 %v512, %v504
  %v713 = vpack.c.b16 %v513, %v505
  %v714 = vpack.c.b16 %v514, %v506
  %v715 = vpack.c.b16 %v515, %v507
  %v716 = vpack.c.b16 %v516, %v508
  %v717 = vpack.c.b16 %v517, %v509
  %v718 = vpack.c.b16 %v526, %v518
  %v719 = vpack.c.b16 %v527, %v519
  %v720 = vpack.c.b16 %v528, %v520
  %v721 = vpack.c.b16 %v529, %v521
  %v722 = vpack.c.b16 %v530, %v522
  %v723 = vpack.c.b16 %v531, %v523
  %v724 = vpack.c.b16 %v532, %v524
  %v725 = vpack.c.b16 %v533, %v525
  %v726 = vpack.c.b16 %v542, %v534
  %v727 = vpack.c.b16 %v543, %v535
  %v728 = vpack.c.b16 %v544, %v536
  %v729 = vpack.c.b16 %v545, %v537
  %v730 = vpack.c.b16 %v546, %v538
  %v731 = vpack.c.b16 %v547, %v539
  %v732 = vpack.c.b16 %v548, %v540
  %v733 = vpack.c.b16 %v549, %v541
  %v734 = vpack.c.b16 %v558, %v550
  %v735 = vpack.c.b16 %v559, %v551
  %v736 = vpack.c.b16 %v560, %v552
  %v737 = vpack.c.b16 %v561, %v553
  %v738 = vpack.c.b16 %v562, %v554
  %v739 = vpack.c.b16 %v563, %v555
  %v740 = vpack.c.b16 %v564, %v556
  %v741 = vpack.c.b16 %v565, %v557
  %v742 = vpack.c.b16 %v574, %v566
  %v743 = vpack.c.b16 %v575, %v567
  %v744 = vpack.c.b16 %v576, %v568
  %v745 = vpack.c.b16 %v577, %v569
  %v746 = vpack.c.b16 %v578, %v570
  %v747 = vpack.c.b16 %v579, %v571
  %v748 = vpack.c.b16 %v580, %v572
  %v749 = vpack.c.b16 %v581, %v573
  %v750 = vpack.c.b16 %v590, %v582
  %v751 = vpack.c.b16 %v591, %v583
  %v752 = vpack.c.b16 %v592, %v584
  %v753 = vpack.c.b16 %v593, %v585
  %v754 = vpack.c.b16 %v594, %v586
  %v755 = vpack.c.b16 %v595, %v587
  %v756 = vpack.c.b16 %v596, %v588
  %v757 = vpack.c.b16 %v597, %v589
  %v758 = vpack.c.b16 %v606, %v598
  %v759 = vpack.c.b16 %v607, %v599
  %v760 = vpack.c.b16 %v608, %v600
  %v761 = vpack.c.b16 %v609, %v601
  %v762 = vpack.c.b16 %v610, %v602
  %v763 = vpack.c.b16 %v611, %v603
  %v764 = vpack.c.b16 %v612, %v604
  %v765 = vpack.c.b16 %v613, %v605
  %v766 = vpack.c.b16 %v622, %v614
  %v767 = vpack.c.b16 %v623, %v615
  %v768 = vpack.c.b16 %v624, %v616
  %v769 = vpack.c.b16 %v625, %v617
  %v770 = vpack.c.b16 %v626, %v618
  %v771 = vpack.c.b16 %v627, %v619
  %v772 = vpack.c.b16 %v628, %v620
  %v773 = vpack.c.b16 %v629, %v621
  %v774 = vpack.c.b16 %v638, %v630
  %v775 = vpack.c.b16 %v639, %v631
  %v776 = vpack.c.b16 %v640, %v632
  %v777 = vpack.c.b16 %v641, %v633
  %v778 = vpack.c.b16 %v642, %v634
  %v779 = vpack.c.b16 %v643, %v635
  %v780 = vpack.c.b16 %v644, %v636
  %v781 = vpack.c.b16 %v645, %v637
  %v782 = vpack.c.b16 %v654, %v646
  %v783 = vpack.c.b16 %v655, %v647
  %v784 = vpack.c.b16 %v656, %v648
  %v785 = vpack.c.b16 %v657, %v649
  %v786 = vpack.c.b16 %v658, %v650
  %v787 = vpack.c.b16 %v659, %v651
  %v788 = vpack.c.b16 %v660, %v652
  %v789 = vpack.c.b16 %v661, %v653
  %v1046 = vunpack.c.l.b16 %v143
  %v1047 = vunpack.c.l.b16 %v144
  %v1048 = vunpack.c.l.b16 %v145
  %v1049 = vunpack.c.l.b16 %v146
  %v1050 = vunpack.c.l.b16 %v147
  %v1051 = vunpack.c.l.b16 %v148
  %v1052 = vunpack.c.l.b16 %v149
  %v1053 = vunpack.c.l.b16 %v150
  %v1054 = vunpack.c.l.b16 %v151
  %v1055 = vunpack.c.l.b16 %v152
  %v1056 = vunpack.c.l.b16 %v153
  %v1057 = vunpack.c.l.b16 %v154
  %v1058 = vunpack.c.l.b16 %v155
  %v1059 = vunpack.c.l.b16 %v156
  %v1060 = vunpack.c.l.b16 %v157
  %v1061 = vunpack.c.l.b16 %v158
  %v1062 = vunpack.c.l.b16 %v159
  %v1063 = vunpack.c.l.b16 %v160
  %v1064 = vunpack.c.l.b16 %v161
  %v1065 = vunpack.c.l.b16 %v162
  %v1066 = vunpack.c.l.b16 %v163
  %v1067 = vunpack.c.l.b16 %v164
  %v1068 = vunpack.c.l.b16 %v165
  %v1069 = vunpack.c.l.b16 %v166
  %v1070 = vunpack.c.l.b16 %v167
  %v1071 = vunpack.c.l.b16 %v168
  %v1072 = vunpack.c.l.b16 %v169
  %v1073 = vunpack.c.l.b16 %v170
  %v1074 = vunpack.c.l.b16 %v171
  %v1075 = vunpack.c.l.b16 %v172
  %v1076 = vunpack.c.l.b16 %v173
  %v1077 = vunpack.c.l.b16 %v174
  %v1078 = vunpack.c.l.b16 %v175
  %v1079 = vunpack.c.l.b16 %v176
  %v1080 = vunpack.c.l.b16 %v177
  %v1081 = vunpack.c.l.b16 %v178
  %v1082 = vunpack.c.l.b16 %v179
  %v1083 = vunpack.c.l.b16 %v180
  %v1084 = vunpack.c.l.b16 %v181
  %v1085 = vunpack.c.l.b16 %v182
  %v1086 = vunpack.c.l.b16 %v183
  %v1087 = vunpack.c.l.b16 %v184
  %v1088 = vunpack.c.l.b16 %v185
  %v1089 = vunpack.c.l.b16 %v186
  %v1090 = vunpack.c.l.b16 %v187
  %v1091 = vunpack.c.l.b16 %v188
  %v1092 = vunpack.c.l.b16 %v189
  %v1093 = vunpack.c.l.b16 %v190
  %v1094 = vunpack.c.l.b16 %v191
  %v1095 = vunpack.c.l.b16 %v192
  %v1096 = vunpack.c.l.b16 %v193
  %v1097 = vunpack.c.l.b16 %v194
  %v1098 = vunpack.c.l.b16 %v195
  %v1099 = vunpack.c.l.b16 %v196
  %v1100 = vunpack.c.l.b16 %v197
  %v1101 = vunpack.c.l.b16 %v198
  %v1102 = vunpack.c.l.b16 %v199
  %v1103 = vunpack.c.l.b16 %v200
  %v1104 = vunpack.c.l.b16 %v201
  %v1105 = vunpack.c.l.b16 %v202
  %v1106 = vunpack.c.l.b16 %v203
  %v1107 = vunpack.c.l.b16 %v204
  %v1108 = vunpack.c.l.b16 %v205
  %v1109 = vunpack.c.l.b16 %v206
  %v1110 = vunpack.c.l.b16 %v207
  %v1111 = vunpack.c.l.b16 %v208
  %v1112 = vunpack.c.l.b16 %v209
  %v1113 = vunpack.c.l.b16 %v210
  %v1114 = vunpack.c.l.b16 %v211
  %v1115 = vunpack.c.l.b16 %v212
  %v1116 = vunpack.c.l.b16 %v213
  %v1117 = vunpack.c.l.b16 %v214
  %v1118 = vunpack.c.l.b16 %v215
  %v1119 = vunpack.c.l.b16 %v216
  %v1120 = vunpack.c.l.b16 %v217
  %v1121 = vunpack.c.l.b16 %v218
  %v1122 = vunpack.c.l.b16 %v219
  %v1123 = vunpack.c.l.b16 %v220
  %v1124 = vunpack.c.l.b16 %v221
  %v1125 = vunpack.c.l.b16 %v222
  %v1126 = vunpack.c.l.b16 %v223
  %v1127 = vunpack.c.l.b16 %v224
  %v1128 = vunpack.c.l.b16 %v225
  %v1129 = vunpack.c.l.b16 %v226
  %v1130 = vunpack.c.l.b16 %v227
  %v1131 = vunpack.c.l.b16 %v228
  %v1132 = vunpack.c.l.b16 %v229
  %v1133 = vunpack.c.l.b16 %v230
  %v1134 = vunpack.c.l.b16 %v231
  %v1135 = vunpack.c.l.b16 %v232
  %v1136 = vunpack.c.l.b16 %v233
  %v1137 = vunpack.c.l.b16 %v234
  %v1138 = vunpack.c.l.b16 %v235
  %v1139 = vunpack.c.l.b16 %v236
  %v1140 = vunpack.c.l.b16 %v237
  %v1141 = vunpack.c.l.b16 %v238
  %v1142 = vunpack.c.l.b16 %v239
  %v1143 = vunpack.c.l.b16 %v240
  %v1144 = vunpack.c.l.b16 %v241
  %v1145 = vunpack.c.l.b16 %v242
  %v1146 = vunpack.c.l.b16 %v243
  %v1147 = vunpack.c.l.b16 %v244
  %v1148 = vunpack.c.l.b16 %v245
  %v1149 = vunpack.c.l.b16 %v246
  %v1150 = vunpack.c.l.b16 %v247
  %v1151 = vunpack.c.l.b16 %v248
  %v1152 = vunpack.c.l.b16 %v249
  %v1153 = vunpack.c.l.b16 %v250
  %v1154 = vunpack.c.l.b16 %v251
  %v1155 = vunpack.c.l.b16 %v252
  %v1156 = vunpack.c.l.b16 %v253
  %v1157 = vunpack.c.l.b16 %v254
  %v1158 = vunpack.c.l.b16 %v255
  %v1159 = vunpack.c.l.b16 %v256
  %v1160 = vunpack.c.l.b16 %v257
  %v1161 = vunpack.c.l.b16 %v258
  %v1162 = vunpack.c.l.b16 %v259
  %v1163 = vunpack.c.l.b16 %v260
  %v1164 = vunpack.c.l.b16 %v261
  %v1165 = vunpack.c.l.b16 %v262
  %v1166 = vunpack.c.l.b16 %v263
  %v1167 = vunpack.c.l.b16 %v264
  %v1168 = vunpack.c.l.b16 %v265
  %v1169 = vunpack.c.l.b16 %v266
  %v1170 = vunpack.c.l.b16 %v267
  %v1171 = vunpack.c.l.b16 %v268
  %v1172 = vunpack.c.l.b16 %v269
  %v1173 = vunpack.c.l.b16 %v270
  %v1174 = vpack.c.b16 %v1047, %v1046
  %v1175 = vpack.c.b16 %v1049, %v1048
  %v1176 = vpack.c.b16 %v1051, %v1050
  %v1177 = vpack.c.b16 %v1053, %v1052
  %v1178 = vpack.c.b16 %v1055, %v1054
  %v1179 = vpack.c.b16 %v1057, %v1056
  %v1180 = vpack.c.b16 %v1059, %v1058
  %v1181 = vpack.c.b16 %v1061, %v1060
  %v1182 = vpack.c.b16 %v1063, %v1062
  %v1183 = vpack.c.b16 %v1065, %v1064
  %v1184 = vpack.c.b16 %v1067, %v1066
  %v1185 = vpack.c.b16 %v1069, %v1068
  %v1186 = vpack.c.b16 %v1071, %v1070
  %v1187 = vpack.c.b16 %v1073, %v1072
  %v1188 = vpack.c.b16 %v1075, %v1074
  %v1189 = vpack.c.b16 %v1077, %v1076
  %v1190 = vpack.c.b16 %v1079, %v1078
  %v1191 = vpack.c.b16 %v1081, %v1080
  %v1192 = vpack.c.b16 %v1083, %v1082
  %v1193 = vpack.c.b16 %v1085, %v1084
  %v1194 = vpack.c.b16 %v1087, %v1086
  %v1195 = vpack.c.b16 %v1089, %v1088
  %v1196 = vpack.c.b16 %v1091, %v1090
  %v1197 = vpack.c.b16 %v1093, %v1092
  %v1198 = vpack.c.b16 %v1095, %v1094
  %v1199 = vpack.c.b16 %v1097, %v1096
  %v1200 = vpack.c.b16 %v1099, %v1098
  %v1201 = vpack.c.b16 %v1101, %v1100
  %v1202 = vpack.c.b16 %v1103, %v1102
  %v1203 = vpack.c.b16 %v1105, %v1104
  %v1204 = vpack.c.b16 %v1107, %v1106
  %v1205 = vpack.c.b16 %v1109, %v1108
  %v1206 = vpack.c.b16 %v1111, %v1110
  %v1207 = vpack.c.b16 %v1113, %v1112
  %v1208 = vpack.c.b16 %v1115, %v1114
  %v1209 = vpack.c.b16 %v1117, %v1116
  %v1210 = vpack.c.b16 %v1119, %v1118
  %v1211 = vpack.c.b16 %v1121, %v1120
  %v1212 = vpack.c.b16 %v1123, %v1122
  %v1213 = vpack.c.b16 %v1125, %v1124
  %v1214 = vpack.c.b16 %v1127, %v1126
  %v1215 = vpack.c.b16 %v1129, %v1128
  %v1216 = vpack.c.b16 %v1131, %v1130
  %v1217 = vpack.c.b16 %v1133, %v1132
  %v1218 = vpack.c.b16 %v1135, %v1134
  %v1219 = vpack.c.b16 %v1137, %v1136
  %v1220 = vpack.c.b16 %v1139, %v1138
  %v1221 = vpack.c.b16 %v1141, %v1140
  %v1222 = vpack.c.b16 %v1143, %v1142
  %v1223 = vpack.c.b16 %v1145, %v1144
  %v1224 = vpack.c.b16 %v1147, %v1146
  %v1225 = vpack.c.b16 %v1149, %v1148
  %v1226 = vpack.c.b16 %v1151, %v1150
  %v1227 = vpack.c.b16 %v1153, %v1152
  %v1228 = vpack.c.b16 %v1155, %v1154
  %v1229 = vpack.c.b16 %v1157, %v1156
  %v1230 = vpack.c.b16 %v1159, %v1158
  %v1231 = vpack.c.b16 %v1161, %v1160
  %v1232 = vpack.c.b16 %v1163, %v1162
  %v1233 = vpack.c.b16 %v1165, %v1164
  %v1234 = vpack.c.b16 %v1167, %v1166
  %v1235 = vpack.c.b16 %v1169, %v1168
  %v1236 = vpack.c.b16 %v1171, %v1170
  %v1237 = vpack.c.b16 %v1173, %v1172
  %1302 = vmatprep.subr.bf16.mxu0 0
  %1303 = vmatpush1.bf16.msra.mxu0 %v1181
  %1304 = vmatprep.subr.bf16.mxu0 0
  %1305 = vmatpush1.bf16.msra.mxu0 %v1180
  %1306 = vmatprep.subr.bf16.mxu0 0
  %1307 = vmatpush1.bf16.msra.mxu0 %v1179
  %1308 = vmatprep.subr.bf16.mxu0 0
  %1309 = vmatpush1.bf16.msra.mxu0 %v1178
  %1310 = vmatprep.subr.bf16.mxu0 0
  %1311 = vmatpush1.bf16.msra.mxu0 %v1177
  %1312 = vmatprep.subr.bf16.mxu0 0
  %1313 = vmatpush1.bf16.msra.mxu0 %v1176
  %1314 = vmatprep.subr.bf16.mxu0 0
  %1315 = vmatpush1.bf16.msra.mxu0 %v1175
  %1316 = vmatprep.subr.bf16.mxu0 0
  %1317 = vmatpush1.bf16.msra.mxu0 %v1174
  %1318 = vmatprep.subr.bf16.mxu0 0
  %1319 = vmatpush2.bf16.msra.mxu0 %v1189
  %1320 = vmatprep.subr.bf16.mxu0 0
  %1321 = vmatpush2.bf16.msra.mxu0 %v1188
  %1322 = vmatprep.subr.bf16.mxu0 0
  %1323 = vmatpush2.bf16.msra.mxu0 %v1187
  %1324 = vmatprep.subr.bf16.mxu0 0
  %1325 = vmatpush2.bf16.msra.mxu0 %v1186
  %1326 = vmatprep.subr.bf16.mxu0 0
  %1327 = vmatpush2.bf16.msra.mxu0 %v1185
  %1328 = vmatprep.subr.bf16.mxu0 0
  %1329 = vmatpush2.bf16.msra.mxu0 %v1184
  %1330 = vmatprep.subr.bf16.mxu0 0
  %1331 = vmatpush2.bf16.msra.mxu0 %v1183
  %1332 = vmatprep.subr.bf16.mxu0 0
  %1333 = vmatpush2.bf16.msra.mxu0 %v1182
  %1334 = vmatprep.mubr.bf16.mxu0 %v663
  %1335 = vmatmul.mubr.bf16.gmra.mxu0 %v662
  %v1336 = vpop.f32.mrf.mxu0
  %v1337 = vadd.f32 %v276, %v1336
  %v1338 = vpop.f32.mrf.mxu0
  %v1339 = vpop.f32.mrf.mxu0
  %v1340 = vadd.f32 %v276, %v1339
  %v1341 = vpop.f32.mrf.mxu0
  %1342 = vmatprep.mubr.bf16.mxu0 %v671
  %1343 = vmatmul.mubr.bf16.gmra.mxu0 %v670
  %v1344 = vpop.f32.mrf.mxu0
  %v1345 = vadd.f32 %v276, %v1344
  %v1346 = vpop.f32.mrf.mxu0
  %v1347 = vpop.f32.mrf.mxu0
  %v1348 = vadd.f32 %v276, %v1347
  %v1349 = vpop.f32.mrf.mxu0
  %1350 = vmatprep.mubr.bf16.mxu0 %v679
  %1351 = vmatmul.mubr.bf16.gmra.mxu0 %v678
  %v1352 = vpop.f32.mrf.mxu0
  %v1353 = vadd.f32 %v276, %v1352
  %v1354 = vpop.f32.mrf.mxu0
  %v1355 = vpop.f32.mrf.mxu0
  %v1356 = vadd.f32 %v276, %v1355
  %v1357 = vpop.f32.mrf.mxu0
  %1358 = vmatprep.mubr.bf16.mxu0 %v687
  %1359 = vmatmul.mubr.bf16.gmra.mxu0 %v686
  %v1360 = vpop.f32.mrf.mxu0
  %v1361 = vadd.f32 %v276, %v1360
  %v1362 = vpop.f32.mrf.mxu0
  %v1363 = vpop.f32.mrf.mxu0
  %v1364 = vadd.f32 %v276, %v1363
  %v1365 = vpop.f32.mrf.mxu0
  %1366 = vmatprep.mubr.bf16.mxu0 %v695
  %1367 = vmatmul.mubr.bf16.gmra.mxu0 %v694
  %v1368 = vpop.f32.mrf.mxu0
  %v1369 = vadd.f32 %v276, %v1368
  %v1370 = vpop.f32.mrf.mxu0
  %v1371 = vpop.f32.mrf.mxu0
  %v1372 = vadd.f32 %v276, %v1371
  %v1373 = vpop.f32.mrf.mxu0
  %1374 = vmatprep.mubr.bf16.mxu0 %v703
  %1375 = vmatmul.mubr.bf16.gmra.mxu0 %v702
  %v1376 = vpop.f32.mrf.mxu0
  %v1377 = vadd.f32 %v276, %v1376
  %v1378 = vpop.f32.mrf.mxu0
  %v1379 = vpop.f32.mrf.mxu0
  %v1380 = vadd.f32 %v276, %v1379
  %v1381 = vpop.f32.mrf.mxu0
  %1382 = vmatprep.mubr.bf16.mxu0 %v711
  %1383 = vmatmul.mubr.bf16.gmra.mxu0 %v710
  %v1384 = vpop.f32.mrf.mxu0
  %v1385 = vadd.f32 %v276, %v1384
  %v1386 = vpop.f32.mrf.mxu0
  %v1387 = vpop.f32.mrf.mxu0
  %v1388 = vadd.f32 %v276, %v1387
  %v1389 = vpop.f32.mrf.mxu0
  %1390 = vmatprep.mubr.bf16.mxu0 %v719
  %1391 = vmatmul.mubr.bf16.gmra.mxu0 %v718
  %v1392 = vpop.f32.mrf.mxu0
  %v1393 = vadd.f32 %v276, %v1392
  %v1394 = vpop.f32.mrf.mxu0
  %v1395 = vpop.f32.mrf.mxu0
  %v1396 = vadd.f32 %v276, %v1395
  %v1397 = vpop.f32.mrf.mxu0
  %1398 = vmatprep.mubr.bf16.mxu0 %v727
  %1399 = vmatmul.mubr.bf16.gmra.mxu0 %v726
  %v1400 = vpop.f32.mrf.mxu0
  %v1401 = vadd.f32 %v276, %v1400
  %v1402 = vpop.f32.mrf.mxu0
  %v1403 = vpop.f32.mrf.mxu0
  %v1404 = vadd.f32 %v276, %v1403
  %v1405 = vpop.f32.mrf.mxu0
  %1406 = vmatprep.mubr.bf16.mxu0 %v735
  %1407 = vmatmul.mubr.bf16.gmra.mxu0 %v734
  %v1408 = vpop.f32.mrf.mxu0
  %v1409 = vadd.f32 %v276, %v1408
  %v1410 = vpop.f32.mrf.mxu0
  %v1411 = vpop.f32.mrf.mxu0
  %v1412 = vadd.f32 %v276, %v1411
  %v1413 = vpop.f32.mrf.mxu0
  %1414 = vmatprep.mubr.bf16.mxu0 %v743
  %1415 = vmatmul.mubr.bf16.gmra.mxu0 %v742
  %v1416 = vpop.f32.mrf.mxu0
  %v1417 = vadd.f32 %v276, %v1416
  %v1418 = vpop.f32.mrf.mxu0
  %v1419 = vpop.f32.mrf.mxu0
  %v1420 = vadd.f32 %v276, %v1419
  %v1421 = vpop.f32.mrf.mxu0
  %1422 = vmatprep.mubr.bf16.mxu0 %v751
  %1423 = vmatmul.mubr.bf16.gmra.mxu0 %v750
  %v1424 = vpop.f32.mrf.mxu0
  %v1425 = vadd.f32 %v276, %v1424
  %v1426 = vpop.f32.mrf.mxu0
  %v1427 = vpop.f32.mrf.mxu0
  %v1428 = vadd.f32 %v276, %v1427
  %v1429 = vpop.f32.mrf.mxu0
  %1430 = vmatprep.mubr.bf16.mxu0 %v759
  %1431 = vmatmul.mubr.bf16.gmra.mxu0 %v758
  %v1432 = vpop.f32.mrf.mxu0
  %v1433 = vadd.f32 %v276, %v1432
  %v1434 = vpop.f32.mrf.mxu0
  %v1435 = vpop.f32.mrf.mxu0
  %v1436 = vadd.f32 %v276, %v1435
  %v1437 = vpop.f32.mrf.mxu0
  %1438 = vmatprep.mubr.bf16.mxu0 %v767
  %1439 = vmatmul.mubr.bf16.gmra.mxu0 %v766
  %v1440 = vpop.f32.mrf.mxu0
  %v1441 = vadd.f32 %v276, %v1440
  %v1442 = vpop.f32.mrf.mxu0
  %v1443 = vpop.f32.mrf.mxu0
  %v1444 = vadd.f32 %v276, %v1443
  %v1445 = vpop.f32.mrf.mxu0
  %1446 = vmatprep.mubr.bf16.mxu0 %v775
  %1447 = vmatmul.mubr.bf16.gmra.mxu0 %v774
  %v1448 = vpop.f32.mrf.mxu0
  %v1449 = vadd.f32 %v276, %v1448
  %v1450 = vpop.f32.mrf.mxu0
  %v1451 = vpop.f32.mrf.mxu0
  %v1452 = vadd.f32 %v276, %v1451
  %v1453 = vpop.f32.mrf.mxu0
  %1454 = vmatprep.mubr.bf16.mxu0 %v783
  %1455 = vmatmul.mubr.bf16.gmra.mxu0 %v782
  %v1456 = vpop.f32.mrf.mxu0
  %v1457 = vadd.f32 %v276, %v1456
  %v1458 = vpop.f32.mrf.mxu0
  %v1459 = vpop.f32.mrf.mxu0
  %v1460 = vadd.f32 %v276, %v1459
  %v1461 = vpop.f32.mrf.mxu0
  %1462 = vdwg.mxu0
  %1463 = vmatprep.subr.bf16.mxu0 0
  %1464 = vmatpush1.bf16.msra.mxu0 %v1197
  %1465 = vmatprep.subr.bf16.mxu0 0
  %1466 = vmatpush1.bf16.msra.mxu0 %v1196
  %1467 = vmatprep.subr.bf16.mxu0 0
  %1468 = vmatpush1.bf16.msra.mxu0 %v1195
  %1469 = vmatprep.subr.bf16.mxu0 0
  %1470 = vmatpush1.bf16.msra.mxu0 %v1194
  %1471 = vmatprep.subr.bf16.mxu0 0
  %1472 = vmatpush1.bf16.msra.mxu0 %v1193
  %1473 = vmatprep.subr.bf16.mxu0 0
  %1474 = vmatpush1.bf16.msra.mxu0 %v1192
  %1475 = vmatprep.subr.bf16.mxu0 0
  %1476 = vmatpush1.bf16.msra.mxu0 %v1191
  %1477 = vmatprep.subr.bf16.mxu0 0
  %1478 = vmatpush1.bf16.msra.mxu0 %v1190
  %1479 = vmatprep.subr.bf16.mxu0 0
  %1480 = vmatpush2.bf16.msra.mxu0 %v1205
  %1481 = vmatprep.subr.bf16.mxu0 0
  %1482 = vmatpush2.bf16.msra.mxu0 %v1204
  %1483 = vmatprep.subr.bf16.mxu0 0
  %1484 = vmatpush2.bf16.msra.mxu0 %v1203
  %1485 = vmatprep.subr.bf16.mxu0 0
  %1486 = vmatpush2.bf16.msra.mxu0 %v1202
  %1487 = vmatprep.subr.bf16.mxu0 0
  %1488 = vmatpush2.bf16.msra.mxu0 %v1201
  %1489 = vmatprep.subr.bf16.mxu0 0
  %1490 = vmatpush2.bf16.msra.mxu0 %v1200
  %1491 = vmatprep.subr.bf16.mxu0 0
  %1492 = vmatpush2.bf16.msra.mxu0 %v1199
  %1493 = vmatprep.subr.bf16.mxu0 0
  %1494 = vmatpush2.bf16.msra.mxu0 %v1198
  %1495 = vmatprep.mubr.bf16.mxu0 %v665
  %1496 = vmatmul.mubr.bf16.gmra.mxu0 %v664
  %v1497 = vpop.f32.mrf.mxu0
  %v1498 = vadd.f32 %v1337, %v1497
  %v1499 = vpop.f32.mrf.mxu0
  %v1500 = vpop.f32.mrf.mxu0
  %v1501 = vadd.f32 %v1340, %v1500
  %v1502 = vpop.f32.mrf.mxu0
  %1503 = vmatprep.mubr.bf16.mxu0 %v673
  %1504 = vmatmul.mubr.bf16.gmra.mxu0 %v672
  %v1505 = vpop.f32.mrf.mxu0
  %v1506 = vadd.f32 %v1345, %v1505
  %v1507 = vpop.f32.mrf.mxu0
  %v1508 = vpop.f32.mrf.mxu0
  %v1509 = vadd.f32 %v1348, %v1508
  %v1510 = vpop.f32.mrf.mxu0
  %1511 = vmatprep.mubr.bf16.mxu0 %v681
  %1512 = vmatmul.mubr.bf16.gmra.mxu0 %v680
  %v1513 = vpop.f32.mrf.mxu0
  %v1514 = vadd.f32 %v1353, %v1513
  %v1515 = vpop.f32.mrf.mxu0
  %v1516 = vpop.f32.mrf.mxu0
  %v1517 = vadd.f32 %v1356, %v1516
  %v1518 = vpop.f32.mrf.mxu0
  %1519 = vmatprep.mubr.bf16.mxu0 %v689
  %1520 = vmatmul.mubr.bf16.gmra.mxu0 %v688
  %v1521 = vpop.f32.mrf.mxu0
  %v1522 = vadd.f32 %v1361, %v1521
  %v1523 = vpop.f32.mrf.mxu0
  %v1524 = vpop.f32.mrf.mxu0
  %v1525 = vadd.f32 %v1364, %v1524
  %v1526 = vpop.f32.mrf.mxu0
  %1527 = vmatprep.mubr.bf16.mxu0 %v697
  %1528 = vmatmul.mubr.bf16.gmra.mxu0 %v696
  %v1529 = vpop.f32.mrf.mxu0
  %v1530 = vadd.f32 %v1369, %v1529
  %v1531 = vpop.f32.mrf.mxu0
  %v1532 = vpop.f32.mrf.mxu0
  %v1533 = vadd.f32 %v1372, %v1532
  %v1534 = vpop.f32.mrf.mxu0
  %1535 = vmatprep.mubr.bf16.mxu0 %v705
  %1536 = vmatmul.mubr.bf16.gmra.mxu0 %v704
  %v1537 = vpop.f32.mrf.mxu0
  %v1538 = vadd.f32 %v1377, %v1537
  %v1539 = vpop.f32.mrf.mxu0
  %v1540 = vpop.f32.mrf.mxu0
  %v1541 = vadd.f32 %v1380, %v1540
  %v1542 = vpop.f32.mrf.mxu0
  %1543 = vmatprep.mubr.bf16.mxu0 %v713
  %1544 = vmatmul.mubr.bf16.gmra.mxu0 %v712
  %v1545 = vpop.f32.mrf.mxu0
  %v1546 = vadd.f32 %v1385, %v1545
  %v1547 = vpop.f32.mrf.mxu0
  %v1548 = vpop.f32.mrf.mxu0
  %v1549 = vadd.f32 %v1388, %v1548
  %v1550 = vpop.f32.mrf.mxu0
  %1551 = vmatprep.mubr.bf16.mxu0 %v721
  %1552 = vmatmul.mubr.bf16.gmra.mxu0 %v720
  %v1553 = vpop.f32.mrf.mxu0
  %v1554 = vadd.f32 %v1393, %v1553
  %v1555 = vpop.f32.mrf.mxu0
  %v1556 = vpop.f32.mrf.mxu0
  %v1557 = vadd.f32 %v1396, %v1556
  %v1558 = vpop.f32.mrf.mxu0
  %1559 = vmatprep.mubr.bf16.mxu0 %v729
  %1560 = vmatmul.mubr.bf16.gmra.mxu0 %v728
  %v1561 = vpop.f32.mrf.mxu0
  %v1562 = vadd.f32 %v1401, %v1561
  %v1563 = vpop.f32.mrf.mxu0
  %v1564 = vpop.f32.mrf.mxu0
  %v1565 = vadd.f32 %v1404, %v1564
  %v1566 = vpop.f32.mrf.mxu0
  %1567 = vmatprep.mubr.bf16.mxu0 %v737
  %1568 = vmatmul.mubr.bf16.gmra.mxu0 %v736
  %v1569 = vpop.f32.mrf.mxu0
  %v1570 = vadd.f32 %v1409, %v1569
  %v1571 = vpop.f32.mrf.mxu0
  %v1572 = vpop.f32.mrf.mxu0
  %v1573 = vadd.f32 %v1412, %v1572
  %v1574 = vpop.f32.mrf.mxu0
  %1575 = vmatprep.mubr.bf16.mxu0 %v745
  %1576 = vmatmul.mubr.bf16.gmra.mxu0 %v744
  %v1577 = vpop.f32.mrf.mxu0
  %v1578 = vadd.f32 %v1417, %v1577
  %v1579 = vpop.f32.mrf.mxu0
  %v1580 = vpop.f32.mrf.mxu0
  %v1581 = vadd.f32 %v1420, %v1580
  %v1582 = vpop.f32.mrf.mxu0
  %1583 = vmatprep.mubr.bf16.mxu0 %v753
  %1584 = vmatmul.mubr.bf16.gmra.mxu0 %v752
  %v1585 = vpop.f32.mrf.mxu0
  %v1586 = vadd.f32 %v1425, %v1585
  %v1587 = vpop.f32.mrf.mxu0
  %v1588 = vpop.f32.mrf.mxu0
  %v1589 = vadd.f32 %v1428, %v1588
  %v1590 = vpop.f32.mrf.mxu0
  %1591 = vmatprep.mubr.bf16.mxu0 %v761
  %1592 = vmatmul.mubr.bf16.gmra.mxu0 %v760
  %v1593 = vpop.f32.mrf.mxu0
  %v1594 = vadd.f32 %v1433, %v1593
  %v1595 = vpop.f32.mrf.mxu0
  %v1596 = vpop.f32.mrf.mxu0
  %v1597 = vadd.f32 %v1436, %v1596
  %v1598 = vpop.f32.mrf.mxu0
  %1599 = vmatprep.mubr.bf16.mxu0 %v769
  %1600 = vmatmul.mubr.bf16.gmra.mxu0 %v768
  %v1601 = vpop.f32.mrf.mxu0
  %v1602 = vadd.f32 %v1441, %v1601
  %v1603 = vpop.f32.mrf.mxu0
  %v1604 = vpop.f32.mrf.mxu0
  %v1605 = vadd.f32 %v1444, %v1604
  %v1606 = vpop.f32.mrf.mxu0
  %1607 = vmatprep.mubr.bf16.mxu0 %v777
  %1608 = vmatmul.mubr.bf16.gmra.mxu0 %v776
  %v1609 = vpop.f32.mrf.mxu0
  %v1610 = vadd.f32 %v1449, %v1609
  %v1611 = vpop.f32.mrf.mxu0
  %v1612 = vpop.f32.mrf.mxu0
  %v1613 = vadd.f32 %v1452, %v1612
  %v1614 = vpop.f32.mrf.mxu0
  %1615 = vmatprep.mubr.bf16.mxu0 %v785
  %1616 = vmatmul.mubr.bf16.gmra.mxu0 %v784
  %v1617 = vpop.f32.mrf.mxu0
  %v1618 = vadd.f32 %v1457, %v1617
  %v1619 = vpop.f32.mrf.mxu0
  %v1620 = vpop.f32.mrf.mxu0
  %v1621 = vadd.f32 %v1460, %v1620
  %v1622 = vpop.f32.mrf.mxu0
  %1623 = vdwg.mxu0
  %1624 = vmatprep.subr.bf16.mxu0 0
  %1625 = vmatpush1.bf16.msra.mxu0 %v1213
  %1626 = vmatprep.subr.bf16.mxu0 0
  %1627 = vmatpush1.bf16.msra.mxu0 %v1212
  %1628 = vmatprep.subr.bf16.mxu0 0
  %1629 = vmatpush1.bf16.msra.mxu0 %v1211
  %1630 = vmatprep.subr.bf16.mxu0 0
  %1631 = vmatpush1.bf16.msra.mxu0 %v1210
  %1632 = vmatprep.subr.bf16.mxu0 0
  %1633 = vmatpush1.bf16.msra.mxu0 %v1209
  %1634 = vmatprep.subr.bf16.mxu0 0
  %1635 = vmatpush1.bf16.msra.mxu0 %v1208
  %1636 = vmatprep.subr.bf16.mxu0 0
  %1637 = vmatpush1.bf16.msra.mxu0 %v1207
  %1638 = vmatprep.subr.bf16.mxu0 0
  %1639 = vmatpush1.bf16.msra.mxu0 %v1206
  %1640 = vmatprep.subr.bf16.mxu0 0
  %1641 = vmatpush2.bf16.msra.mxu0 %v1221
  %1642 = vmatprep.subr.bf16.mxu0 0
  %1643 = vmatpush2.bf16.msra.mxu0 %v1220
  %1644 = vmatprep.subr.bf16.mxu0 0
  %1645 = vmatpush2.bf16.msra.mxu0 %v1219
  %1646 = vmatprep.subr.bf16.mxu0 0
  %1647 = vmatpush2.bf16.msra.mxu0 %v1218
  %1648 = vmatprep.subr.bf16.mxu0 0
  %1649 = vmatpush2.bf16.msra.mxu0 %v1217
  %1650 = vmatprep.subr.bf16.mxu0 0
  %1651 = vmatpush2.bf16.msra.mxu0 %v1216
  %1652 = vmatprep.subr.bf16.mxu0 0
  %1653 = vmatpush2.bf16.msra.mxu0 %v1215
  %1654 = vmatprep.subr.bf16.mxu0 0
  %1655 = vmatpush2.bf16.msra.mxu0 %v1214
  %1656 = vmatprep.mubr.bf16.mxu0 %v667
  %1657 = vmatmul.mubr.bf16.gmra.mxu0 %v666
  %v1658 = vpop.f32.mrf.mxu0
  %v1659 = vadd.f32 %v1498, %v1658
  %v1660 = vpop.f32.mrf.mxu0
  %v1661 = vpop.f32.mrf.mxu0
  %v1662 = vadd.f32 %v1501, %v1661
  %v1663 = vpop.f32.mrf.mxu0
  %1664 = vmatprep.mubr.bf16.mxu0 %v675
  %1665 = vmatmul.mubr.bf16.gmra.mxu0 %v674
  %v1666 = vpop.f32.mrf.mxu0
  %v1667 = vadd.f32 %v1506, %v1666
  %v1668 = vpop.f32.mrf.mxu0
  %v1669 = vpop.f32.mrf.mxu0
  %v1670 = vadd.f32 %v1509, %v1669
  %v1671 = vpop.f32.mrf.mxu0
  %1672 = vmatprep.mubr.bf16.mxu0 %v683
  %1673 = vmatmul.mubr.bf16.gmra.mxu0 %v682
  %v1674 = vpop.f32.mrf.mxu0
  %v1675 = vadd.f32 %v1514, %v1674
  %v1676 = vpop.f32.mrf.mxu0
  %v1677 = vpop.f32.mrf.mxu0
  %v1678 = vadd.f32 %v1517, %v1677
  %v1679 = vpop.f32.mrf.mxu0
  %1680 = vmatprep.mubr.bf16.mxu0 %v691
  %1681 = vmatmul.mubr.bf16.gmra.mxu0 %v690
  %v1682 = vpop.f32.mrf.mxu0
  %v1683 = vadd.f32 %v1522, %v1682
  %v1684 = vpop.f32.mrf.mxu0
  %v1685 = vpop.f32.mrf.mxu0
  %v1686 = vadd.f32 %v1525, %v1685
  %v1687 = vpop.f32.mrf.mxu0
  %1688 = vmatprep.mubr.bf16.mxu0 %v699
  %1689 = vmatmul.mubr.bf16.gmra.mxu0 %v698
  %v1690 = vpop.f32.mrf.mxu0
  %v1691 = vadd.f32 %v1530, %v1690
  %v1692 = vpop.f32.mrf.mxu0
  %v1693 = vpop.f32.mrf.mxu0
  %v1694 = vadd.f32 %v1533, %v1693
  %v1695 = vpop.f32.mrf.mxu0
  %1696 = vmatprep.mubr.bf16.mxu0 %v707
  %1697 = vmatmul.mubr.bf16.gmra.mxu0 %v706
  %v1698 = vpop.f32.mrf.mxu0
  %v1699 = vadd.f32 %v1538, %v1698
  %v1700 = vpop.f32.mrf.mxu0
  %v1701 = vpop.f32.mrf.mxu0
  %v1702 = vadd.f32 %v1541, %v1701
  %v1703 = vpop.f32.mrf.mxu0
  %1704 = vmatprep.mubr.bf16.mxu0 %v715
  %1705 = vmatmul.mubr.bf16.gmra.mxu0 %v714
  %v1706 = vpop.f32.mrf.mxu0
  %v1707 = vadd.f32 %v1546, %v1706
  %v1708 = vpop.f32.mrf.mxu0
  %v1709 = vpop.f32.mrf.mxu0
  %v1710 = vadd.f32 %v1549, %v1709
  %v1711 = vpop.f32.mrf.mxu0
  %1712 = vmatprep.mubr.bf16.mxu0 %v723
  %1713 = vmatmul.mubr.bf16.gmra.mxu0 %v722
  %v1714 = vpop.f32.mrf.mxu0
  %v1715 = vadd.f32 %v1554, %v1714
  %v1716 = vpop.f32.mrf.mxu0
  %v1717 = vpop.f32.mrf.mxu0
  %v1718 = vadd.f32 %v1557, %v1717
  %v1719 = vpop.f32.mrf.mxu0
  %1720 = vmatprep.mubr.bf16.mxu0 %v731
  %1721 = vmatmul.mubr.bf16.gmra.mxu0 %v730
  %v1722 = vpop.f32.mrf.mxu0
  %v1723 = vadd.f32 %v1562, %v1722
  %v1724 = vpop.f32.mrf.mxu0
  %v1725 = vpop.f32.mrf.mxu0
  %v1726 = vadd.f32 %v1565, %v1725
  %v1727 = vpop.f32.mrf.mxu0
  %1728 = vmatprep.mubr.bf16.mxu0 %v739
  %1729 = vmatmul.mubr.bf16.gmra.mxu0 %v738
  %v1730 = vpop.f32.mrf.mxu0
  %v1731 = vadd.f32 %v1570, %v1730
  %v1732 = vpop.f32.mrf.mxu0
  %v1733 = vpop.f32.mrf.mxu0
  %v1734 = vadd.f32 %v1573, %v1733
  %v1735 = vpop.f32.mrf.mxu0
  %1736 = vmatprep.mubr.bf16.mxu0 %v747
  %1737 = vmatmul.mubr.bf16.gmra.mxu0 %v746
  %v1738 = vpop.f32.mrf.mxu0
  %v1739 = vadd.f32 %v1578, %v1738
  %v1740 = vpop.f32.mrf.mxu0
  %v1741 = vpop.f32.mrf.mxu0
  %v1742 = vadd.f32 %v1581, %v1741
  %v1743 = vpop.f32.mrf.mxu0
  %1744 = vmatprep.mubr.bf16.mxu0 %v755
  %1745 = vmatmul.mubr.bf16.gmra.mxu0 %v754
  %v1746 = vpop.f32.mrf.mxu0
  %v1747 = vadd.f32 %v1586, %v1746
  %v1748 = vpop.f32.mrf.mxu0
  %v1749 = vpop.f32.mrf.mxu0
  %v1750 = vadd.f32 %v1589, %v1749
  %v1751 = vpop.f32.mrf.mxu0
  %1752 = vmatprep.mubr.bf16.mxu0 %v763
  %1753 = vmatmul.mubr.bf16.gmra.mxu0 %v762
  %v1754 = vpop.f32.mrf.mxu0
  %v1755 = vadd.f32 %v1594, %v1754
  %v1756 = vpop.f32.mrf.mxu0
  %v1757 = vpop.f32.mrf.mxu0
  %v1758 = vadd.f32 %v1597, %v1757
  %v1759 = vpop.f32.mrf.mxu0
  %1760 = vmatprep.mubr.bf16.mxu0 %v771
  %1761 = vmatmul.mubr.bf16.gmra.mxu0 %v770
  %v1762 = vpop.f32.mrf.mxu0
  %v1763 = vadd.f32 %v1602, %v1762
  %v1764 = vpop.f32.mrf.mxu0
  %v1765 = vpop.f32.mrf.mxu0
  %v1766 = vadd.f32 %v1605, %v1765
  %v1767 = vpop.f32.mrf.mxu0
  %1768 = vmatprep.mubr.bf16.mxu0 %v779
  %1769 = vmatmul.mubr.bf16.gmra.mxu0 %v778
  %v1770 = vpop.f32.mrf.mxu0
  %v1771 = vadd.f32 %v1610, %v1770
  %v1772 = vpop.f32.mrf.mxu0
  %v1773 = vpop.f32.mrf.mxu0
  %v1774 = vadd.f32 %v1613, %v1773
  %v1775 = vpop.f32.mrf.mxu0
  %1776 = vmatprep.mubr.bf16.mxu0 %v787
  %1777 = vmatmul.mubr.bf16.gmra.mxu0 %v786
  %v1778 = vpop.f32.mrf.mxu0
  %v1779 = vadd.f32 %v1618, %v1778
  %v1780 = vpop.f32.mrf.mxu0
  %v1781 = vpop.f32.mrf.mxu0
  %v1782 = vadd.f32 %v1621, %v1781
  %v1783 = vpop.f32.mrf.mxu0
  %1784 = vdwg.mxu0
  %1785 = vmatprep.subr.bf16.mxu0 0
  %1786 = vmatpush1.bf16.msra.mxu0 %v1229
  %1787 = vmatprep.subr.bf16.mxu0 0
  %1788 = vmatpush1.bf16.msra.mxu0 %v1228
  %1789 = vmatprep.subr.bf16.mxu0 0
  %1790 = vmatpush1.bf16.msra.mxu0 %v1227
  %1791 = vmatprep.subr.bf16.mxu0 0
  %1792 = vmatpush1.bf16.msra.mxu0 %v1226
  %1793 = vmatprep.subr.bf16.mxu0 0
  %1794 = vmatpush1.bf16.msra.mxu0 %v1225
  %1795 = vmatprep.subr.bf16.mxu0 0
  %1796 = vmatpush1.bf16.msra.mxu0 %v1224
  %1797 = vmatprep.subr.bf16.mxu0 0
  %1798 = vmatpush1.bf16.msra.mxu0 %v1223
  %1799 = vmatprep.subr.bf16.mxu0 0
  %1800 = vmatpush1.bf16.msra.mxu0 %v1222
  %1801 = vmatprep.subr.bf16.mxu0 0
  %1802 = vmatpush2.bf16.msra.mxu0 %v1237
  %1803 = vmatprep.subr.bf16.mxu0 0
  %1804 = vmatpush2.bf16.msra.mxu0 %v1236
  %1805 = vmatprep.subr.bf16.mxu0 0
  %1806 = vmatpush2.bf16.msra.mxu0 %v1235
  %1807 = vmatprep.subr.bf16.mxu0 0
  %1808 = vmatpush2.bf16.msra.mxu0 %v1234
  %1809 = vmatprep.subr.bf16.mxu0 0
  %1810 = vmatpush2.bf16.msra.mxu0 %v1233
  %1811 = vmatprep.subr.bf16.mxu0 0
  %1812 = vmatpush2.bf16.msra.mxu0 %v1232
  %1813 = vmatprep.subr.bf16.mxu0 0
  %1814 = vmatpush2.bf16.msra.mxu0 %v1231
  %1815 = vmatprep.subr.bf16.mxu0 0
  %1816 = vmatpush2.bf16.msra.mxu0 %v1230
  %1817 = vmatprep.mubr.bf16.mxu0 %v669
  %1818 = vmatmul.mubr.bf16.gmra.mxu0 %v668
  %v1819 = vpop.f32.mrf.mxu0
  %v1820 = vadd.f32 %v1659, %v1819
  %v1821 = vpop.f32.mrf.mxu0
  %v1822 = vpop.f32.mrf.mxu0
  %v1823 = vadd.f32 %v1662, %v1822
  %v1824 = vpop.f32.mrf.mxu0
  %1825 = vmatprep.mubr.bf16.mxu0 %v677
  %1826 = vmatmul.mubr.bf16.gmra.mxu0 %v676
  %v1827 = vpop.f32.mrf.mxu0
  %v1828 = vadd.f32 %v1667, %v1827
  %v1829 = vpop.f32.mrf.mxu0
  %v1830 = vpop.f32.mrf.mxu0
  %v1831 = vadd.f32 %v1670, %v1830
  %v1832 = vpop.f32.mrf.mxu0
  %1833 = vmatprep.mubr.bf16.mxu0 %v685
  %1834 = vmatmul.mubr.bf16.gmra.mxu0 %v684
  %v1835 = vpop.f32.mrf.mxu0
  %v1836 = vadd.f32 %v1675, %v1835
  %v1837 = vpop.f32.mrf.mxu0
  %v1838 = vpop.f32.mrf.mxu0
  %v1839 = vadd.f32 %v1678, %v1838
  %v1840 = vpop.f32.mrf.mxu0
  %1841 = vmatprep.mubr.bf16.mxu0 %v693
  %1842 = vmatmul.mubr.bf16.gmra.mxu0 %v692
  %v1843 = vpop.f32.mrf.mxu0
  %v1844 = vadd.f32 %v1683, %v1843
  %v1845 = vpop.f32.mrf.mxu0
  %v1846 = vpop.f32.mrf.mxu0
  %v1847 = vadd.f32 %v1686, %v1846
  %v1848 = vpop.f32.mrf.mxu0
  %1849 = vmatprep.mubr.bf16.mxu0 %v701
  %1850 = vmatmul.mubr.bf16.gmra.mxu0 %v700
  %v1851 = vpop.f32.mrf.mxu0
  %v1852 = vadd.f32 %v1691, %v1851
  %v1853 = vpop.f32.mrf.mxu0
  %v1854 = vpop.f32.mrf.mxu0
  %v1855 = vadd.f32 %v1694, %v1854
  %v1856 = vpop.f32.mrf.mxu0
  %1857 = vmatprep.mubr.bf16.mxu0 %v709
  %1858 = vmatmul.mubr.bf16.gmra.mxu0 %v708
  %v1859 = vpop.f32.mrf.mxu0
  %v1860 = vadd.f32 %v1699, %v1859
  %v1861 = vpop.f32.mrf.mxu0
  %v1862 = vpop.f32.mrf.mxu0
  %v1863 = vadd.f32 %v1702, %v1862
  %v1864 = vpop.f32.mrf.mxu0
  %1865 = vmatprep.mubr.bf16.mxu0 %v717
  %1866 = vmatmul.mubr.bf16.gmra.mxu0 %v716
  %v1867 = vpop.f32.mrf.mxu0
  %v1868 = vadd.f32 %v1707, %v1867
  %v1869 = vpop.f32.mrf.mxu0
  %v1870 = vpop.f32.mrf.mxu0
  %v1871 = vadd.f32 %v1710, %v1870
  %v1872 = vpop.f32.mrf.mxu0
  %1873 = vmatprep.mubr.bf16.mxu0 %v725
  %1874 = vmatmul.mubr.bf16.gmra.mxu0 %v724
  %v1875 = vpop.f32.mrf.mxu0
  %v1876 = vadd.f32 %v1715, %v1875
  %v1877 = vpop.f32.mrf.mxu0
  %v1878 = vpop.f32.mrf.mxu0
  %v1879 = vadd.f32 %v1718, %v1878
  %v1880 = vpop.f32.mrf.mxu0
  %1881 = vmatprep.mubr.bf16.mxu0 %v733
  %1882 = vmatmul.mubr.bf16.gmra.mxu0 %v732
  %v1883 = vpop.f32.mrf.mxu0
  %v1884 = vadd.f32 %v1723, %v1883
  %v1885 = vpop.f32.mrf.mxu0
  %v1886 = vpop.f32.mrf.mxu0
  %v1887 = vadd.f32 %v1726, %v1886
  %v1888 = vpop.f32.mrf.mxu0
  %1889 = vmatprep.mubr.bf16.mxu0 %v741
  %1890 = vmatmul.mubr.bf16.gmra.mxu0 %v740
  %v1891 = vpop.f32.mrf.mxu0
  %v1892 = vadd.f32 %v1731, %v1891
  %v1893 = vpop.f32.mrf.mxu0
  %v1894 = vpop.f32.mrf.mxu0
  %v1895 = vadd.f32 %v1734, %v1894
  %v1896 = vpop.f32.mrf.mxu0
  %1897 = vmatprep.mubr.bf16.mxu0 %v749
  %1898 = vmatmul.mubr.bf16.gmra.mxu0 %v748
  %v1899 = vpop.f32.mrf.mxu0
  %v1900 = vadd.f32 %v1739, %v1899
  %v1901 = vpop.f32.mrf.mxu0
  %v1902 = vpop.f32.mrf.mxu0
  %v1903 = vadd.f32 %v1742, %v1902
  %v1904 = vpop.f32.mrf.mxu0
  %1905 = vmatprep.mubr.bf16.mxu0 %v757
  %1906 = vmatmul.mubr.bf16.gmra.mxu0 %v756
  %v1907 = vpop.f32.mrf.mxu0
  %v1908 = vadd.f32 %v1747, %v1907
  %v1909 = vpop.f32.mrf.mxu0
  %v1910 = vpop.f32.mrf.mxu0
  %v1911 = vadd.f32 %v1750, %v1910
  %v1912 = vpop.f32.mrf.mxu0
  %1913 = vmatprep.mubr.bf16.mxu0 %v765
  %1914 = vmatmul.mubr.bf16.gmra.mxu0 %v764
  %v1915 = vpop.f32.mrf.mxu0
  %v1916 = vadd.f32 %v1755, %v1915
  %v1917 = vpop.f32.mrf.mxu0
  %v1918 = vpop.f32.mrf.mxu0
  %v1919 = vadd.f32 %v1758, %v1918
  %v1920 = vpop.f32.mrf.mxu0
  %1921 = vmatprep.mubr.bf16.mxu0 %v773
  %1922 = vmatmul.mubr.bf16.gmra.mxu0 %v772
  %v1923 = vpop.f32.mrf.mxu0
  %v1924 = vadd.f32 %v1763, %v1923
  %v1925 = vpop.f32.mrf.mxu0
  %v1926 = vpop.f32.mrf.mxu0
  %v1927 = vadd.f32 %v1766, %v1926
  %v1928 = vpop.f32.mrf.mxu0
  %1929 = vmatprep.mubr.bf16.mxu0 %v781
  %1930 = vmatmul.mubr.bf16.gmra.mxu0 %v780
  %v1931 = vpop.f32.mrf.mxu0
  %v1932 = vadd.f32 %v1771, %v1931
  %v1933 = vpop.f32.mrf.mxu0
  %v1934 = vpop.f32.mrf.mxu0
  %v1935 = vadd.f32 %v1774, %v1934
  %v1936 = vpop.f32.mrf.mxu0
  %1937 = vmatprep.mubr.bf16.mxu0 %v789
  %1938 = vmatmul.mubr.bf16.gmra.mxu0 %v788
  %v1939 = vpop.f32.mrf.mxu0
  %v1940 = vadd.f32 %v1779, %v1939
  %v1941 = vpop.f32.mrf.mxu0
  %v1942 = vpop.f32.mrf.mxu0
  %v1943 = vadd.f32 %v1782, %v1942
  %v1944 = vpop.f32.mrf.mxu0
  %1945 = vdwg.mxu0
  %v1946 = vmul.f32 %v1820, 0.2
  %v1947 = vmul.f32 %v1823, 0.2
  %v1948 = vmul.f32 %v1828, 0.2
  %v1949 = vmul.f32 %v1831, 0.2
  %v1950 = vmul.f32 %v1836, 0.2
  %v1951 = vmul.f32 %v1839, 0.2
  %v1952 = vmul.f32 %v1844, 0.2
  %v1953 = vmul.f32 %v1847, 0.2
  %v1954 = vmul.f32 %v1852, 0.2
  %v1955 = vmul.f32 %v1855, 0.2
  %v1956 = vmul.f32 %v1860, 0.2
  %v1957 = vmul.f32 %v1863, 0.2
  %v1958 = vmul.f32 %v1868, 0.2
  %v1959 = vmul.f32 %v1871, 0.2
  %v1960 = vmul.f32 %v1876, 0.2
  %v1961 = vmul.f32 %v1879, 0.2
  %v1962 = vmul.f32 %v1884, 0.2
  %v1963 = vmul.f32 %v1887, 0.2
  %v1964 = vmul.f32 %v1892, 0.2
  %v1965 = vmul.f32 %v1895, 0.2
  %v1966 = vmul.f32 %v1900, 0.2
  %v1967 = vmul.f32 %v1903, 0.2
  %v1968 = vmul.f32 %v1908, 0.2
  %v1969 = vmul.f32 %v1911, 0.2
  %v1970 = vmul.f32 %v1916, 0.2
  %v1971 = vmul.f32 %v1919, 0.2
  %v1972 = vmul.f32 %v1924, 0.2
  %v1973 = vmul.f32 %v1927, 0.2
  %v1974 = vmul.f32 %v1932, 0.2
  %v1975 = vmul.f32 %v1935, 0.2
  %v1976 = vmul.f32 %v1940, 0.2
  %v1977 = vmul.f32 %v1943, 0.2
  %v1978 = vmax.f32 %v1820, %v1946
  %v1979 = vmax.f32 %v1823, %v1947
  %v1980 = vmax.f32 %v1828, %v1948
  %v1981 = vmax.f32 %v1831, %v1949
  %v1982 = vmax.f32 %v1836, %v1950
  %v1983 = vmax.f32 %v1839, %v1951
  %v1984 = vmax.f32 %v1844, %v1952
  %v1985 = vmax.f32 %v1847, %v1953
  %v1986 = vmax.f32 %v1852, %v1954
  %v1987 = vmax.f32 %v1855, %v1955
  %v1988 = vmax.f32 %v1860, %v1956
  %v1989 = vmax.f32 %v1863, %v1957
  %v1990 = vmax.f32 %v1868, %v1958
  %v1991 = vmax.f32 %v1871, %v1959
  %v1992 = vmax.f32 %v1876, %v1960
  %v1993 = vmax.f32 %v1879, %v1961
  %v1994 = vmax.f32 %v1884, %v1962
  %v1995 = vmax.f32 %v1887, %v1963
  %v1996 = vmax.f32 %v1892, %v1964
  %v1997 = vmax.f32 %v1895, %v1965
  %v1998 = vmax.f32 %v1900, %v1966
  %v1999 = vmax.f32 %v1903, %v1967
  %v2000 = vmax.f32 %v1908, %v1968
  %v2001 = vmax.f32 %v1911, %v1969
  %v2002 = vmax.f32 %v1916, %v1970
  %v2003 = vmax.f32 %v1919, %v1971
  %v2004 = vmax.f32 %v1924, %v1972
  %v2005 = vmax.f32 %v1927, %v1973
  %v2006 = vmax.f32 %v1932, %v1974
  %v2007 = vmax.f32 %v1935, %v1975
  %v2008 = vmax.f32 %v1940, %v1976
  %v2009 = vmax.f32 %v1943, %v1977
  %v2010 = vpack.c.bf16 %v1979, %v1978
  %v2011 = vpack.c.bf16 %v1981, %v1980
  %v2012 = vpack.c.bf16 %v1983, %v1982
  %v2013 = vpack.c.bf16 %v1985, %v1984
  %v2014 = vpack.c.bf16 %v1987, %v1986
  %v2015 = vpack.c.bf16 %v1989, %v1988
  %v2016 = vpack.c.bf16 %v1991, %v1990
  %v2017 = vpack.c.bf16 %v1993, %v1992
  %v2018 = vpack.c.bf16 %v1995, %v1994
  %v2019 = vpack.c.bf16 %v1997, %v1996
  %v2020 = vpack.c.bf16 %v1999, %v1998
  %v2021 = vpack.c.bf16 %v2001, %v2000
  %v2022 = vpack.c.bf16 %v2003, %v2002
  %v2023 = vpack.c.bf16 %v2005, %v2004
  %v2024 = vpack.c.bf16 %v2007, %v2006
  %v2025 = vpack.c.bf16 %v2009, %v2008
  %v2042 = vunpack.c.l.b16 %v2010
  %v2043 = vunpack.c.h.b16 %v2010
  %v2044 = vunpack.c.l.b16 %v2011
  %v2045 = vunpack.c.h.b16 %v2011
  %v2046 = vunpack.c.l.b16 %v2012
  %v2047 = vunpack.c.h.b16 %v2012
  %v2048 = vunpack.c.l.b16 %v2013
  %v2049 = vunpack.c.h.b16 %v2013
  %v2050 = vunpack.c.l.b16 %v2014
  %v2051 = vunpack.c.h.b16 %v2014
  %v2052 = vunpack.c.l.b16 %v2015
  %v2053 = vunpack.c.h.b16 %v2015
  %v2054 = vunpack.c.l.b16 %v2016
  %v2055 = vunpack.c.h.b16 %v2016
  %v2056 = vunpack.c.l.b16 %v2017
  %v2057 = vunpack.c.h.b16 %v2017
  %v2058 = vunpack.c.l.b16 %v2018
  %v2059 = vunpack.c.h.b16 %v2018
  %v2060 = vunpack.c.l.b16 %v2019
  %v2061 = vunpack.c.h.b16 %v2019
  %v2062 = vunpack.c.l.b16 %v2020
  %v2063 = vunpack.c.h.b16 %v2020
  %v2064 = vunpack.c.l.b16 %v2021
  %v2065 = vunpack.c.h.b16 %v2021
  %v2066 = vunpack.c.l.b16 %v2022
  %v2067 = vunpack.c.h.b16 %v2022
  %v2068 = vunpack.c.l.b16 %v2023
  %v2069 = vunpack.c.h.b16 %v2023
  %v2070 = vunpack.c.l.b16 %v2024
  %v2071 = vunpack.c.h.b16 %v2024
  %v2072 = vunpack.c.l.b16 %v2025
  %v2073 = vunpack.c.h.b16 %v2025
  %v2074 = vpack.c.b16 %v2042, %v2042
  %v2075 = vpack.c.b16 %v2043, %v2043
  %v2076 = vpack.c.b16 %v2044, %v2044
  %v2077 = vpack.c.b16 %v2045, %v2045
  %v2078 = vpack.c.b16 %v2046, %v2046
  %v2079 = vpack.c.b16 %v2047, %v2047
  %v2080 = vpack.c.b16 %v2048, %v2048
  %v2081 = vpack.c.b16 %v2049, %v2049
  %v2082 = vpack.c.b16 %v2050, %v2050
  %v2083 = vpack.c.b16 %v2051, %v2051
  %v2084 = vpack.c.b16 %v2052, %v2052
  %v2085 = vpack.c.b16 %v2053, %v2053
  %v2086 = vpack.c.b16 %v2054, %v2054
  %v2087 = vpack.c.b16 %v2055, %v2055
  %v2088 = vpack.c.b16 %v2056, %v2056
  %v2089 = vpack.c.b16 %v2057, %v2057
  %v2090 = vpack.c.b16 %v2058, %v2058
  %v2091 = vpack.c.b16 %v2059, %v2059
  %v2092 = vpack.c.b16 %v2060, %v2060
  %v2093 = vpack.c.b16 %v2061, %v2061
  %v2094 = vpack.c.b16 %v2062, %v2062
  %v2095 = vpack.c.b16 %v2063, %v2063
  %v2096 = vpack.c.b16 %v2064, %v2064
  %v2097 = vpack.c.b16 %v2065, %v2065
  %v2098 = vpack.c.b16 %v2066, %v2066
  %v2099 = vpack.c.b16 %v2067, %v2067
  %v2100 = vpack.c.b16 %v2068, %v2068
  %v2101 = vpack.c.b16 %v2069, %v2069
  %v2102 = vpack.c.b16 %v2070, %v2070
  %v2103 = vpack.c.b16 %v2071, %v2071
  %v2104 = vpack.c.b16 %v2072, %v2072
  %v2105 = vpack.c.b16 %v2073, %v2073
  %2138 = vst [vmem:[%s3] sm:$0xf] %v2074
  %2139 = vst [vmem:[%s3 + $0x4] sm:$0xf] %v2075
  %2140 = vst [vmem:[%s3 + $0x8] sm:$0xf] %v2076
  %2141 = vst [vmem:[%s3 + $0xc] sm:$0xf] %v2077
  %2142 = vst [vmem:[%s3 + $0x10] sm:$0xf] %v2078
  %2143 = vst [vmem:[%s3 + $0x14] sm:$0xf] %v2079
  %2144 = vst [vmem:[%s3 + $0x18] sm:$0xf] %v2080
  %2145 = vst [vmem:[%s3 + $0x1c] sm:$0xf] %v2081
  %2146 = vst [vmem:[%s3 + $0x20] sm:$0xf] %v2082
  %2147 = vst [vmem:[%s3 + $0x24] sm:$0xf] %v2083
  %2148 = vst [vmem:[%s3 + $0x28] sm:$0xf] %v2084
  %2149 = vst [vmem:[%s3 + $0x2c] sm:$0xf] %v2085
  %2150 = vst [vmem:[%s3 + $0x30] sm:$0xf] %v2086
  %2151 = vst [vmem:[%s3 + $0x34] sm:$0xf] %v2087
  %2152 = vst [vmem:[%s3 + $0x38] sm:$0xf] %v2088
  %2153 = vst [vmem:[%s3 + $0x3c] sm:$0xf] %v2089
  %2154 = vst [vmem:[%s3 + $0x40] sm:$0xf] %v2090
  %2155 = vst [vmem:[%s3 + $0x44] sm:$0xf] %v2091
  %2156 = vst [vmem:[%s3 + $0x48] sm:$0xf] %v2092
  %2157 = vst [vmem:[%s3 + $0x4c] sm:$0xf] %v2093
  %2158 = vst [vmem:[%s3 + $0x50] sm:$0xf] %v2094
  %2159 = vst [vmem:[%s3 + $0x54] sm:$0xf] %v2095
  %2160 = vst [vmem:[%s3 + $0x58] sm:$0xf] %v2096
  %2161 = vst [vmem:[%s3 + $0x5c] sm:$0xf] %v2097
  %2162 = vst [vmem:[%s3 + $0x60] sm:$0xf] %v2098
  %2163 = vst [vmem:[%s3 + $0x64] sm:$0xf] %v2099
  %2164 = vst [vmem:[%s3 + $0x68] sm:$0xf] %v2100
  %2165 = vst [vmem:[%s3 + $0x6c] sm:$0xf] %v2101
  %2166 = vst [vmem:[%s3 + $0x70] sm:$0xf] %v2102
  %2167 = vst [vmem:[%s3 + $0x74] sm:$0xf] %v2103
  %2168 = vst [vmem:[%s3 + $0x78] sm:$0xf] %v2104
  %2169 = vst [vmem:[%s3 + $0x7c] sm:$0xf] %v2105
  // Predicated region
  $region14: #{discriminator_forward.5} parent=0 // pred_check
    _
  $region15: #{discriminator_forward.5} parent=0 // pred_check_branch
    %2171 = sbr.rel (0) target = $region17
  $region16: #{discriminator_forward.5} parent=0 // pred_region
    _
  $region17: #{discriminator_forward.5} parent=0 // pred_fallthru
    _
  // Predicated region
  $region18: #{discriminator_forward.5} parent=0 // pred_check
    _
  $region19: #{discriminator_forward.5} parent=0 // pred_check_branch
    %2173 = sbr.rel (0) target = $region21
  $region20: #{discriminator_forward.5} parent=0 // pred_region
    _
  $region21: #{discriminator_forward.5} parent=0 // pred_fallthru
    _

// kernel: discriminator_forward.6
$region0: #{discriminator_forward.6}
  #allocation0 [shape = 'u32[]', space=smem, size = 0x4, offset = 0x4, fixed_abs, tag = 'smem constant byte address 0x4 - core index']
  #allocation1 [shape = 'u32[144,128]{1,0:T(1,128)}', space=vmem, size = 0x12000, scoped, tag = 'internal scratch']
  %s0 = inlined_call_operand.vmem [shape: bf16[128,1024], index: 0, kind: input, shape index: {}]
  %s1 = inlined_call_operand.vmem [shape: bf16[1024,128], index: 1, kind: input, shape index: {}]
  %s2 = inlined_call_operand.vmem [shape: f32[1,128], index: 2, kind: input, shape index: {}]
  %s3 = inlined_call_operand.vmem [shape: bf16[128,128], index: 3, kind: output, shape index: {}]
  %s4 = sld [smem:[#allocation0]]
  $region22: #{discriminator_forward.6} parent=0
    _
  %s6 = ssub.s32 1, %s4
  %s7 = scalar_select 0, %s6, %s4
  // Predicated region
  $region2: #{discriminator_forward.6} parent=0 // pred_check
    _
  $region3: #{discriminator_forward.6} parent=0 // pred_check_branch
    %9 = sbr.rel (0) target = $region5
  $region4: #{discriminator_forward.6} parent=0 // pred_region
    _
  $region5: #{discriminator_forward.6} parent=0 // pred_fallthru
    _
  // Predicated region
  $region6: #{discriminator_forward.6} parent=0 // pred_check
    _
  $region7: #{discriminator_forward.6} parent=0 // pred_check_branch
    %11 = sbr.rel (0) target = $region9
  $region8: #{discriminator_forward.6} parent=0 // pred_region
    _
  $region9: #{discriminator_forward.6} parent=0 // pred_fallthru
    _
  // Predicated region
  $region10: #{discriminator_forward.6} parent=0 // pred_check
    _
  $region11: #{discriminator_forward.6} parent=0 // pred_check_branch
    %13 = sbr.rel (0) target = $region13
  $region12: #{discriminator_forward.6} parent=0 // pred_region
    _
  $region13: #{discriminator_forward.6} parent=0 // pred_fallthru
    _
  %v15 = vld [vmem:[%s0] sm:$0xff]
  %v16 = vld [vmem:[%s0 + $0x8] sm:$0xff]
  %v17 = vld [vmem:[%s0 + $0x10] sm:$0xff]
  %v18 = vld [vmem:[%s0 + $0x18] sm:$0xff]
  %v19 = vld [vmem:[%s0 + $0x20] sm:$0xff]
  %v20 = vld [vmem:[%s0 + $0x28] sm:$0xff]
  %v21 = vld [vmem:[%s0 + $0x30] sm:$0xff]
  %v22 = vld [vmem:[%s0 + $0x38] sm:$0xff]
  %v23 = vld [vmem:[%s0 + $0x40] sm:$0xff]
  %v24 = vld [vmem:[%s0 + $0x48] sm:$0xff]
  %v25 = vld [vmem:[%s0 + $0x50] sm:$0xff]
  %v26 = vld [vmem:[%s0 + $0x58] sm:$0xff]
  %v27 = vld [vmem:[%s0 + $0x60] sm:$0xff]
  %v28 = vld [vmem:[%s0 + $0x68] sm:$0xff]
  %v29 = vld [vmem:[%s0 + $0x70] sm:$0xff]
  %v30 = vld [vmem:[%s0 + $0x78] sm:$0xff]
  %v31 = vld [vmem:[%s0 + $0x80] sm:$0xff]
  %v32 = vld [vmem:[%s0 + $0x88] sm:$0xff]
  %v33 = vld [vmem:[%s0 + $0x90] sm:$0xff]
  %v34 = vld [vmem:[%s0 + $0x98] sm:$0xff]
  %v35 = vld [vmem:[%s0 + $0xa0] sm:$0xff]
  %v36 = vld [vmem:[%s0 + $0xa8] sm:$0xff]
  %v37 = vld [vmem:[%s0 + $0xb0] sm:$0xff]
  %v38 = vld [vmem:[%s0 + $0xb8] sm:$0xff]
  %v39 = vld [vmem:[%s0 + $0xc0] sm:$0xff]
  %v40 = vld [vmem:[%s0 + $0xc8] sm:$0xff]
  %v41 = vld [vmem:[%s0 + $0xd0] sm:$0xff]
  %v42 = vld [vmem:[%s0 + $0xd8] sm:$0xff]
  %v43 = vld [vmem:[%s0 + $0xe0] sm:$0xff]
  %v44 = vld [vmem:[%s0 + $0xe8] sm:$0xff]
  %v45 = vld [vmem:[%s0 + $0xf0] sm:$0xff]
  %v46 = vld [vmem:[%s0 + $0xf8] sm:$0xff]
  %v47 = vld [vmem:[%s0 + $0x100] sm:$0xff]
  %v48 = vld [vmem:[%s0 + $0x108] sm:$0xff]
  %v49 = vld [vmem:[%s0 + $0x110] sm:$0xff]
  %v50 = vld [vmem:[%s0 + $0x118] sm:$0xff]
  %v51 = vld [vmem:[%s0 + $0x120] sm:$0xff]
  %v52 = vld [vmem:[%s0 + $0x128] sm:$0xff]
  %v53 = vld [vmem:[%s0 + $0x130] sm:$0xff]
  %v54 = vld [vmem:[%s0 + $0x138] sm:$0xff]
  %v55 = vld [vmem:[%s0 + $0x140] sm:$0xff]
  %v56 = vld [vmem:[%s0 + $0x148] sm:$0xff]
  %v57 = vld [vmem:[%s0 + $0x150] sm:$0xff]
  %v58 = vld [vmem:[%s0 + $0x158] sm:$0xff]
  %v59 = vld [vmem:[%s0 + $0x160] sm:$0xff]
  %v60 = vld [vmem:[%s0 + $0x168] sm:$0xff]
  %v61 = vld [vmem:[%s0 + $0x170] sm:$0xff]
  %v62 = vld [vmem:[%s0 + $0x178] sm:$0xff]
  %v63 = vld [vmem:[%s0 + $0x180] sm:$0xff]
  %v64 = vld [vmem:[%s0 + $0x188] sm:$0xff]
  %v65 = vld [vmem:[%s0 + $0x190] sm:$0xff]
  %v66 = vld [vmem:[%s0 + $0x198] sm:$0xff]
  %v67 = vld [vmem:[%s0 + $0x1a0] sm:$0xff]
  %v68 = vld [vmem:[%s0 + $0x1a8] sm:$0xff]
  %v69 = vld [vmem:[%s0 + $0x1b0] sm:$0xff]
  %v70 = vld [vmem:[%s0 + $0x1b8] sm:$0xff]
  %v71 = vld [vmem:[%s0 + $0x1c0] sm:$0xff]
  %v72 = vld [vmem:[%s0 + $0x1c8] sm:$0xff]
  %v73 = vld [vmem:[%s0 + $0x1d0] sm:$0xff]
  %v74 = vld [vmem:[%s0 + $0x1d8] sm:$0xff]
  %v75 = vld [vmem:[%s0 + $0x1e0] sm:$0xff]
  %v76 = vld [vmem:[%s0 + $0x1e8] sm:$0xff]
  %v77 = vld [vmem:[%s0 + $0x1f0] sm:$0xff]
  %v78 = vld [vmem:[%s0 + $0x1f8] sm:$0xff]
  %v79 = vld [vmem:[%s1] sm:$0xf]
  %v80 = vld [vmem:[%s1 + $0x4] sm:$0xf]
  %v81 = vld [vmem:[%s1 + $0x8] sm:$0xf]
  %v82 = vld [vmem:[%s1 + $0xc] sm:$0xf]
  %v83 = vld [vmem:[%s1 + $0x10] sm:$0xf]
  %v84 = vld [vmem:[%s1 + $0x14] sm:$0xf]
  %v85 = vld [vmem:[%s1 + $0x18] sm:$0xf]
  %v86 = vld [vmem:[%s1 + $0x1c] sm:$0xf]
  %v87 = vld [vmem:[%s1 + $0x20] sm:$0xf]
  %v88 = vld [vmem:[%s1 + $0x24] sm:$0xf]
  %v89 = vld [vmem:[%s1 + $0x28] sm:$0xf]
  %v90 = vld [vmem:[%s1 + $0x2c] sm:$0xf]
  %v91 = vld [vmem:[%s1 + $0x30] sm:$0xf]
  %v92 = vld [vmem:[%s1 + $0x34] sm:$0xf]
  %v93 = vld [vmem:[%s1 + $0x38] sm:$0xf]
  %v94 = vld [vmem:[%s1 + $0x3c] sm:$0xf]
  %v95 = vld [vmem:[%s1 + $0x40] sm:$0xf]
  %v96 = vld [vmem:[%s1 + $0x44] sm:$0xf]
  %v97 = vld [vmem:[%s1 + $0x48] sm:$0xf]
  %v98 = vld [vmem:[%s1 + $0x4c] sm:$0xf]
  %v99 = vld [vmem:[%s1 + $0x50] sm:$0xf]
  %v100 = vld [vmem:[%s1 + $0x54] sm:$0xf]
  %v101 = vld [vmem:[%s1 + $0x58] sm:$0xf]
  %v102 = vld [vmem:[%s1 + $0x5c] sm:$0xf]
  %v103 = vld [vmem:[%s1 + $0x60] sm:$0xf]
  %v104 = vld [vmem:[%s1 + $0x64] sm:$0xf]
  %v105 = vld [vmem:[%s1 + $0x68] sm:$0xf]
  %v106 = vld [vmem:[%s1 + $0x6c] sm:$0xf]
  %v107 = vld [vmem:[%s1 + $0x70] sm:$0xf]
  %v108 = vld [vmem:[%s1 + $0x74] sm:$0xf]
  %v109 = vld [vmem:[%s1 + $0x78] sm:$0xf]
  %v110 = vld [vmem:[%s1 + $0x7c] sm:$0xf]
  %v111 = vld [vmem:[%s1 + $0x80] sm:$0xf]
  %v112 = vld [vmem:[%s1 + $0x84] sm:$0xf]
  %v113 = vld [vmem:[%s1 + $0x88] sm:$0xf]
  %v114 = vld [vmem:[%s1 + $0x8c] sm:$0xf]
  %v115 = vld [vmem:[%s1 + $0x90] sm:$0xf]
  %v116 = vld [vmem:[%s1 + $0x94] sm:$0xf]
  %v117 = vld [vmem:[%s1 + $0x98] sm:$0xf]
  %v118 = vld [vmem:[%s1 + $0x9c] sm:$0xf]
  %v119 = vld [vmem:[%s1 + $0xa0] sm:$0xf]
  %v120 = vld [vmem:[%s1 + $0xa4] sm:$0xf]
  %v121 = vld [vmem:[%s1 + $0xa8] sm:$0xf]
  %v122 = vld [vmem:[%s1 + $0xac] sm:$0xf]
  %v123 = vld [vmem:[%s1 + $0xb0] sm:$0xf]
  %v124 = vld [vmem:[%s1 + $0xb4] sm:$0xf]
  %v125 = vld [vmem:[%s1 + $0xb8] sm:$0xf]
  %v126 = vld [vmem:[%s1 + $0xbc] sm:$0xf]
  %v127 = vld [vmem:[%s1 + $0xc0] sm:$0xf]
  %v128 = vld [vmem:[%s1 + $0xc4] sm:$0xf]
  %v129 = vld [vmem:[%s1 + $0xc8] sm:$0xf]
  %v130 = vld [vmem:[%s1 + $0xcc] sm:$0xf]
  %v131 = vld [vmem:[%s1 + $0xd0] sm:$0xf]
  %v132 = vld [vmem:[%s1 + $0xd4] sm:$0xf]
  %v133 = vld [vmem:[%s1 + $0xd8] sm:$0xf]
  %v134 = vld [vmem:[%s1 + $0xdc] sm:$0xf]
  %v135 = vld [vmem:[%s1 + $0xe0] sm:$0xf]
  %v136 = vld [vmem:[%s1 + $0xe4] sm:$0xf]
  %v137 = vld [vmem:[%s1 + $0xe8] sm:$0xf]
  %v138 = vld [vmem:[%s1 + $0xec] sm:$0xf]
  %v139 = vld [vmem:[%s1 + $0xf0] sm:$0xf]
  %v140 = vld [vmem:[%s1 + $0xf4] sm:$0xf]
  %v141 = vld [vmem:[%s1 + $0xf8] sm:$0xf]
  %v142 = vld [vmem:[%s1 + $0xfc] sm:$0xf]
  %v143 = vld [vmem:[%s1 + $0x100] sm:$0xf]
  %v144 = vld [vmem:[%s1 + $0x104] sm:$0xf]
  %v145 = vld [vmem:[%s1 + $0x108] sm:$0xf]
  %v146 = vld [vmem:[%s1 + $0x10c] sm:$0xf]
  %v147 = vld [vmem:[%s1 + $0x110] sm:$0xf]
  %v148 = vld [vmem:[%s1 + $0x114] sm:$0xf]
  %v149 = vld [vmem:[%s1 + $0x118] sm:$0xf]
  %v150 = vld [vmem:[%s1 + $0x11c] sm:$0xf]
  %v151 = vld [vmem:[%s1 + $0x120] sm:$0xf]
  %v152 = vld [vmem:[%s1 + $0x124] sm:$0xf]
  %v153 = vld [vmem:[%s1 + $0x128] sm:$0xf]
  %v154 = vld [vmem:[%s1 + $0x12c] sm:$0xf]
  %v155 = vld [vmem:[%s1 + $0x130] sm:$0xf]
  %v156 = vld [vmem:[%s1 + $0x134] sm:$0xf]
  %v157 = vld [vmem:[%s1 + $0x138] sm:$0xf]
  %v158 = vld [vmem:[%s1 + $0x13c] sm:$0xf]
  %v159 = vld [vmem:[%s1 + $0x140] sm:$0xf]
  %v160 = vld [vmem:[%s1 + $0x144] sm:$0xf]
  %v161 = vld [vmem:[%s1 + $0x148] sm:$0xf]
  %v162 = vld [vmem:[%s1 + $0x14c] sm:$0xf]
  %v163 = vld [vmem:[%s1 + $0x150] sm:$0xf]
  %v164 = vld [vmem:[%s1 + $0x154] sm:$0xf]
  %v165 = vld [vmem:[%s1 + $0x158] sm:$0xf]
  %v166 = vld [vmem:[%s1 + $0x15c] sm:$0xf]
  %v167 = vld [vmem:[%s1 + $0x160] sm:$0xf]
  %v168 = vld [vmem:[%s1 + $0x164] sm:$0xf]
  %v169 = vld [vmem:[%s1 + $0x168] sm:$0xf]
  %v170 = vld [vmem:[%s1 + $0x16c] sm:$0xf]
  %v171 = vld [vmem:[%s1 + $0x170] sm:$0xf]
  %v172 = vld [vmem:[%s1 + $0x174] sm:$0xf]
  %v173 = vld [vmem:[%s1 + $0x178] sm:$0xf]
  %v174 = vld [vmem:[%s1 + $0x17c] sm:$0xf]
  %v175 = vld [vmem:[%s1 + $0x180] sm:$0xf]
  %v176 = vld [vmem:[%s1 + $0x184] sm:$0xf]
  %v177 = vld [vmem:[%s1 + $0x188] sm:$0xf]
  %v178 = vld [vmem:[%s1 + $0x18c] sm:$0xf]
  %v179 = vld [vmem:[%s1 + $0x190] sm:$0xf]
  %v180 = vld [vmem:[%s1 + $0x194] sm:$0xf]
  %v181 = vld [vmem:[%s1 + $0x198] sm:$0xf]
  %v182 = vld [vmem:[%s1 + $0x19c] sm:$0xf]
  %v183 = vld [vmem:[%s1 + $0x1a0] sm:$0xf]
  %v184 = vld [vmem:[%s1 + $0x1a4] sm:$0xf]
  %v185 = vld [vmem:[%s1 + $0x1a8] sm:$0xf]
  %v186 = vld [vmem:[%s1 + $0x1ac] sm:$0xf]
  %v187 = vld [vmem:[%s1 + $0x1b0] sm:$0xf]
  %v188 = vld [vmem:[%s1 + $0x1b4] sm:$0xf]
  %v189 = vld [vmem:[%s1 + $0x1b8] sm:$0xf]
  %v190 = vld [vmem:[%s1 + $0x1bc] sm:$0xf]
  %v191 = vld [vmem:[%s1 + $0x1c0] sm:$0xf]
  %v192 = vld [vmem:[%s1 + $0x1c4] sm:$0xf]
  %v193 = vld [vmem:[%s1 + $0x1c8] sm:$0xf]
  %v194 = vld [vmem:[%s1 + $0x1cc] sm:$0xf]
  %v195 = vld [vmem:[%s1 + $0x1d0] sm:$0xf]
  %v196 = vld [vmem:[%s1 + $0x1d4] sm:$0xf]
  %v197 = vld [vmem:[%s1 + $0x1d8] sm:$0xf]
  %v198 = vld [vmem:[%s1 + $0x1dc] sm:$0xf]
  %v199 = vld [vmem:[%s1 + $0x1e0] sm:$0xf]
  %v200 = vld [vmem:[%s1 + $0x1e4] sm:$0xf]
  %v201 = vld [vmem:[%s1 + $0x1e8] sm:$0xf]
  %v202 = vld [vmem:[%s1 + $0x1ec] sm:$0xf]
  %v203 = vld [vmem:[%s1 + $0x1f0] sm:$0xf]
  %v204 = vld [vmem:[%s1 + $0x1f4] sm:$0xf]
  %v205 = vld [vmem:[%s1 + $0x1f8] sm:$0xf]
  %v206 = vld [vmem:[%s1 + $0x1fc] sm:$0xf]
  %v207 = vld [vmem:[%s2] sm:$0x1]
  %v209 = vlaneseq
  %v210 = vshrl.u32 %v209, 7
  %v211 = vsub.s32 0, %v210
  %v212 = vrot.slane %v207, %v211
  %v278 = vunpack.c.l.b16 %v15
  %v279 = vunpack.c.h.b16 %v15
  %v280 = vunpack.c.l.b16 %v16
  %v281 = vunpack.c.h.b16 %v16
  %v282 = vunpack.c.l.b16 %v17
  %v283 = vunpack.c.h.b16 %v17
  %v284 = vunpack.c.l.b16 %v18
  %v285 = vunpack.c.h.b16 %v18
  %v286 = vunpack.c.l.b16 %v19
  %v287 = vunpack.c.h.b16 %v19
  %v288 = vunpack.c.l.b16 %v20
  %v289 = vunpack.c.h.b16 %v20
  %v290 = vunpack.c.l.b16 %v21
  %v291 = vunpack.c.h.b16 %v21
  %v292 = vunpack.c.l.b16 %v22
  %v293 = vunpack.c.h.b16 %v22
  %v294 = vunpack.c.l.b16 %v23
  %v295 = vunpack.c.h.b16 %v23
  %v296 = vunpack.c.l.b16 %v24
  %v297 = vunpack.c.h.b16 %v24
  %v298 = vunpack.c.l.b16 %v25
  %v299 = vunpack.c.h.b16 %v25
  %v300 = vunpack.c.l.b16 %v26
  %v301 = vunpack.c.h.b16 %v26
  %v302 = vunpack.c.l.b16 %v27
  %v303 = vunpack.c.h.b16 %v27
  %v304 = vunpack.c.l.b16 %v28
  %v305 = vunpack.c.h.b16 %v28
  %v306 = vunpack.c.l.b16 %v29
  %v307 = vunpack.c.h.b16 %v29
  %v308 = vunpack.c.l.b16 %v30
  %v309 = vunpack.c.h.b16 %v30
  %v310 = vunpack.c.l.b16 %v31
  %v311 = vunpack.c.h.b16 %v31
  %v312 = vunpack.c.l.b16 %v32
  %v313 = vunpack.c.h.b16 %v32
  %v314 = vunpack.c.l.b16 %v33
  %v315 = vunpack.c.h.b16 %v33
  %v316 = vunpack.c.l.b16 %v34
  %v317 = vunpack.c.h.b16 %v34
  %v318 = vunpack.c.l.b16 %v35
  %v319 = vunpack.c.h.b16 %v35
  %v320 = vunpack.c.l.b16 %v36
  %v321 = vunpack.c.h.b16 %v36
  %v322 = vunpack.c.l.b16 %v37
  %v323 = vunpack.c.h.b16 %v37
  %v324 = vunpack.c.l.b16 %v38
  %v325 = vunpack.c.h.b16 %v38
  %v326 = vunpack.c.l.b16 %v39
  %v327 = vunpack.c.h.b16 %v39
  %v328 = vunpack.c.l.b16 %v40
  %v329 = vunpack.c.h.b16 %v40
  %v330 = vunpack.c.l.b16 %v41
  %v331 = vunpack.c.h.b16 %v41
  %v332 = vunpack.c.l.b16 %v42
  %v333 = vunpack.c.h.b16 %v42
  %v334 = vunpack.c.l.b16 %v43
  %v335 = vunpack.c.h.b16 %v43
  %v336 = vunpack.c.l.b16 %v44
  %v337 = vunpack.c.h.b16 %v44
  %v338 = vunpack.c.l.b16 %v45
  %v339 = vunpack.c.h.b16 %v45
  %v340 = vunpack.c.l.b16 %v46
  %v341 = vunpack.c.h.b16 %v46
  %v342 = vunpack.c.l.b16 %v47
  %v343 = vunpack.c.h.b16 %v47
  %v344 = vunpack.c.l.b16 %v48
  %v345 = vunpack.c.h.b16 %v48
  %v346 = vunpack.c.l.b16 %v49
  %v347 = vunpack.c.h.b16 %v49
  %v348 = vunpack.c.l.b16 %v50
  %v349 = vunpack.c.h.b16 %v50
  %v350 = vunpack.c.l.b16 %v51
  %v351 = vunpack.c.h.b16 %v51
  %v352 = vunpack.c.l.b16 %v52
  %v353 = vunpack.c.h.b16 %v52
  %v354 = vunpack.c.l.b16 %v53
  %v355 = vunpack.c.h.b16 %v53
  %v356 = vunpack.c.l.b16 %v54
  %v357 = vunpack.c.h.b16 %v54
  %v358 = vunpack.c.l.b16 %v55
  %v359 = vunpack.c.h.b16 %v55
  %v360 = vunpack.c.l.b16 %v56
  %v361 = vunpack.c.h.b16 %v56
  %v362 = vunpack.c.l.b16 %v57
  %v363 = vunpack.c.h.b16 %v57
  %v364 = vunpack.c.l.b16 %v58
  %v365 = vunpack.c.h.b16 %v58
  %v366 = vunpack.c.l.b16 %v59
  %v367 = vunpack.c.h.b16 %v59
  %v368 = vunpack.c.l.b16 %v60
  %v369 = vunpack.c.h.b16 %v60
  %v370 = vunpack.c.l.b16 %v61
  %v371 = vunpack.c.h.b16 %v61
  %v372 = vunpack.c.l.b16 %v62
  %v373 = vunpack.c.h.b16 %v62
  %v374 = vunpack.c.l.b16 %v63
  %v375 = vunpack.c.h.b16 %v63
  %v376 = vunpack.c.l.b16 %v64
  %v377 = vunpack.c.h.b16 %v64
  %v378 = vunpack.c.l.b16 %v65
  %v379 = vunpack.c.h.b16 %v65
  %v380 = vunpack.c.l.b16 %v66
  %v381 = vunpack.c.h.b16 %v66
  %v382 = vunpack.c.l.b16 %v67
  %v383 = vunpack.c.h.b16 %v67
  %v384 = vunpack.c.l.b16 %v68
  %v385 = vunpack.c.h.b16 %v68
  %v386 = vunpack.c.l.b16 %v69
  %v387 = vunpack.c.h.b16 %v69
  %v388 = vunpack.c.l.b16 %v70
  %v389 = vunpack.c.h.b16 %v70
  %v390 = vunpack.c.l.b16 %v71
  %v391 = vunpack.c.h.b16 %v71
  %v392 = vunpack.c.l.b16 %v72
  %v393 = vunpack.c.h.b16 %v72
  %v394 = vunpack.c.l.b16 %v73
  %v395 = vunpack.c.h.b16 %v73
  %v396 = vunpack.c.l.b16 %v74
  %v397 = vunpack.c.h.b16 %v74
  %v398 = vunpack.c.l.b16 %v75
  %v399 = vunpack.c.h.b16 %v75
  %v400 = vunpack.c.l.b16 %v76
  %v401 = vunpack.c.h.b16 %v76
  %v402 = vunpack.c.l.b16 %v77
  %v403 = vunpack.c.h.b16 %v77
  %v404 = vunpack.c.l.b16 %v78
  %v405 = vunpack.c.h.b16 %v78
  %v406 = vpack.c.b16 %v286, %v278
  %v407 = vpack.c.b16 %v287, %v279
  %v408 = vpack.c.b16 %v288, %v280
  %v409 = vpack.c.b16 %v289, %v281
  %v410 = vpack.c.b16 %v290, %v282
  %v411 = vpack.c.b16 %v291, %v283
  %v412 = vpack.c.b16 %v292, %v284
  %v413 = vpack.c.b16 %v293, %v285
  %v414 = vpack.c.b16 %v302, %v294
  %v415 = vpack.c.b16 %v303, %v295
  %v416 = vpack.c.b16 %v304, %v296
  %v417 = vpack.c.b16 %v305, %v297
  %v418 = vpack.c.b16 %v306, %v298
  %v419 = vpack.c.b16 %v307, %v299
  %v420 = vpack.c.b16 %v308, %v300
  %v421 = vpack.c.b16 %v309, %v301
  %v422 = vpack.c.b16 %v318, %v310
  %v423 = vpack.c.b16 %v319, %v311
  %v424 = vpack.c.b16 %v320, %v312
  %v425 = vpack.c.b16 %v321, %v313
  %v426 = vpack.c.b16 %v322, %v314
  %v427 = vpack.c.b16 %v323, %v315
  %v428 = vpack.c.b16 %v324, %v316
  %v429 = vpack.c.b16 %v325, %v317
  %v430 = vpack.c.b16 %v334, %v326
  %v431 = vpack.c.b16 %v335, %v327
  %v432 = vpack.c.b16 %v336, %v328
  %v433 = vpack.c.b16 %v337, %v329
  %v434 = vpack.c.b16 %v338, %v330
  %v435 = vpack.c.b16 %v339, %v331
  %v436 = vpack.c.b16 %v340, %v332
  %v437 = vpack.c.b16 %v341, %v333
  %v438 = vpack.c.b16 %v350, %v342
  %v439 = vpack.c.b16 %v351, %v343
  %v440 = vpack.c.b16 %v352, %v344
  %v441 = vpack.c.b16 %v353, %v345
  %v442 = vpack.c.b16 %v354, %v346
  %v443 = vpack.c.b16 %v355, %v347
  %v444 = vpack.c.b16 %v356, %v348
  %v445 = vpack.c.b16 %v357, %v349
  %v446 = vpack.c.b16 %v366, %v358
  %v447 = vpack.c.b16 %v367, %v359
  %v448 = vpack.c.b16 %v368, %v360
  %v449 = vpack.c.b16 %v369, %v361
  %v450 = vpack.c.b16 %v370, %v362
  %v451 = vpack.c.b16 %v371, %v363
  %v452 = vpack.c.b16 %v372, %v364
  %v453 = vpack.c.b16 %v373, %v365
  %v454 = vpack.c.b16 %v382, %v374
  %v455 = vpack.c.b16 %v383, %v375
  %v456 = vpack.c.b16 %v384, %v376
  %v457 = vpack.c.b16 %v385, %v377
  %v458 = vpack.c.b16 %v386, %v378
  %v459 = vpack.c.b16 %v387, %v379
  %v460 = vpack.c.b16 %v388, %v380
  %v461 = vpack.c.b16 %v389, %v381
  %v462 = vpack.c.b16 %v398, %v390
  %v463 = vpack.c.b16 %v399, %v391
  %v464 = vpack.c.b16 %v400, %v392
  %v465 = vpack.c.b16 %v401, %v393
  %v466 = vpack.c.b16 %v402, %v394
  %v467 = vpack.c.b16 %v403, %v395
  %v468 = vpack.c.b16 %v404, %v396
  %v469 = vpack.c.b16 %v405, %v397
  %v662 = vunpack.c.l.b16 %v79
  %v663 = vunpack.c.l.b16 %v80
  %v664 = vunpack.c.l.b16 %v81
  %v665 = vunpack.c.l.b16 %v82
  %v666 = vunpack.c.l.b16 %v83
  %v667 = vunpack.c.l.b16 %v84
  %v668 = vunpack.c.l.b16 %v85
  %v669 = vunpack.c.l.b16 %v86
  %v670 = vunpack.c.l.b16 %v87
  %v671 = vunpack.c.l.b16 %v88
  %v672 = vunpack.c.l.b16 %v89
  %v673 = vunpack.c.l.b16 %v90
  %v674 = vunpack.c.l.b16 %v91
  %v675 = vunpack.c.l.b16 %v92
  %v676 = vunpack.c.l.b16 %v93
  %v677 = vunpack.c.l.b16 %v94
  %v678 = vunpack.c.l.b16 %v95
  %v679 = vunpack.c.l.b16 %v96
  %v680 = vunpack.c.l.b16 %v97
  %v681 = vunpack.c.l.b16 %v98
  %v682 = vunpack.c.l.b16 %v99
  %v683 = vunpack.c.l.b16 %v100
  %v684 = vunpack.c.l.b16 %v101
  %v685 = vunpack.c.l.b16 %v102
  %v686 = vunpack.c.l.b16 %v103
  %v687 = vunpack.c.l.b16 %v104
  %v688 = vunpack.c.l.b16 %v105
  %v689 = vunpack.c.l.b16 %v106
  %v690 = vunpack.c.l.b16 %v107
  %v691 = vunpack.c.l.b16 %v108
  %v692 = vunpack.c.l.b16 %v109
  %v693 = vunpack.c.l.b16 %v110
  %v694 = vunpack.c.l.b16 %v111
  %v695 = vunpack.c.l.b16 %v112
  %v696 = vunpack.c.l.b16 %v113
  %v697 = vunpack.c.l.b16 %v114
  %v698 = vunpack.c.l.b16 %v115
  %v699 = vunpack.c.l.b16 %v116
  %v700 = vunpack.c.l.b16 %v117
  %v701 = vunpack.c.l.b16 %v118
  %v702 = vunpack.c.l.b16 %v119
  %v703 = vunpack.c.l.b16 %v120
  %v704 = vunpack.c.l.b16 %v121
  %v705 = vunpack.c.l.b16 %v122
  %v706 = vunpack.c.l.b16 %v123
  %v707 = vunpack.c.l.b16 %v124
  %v708 = vunpack.c.l.b16 %v125
  %v709 = vunpack.c.l.b16 %v126
  %v710 = vunpack.c.l.b16 %v127
  %v711 = vunpack.c.l.b16 %v128
  %v712 = vunpack.c.l.b16 %v129
  %v713 = vunpack.c.l.b16 %v130
  %v714 = vunpack.c.l.b16 %v131
  %v715 = vunpack.c.l.b16 %v132
  %v716 = vunpack.c.l.b16 %v133
  %v717 = vunpack.c.l.b16 %v134
  %v718 = vunpack.c.l.b16 %v135
  %v719 = vunpack.c.l.b16 %v136
  %v720 = vunpack.c.l.b16 %v137
  %v721 = vunpack.c.l.b16 %v138
  %v722 = vunpack.c.l.b16 %v139
  %v723 = vunpack.c.l.b16 %v140
  %v724 = vunpack.c.l.b16 %v141
  %v725 = vunpack.c.l.b16 %v142
  %v726 = vunpack.c.l.b16 %v143
  %v727 = vunpack.c.l.b16 %v144
  %v728 = vunpack.c.l.b16 %v145
  %v729 = vunpack.c.l.b16 %v146
  %v730 = vunpack.c.l.b16 %v147
  %v731 = vunpack.c.l.b16 %v148
  %v732 = vunpack.c.l.b16 %v149
  %v733 = vunpack.c.l.b16 %v150
  %v734 = vunpack.c.l.b16 %v151
  %v735 = vunpack.c.l.b16 %v152
  %v736 = vunpack.c.l.b16 %v153
  %v737 = vunpack.c.l.b16 %v154
  %v738 = vunpack.c.l.b16 %v155
  %v739 = vunpack.c.l.b16 %v156
  %v740 = vunpack.c.l.b16 %v157
  %v741 = vunpack.c.l.b16 %v158
  %v742 = vunpack.c.l.b16 %v159
  %v743 = vunpack.c.l.b16 %v160
  %v744 = vunpack.c.l.b16 %v161
  %v745 = vunpack.c.l.b16 %v162
  %v746 = vunpack.c.l.b16 %v163
  %v747 = vunpack.c.l.b16 %v164
  %v748 = vunpack.c.l.b16 %v165
  %v749 = vunpack.c.l.b16 %v166
  %v750 = vunpack.c.l.b16 %v167
  %v751 = vunpack.c.l.b16 %v168
  %v752 = vunpack.c.l.b16 %v169
  %v753 = vunpack.c.l.b16 %v170
  %v754 = vunpack.c.l.b16 %v171
  %v755 = vunpack.c.l.b16 %v172
  %v756 = vunpack.c.l.b16 %v173
  %v757 = vunpack.c.l.b16 %v174
  %v758 = vunpack.c.l.b16 %v175
  %v759 = vunpack.c.l.b16 %v176
  %v760 = vunpack.c.l.b16 %v177
  %v761 = vunpack.c.l.b16 %v178
  %v762 = vunpack.c.l.b16 %v179
  %v763 = vunpack.c.l.b16 %v180
  %v764 = vunpack.c.l.b16 %v181
  %v765 = vunpack.c.l.b16 %v182
  %v766 = vunpack.c.l.b16 %v183
  %v767 = vunpack.c.l.b16 %v184
  %v768 = vunpack.c.l.b16 %v185
  %v769 = vunpack.c.l.b16 %v186
  %v770 = vunpack.c.l.b16 %v187
  %v771 = vunpack.c.l.b16 %v188
  %v772 = vunpack.c.l.b16 %v189
  %v773 = vunpack.c.l.b16 %v190
  %v774 = vunpack.c.l.b16 %v191
  %v775 = vunpack.c.l.b16 %v192
  %v776 = vunpack.c.l.b16 %v193
  %v777 = vunpack.c.l.b16 %v194
  %v778 = vunpack.c.l.b16 %v195
  %v779 = vunpack.c.l.b16 %v196
  %v780 = vunpack.c.l.b16 %v197
  %v781 = vunpack.c.l.b16 %v198
  %v782 = vunpack.c.l.b16 %v199
  %v783 = vunpack.c.l.b16 %v200
  %v784 = vunpack.c.l.b16 %v201
  %v785 = vunpack.c.l.b16 %v202
  %v786 = vunpack.c.l.b16 %v203
  %v787 = vunpack.c.l.b16 %v204
  %v788 = vunpack.c.l.b16 %v205
  %v789 = vunpack.c.l.b16 %v206
  %v790 = vpack.c.b16 %v663, %v662
  %v791 = vpack.c.b16 %v665, %v664
  %v792 = vpack.c.b16 %v667, %v666
  %v793 = vpack.c.b16 %v669, %v668
  %v794 = vpack.c.b16 %v671, %v670
  %v795 = vpack.c.b16 %v673, %v672
  %v796 = vpack.c.b16 %v675, %v674
  %v797 = vpack.c.b16 %v677, %v676
  %v798 = vpack.c.b16 %v679, %v678
  %v799 = vpack.c.b16 %v681, %v680
  %v800 = vpack.c.b16 %v683, %v682
  %v801 = vpack.c.b16 %v685, %v684
  %v802 = vpack.c.b16 %v687, %v686
  %v803 = vpack.c.b16 %v689, %v688
  %v804 = vpack.c.b16 %v691, %v690
  %v805 = vpack.c.b16 %v693, %v692
  %v806 = vpack.c.b16 %v695, %v694
  %v807 = vpack.c.b16 %v697, %v696
  %v808 = vpack.c.b16 %v699, %v698
  %v809 = vpack.c.b16 %v701, %v700
  %v810 = vpack.c.b16 %v703, %v702
  %v811 = vpack.c.b16 %v705, %v704
  %v812 = vpack.c.b16 %v707, %v706
  %v813 = vpack.c.b16 %v709, %v708
  %v814 = vpack.c.b16 %v711, %v710
  %v815 = vpack.c.b16 %v713, %v712
  %v816 = vpack.c.b16 %v715, %v714
  %v817 = vpack.c.b16 %v717, %v716
  %v818 = vpack.c.b16 %v719, %v718
  %v819 = vpack.c.b16 %v721, %v720
  %v820 = vpack.c.b16 %v723, %v722
  %v821 = vpack.c.b16 %v725, %v724
  %v822 = vpack.c.b16 %v727, %v726
  %v823 = vpack.c.b16 %v729, %v728
  %v824 = vpack.c.b16 %v731, %v730
  %v825 = vpack.c.b16 %v733, %v732
  %v826 = vpack.c.b16 %v735, %v734
  %v827 = vpack.c.b16 %v737, %v736
  %v828 = vpack.c.b16 %v739, %v738
  %v829 = vpack.c.b16 %v741, %v740
  %v830 = vpack.c.b16 %v743, %v742
  %v831 = vpack.c.b16 %v745, %v744
  %v832 = vpack.c.b16 %v747, %v746
  %v833 = vpack.c.b16 %v749, %v748
  %v834 = vpack.c.b16 %v751, %v750
  %v835 = vpack.c.b16 %v753, %v752
  %v836 = vpack.c.b16 %v755, %v754
  %v837 = vpack.c.b16 %v757, %v756
  %v838 = vpack.c.b16 %v759, %v758
  %v839 = vpack.c.b16 %v761, %v760
  %v840 = vpack.c.b16 %v763, %v762
  %v841 = vpack.c.b16 %v765, %v764
  %v842 = vpack.c.b16 %v767, %v766
  %v843 = vpack.c.b16 %v769, %v768
  %v844 = vpack.c.b16 %v771, %v770
  %v845 = vpack.c.b16 %v773, %v772
  %v846 = vpack.c.b16 %v775, %v774
  %v847 = vpack.c.b16 %v777, %v776
  %v848 = vpack.c.b16 %v779, %v778
  %v849 = vpack.c.b16 %v781, %v780
  %v850 = vpack.c.b16 %v783, %v782
  %v851 = vpack.c.b16 %v785, %v784
  %v852 = vpack.c.b16 %v787, %v786
  %v853 = vpack.c.b16 %v789, %v788
  %918 = vmatprep.subr.bf16.mxu0 0
  %919 = vmatpush1.bf16.msra.mxu0 %v797
  %920 = vmatprep.subr.bf16.mxu0 0
  %921 = vmatpush1.bf16.msra.mxu0 %v796
  %922 = vmatprep.subr.bf16.mxu0 0
  %923 = vmatpush1.bf16.msra.mxu0 %v795
  %924 = vmatprep.subr.bf16.mxu0 0
  %925 = vmatpush1.bf16.msra.mxu0 %v794
  %926 = vmatprep.subr.bf16.mxu0 0
  %927 = vmatpush1.bf16.msra.mxu0 %v793
  %928 = vmatprep.subr.bf16.mxu0 0
  %929 = vmatpush1.bf16.msra.mxu0 %v792
  %930 = vmatprep.subr.bf16.mxu0 0
  %931 = vmatpush1.bf16.msra.mxu0 %v791
  %932 = vmatprep.subr.bf16.mxu0 0
  %933 = vmatpush1.bf16.msra.mxu0 %v790
  %934 = vmatprep.subr.bf16.mxu0 0
  %935 = vmatpush2.bf16.msra.mxu0 %v805
  %936 = vmatprep.subr.bf16.mxu0 0
  %937 = vmatpush2.bf16.msra.mxu0 %v804
  %938 = vmatprep.subr.bf16.mxu0 0
  %939 = vmatpush2.bf16.msra.mxu0 %v803
  %940 = vmatprep.subr.bf16.mxu0 0
  %941 = vmatpush2.bf16.msra.mxu0 %v802
  %942 = vmatprep.subr.bf16.mxu0 0
  %943 = vmatpush2.bf16.msra.mxu0 %v801
  %944 = vmatprep.subr.bf16.mxu0 0
  %945 = vmatpush2.bf16.msra.mxu0 %v800
  %946 = vmatprep.subr.bf16.mxu0 0
  %947 = vmatpush2.bf16.msra.mxu0 %v799
  %948 = vmatprep.subr.bf16.mxu0 0
  %949 = vmatpush2.bf16.msra.mxu0 %v798
  %950 = vmatprep.mubr.bf16.mxu0 %v407
  %951 = vmatmul.mubr.bf16.gmra.mxu0 %v406
  %v952 = vpop.f32.mrf.mxu0
  %v953 = vadd.f32 %v212, %v952
  %v954 = vpop.f32.mrf.mxu0
  %v955 = vpop.f32.mrf.mxu0
  %v956 = vadd.f32 %v212, %v955
  %v957 = vpop.f32.mrf.mxu0
  %958 = vmatprep.mubr.bf16.mxu0 %v415
  %959 = vmatmul.mubr.bf16.gmra.mxu0 %v414
  %v960 = vpop.f32.mrf.mxu0
  %v961 = vadd.f32 %v212, %v960
  %v962 = vpop.f32.mrf.mxu0
  %v963 = vpop.f32.mrf.mxu0
  %v964 = vadd.f32 %v212, %v963
  %v965 = vpop.f32.mrf.mxu0
  %966 = vmatprep.mubr.bf16.mxu0 %v423
  %967 = vmatmul.mubr.bf16.gmra.mxu0 %v422
  %v968 = vpop.f32.mrf.mxu0
  %v969 = vadd.f32 %v212, %v968
  %v970 = vpop.f32.mrf.mxu0
  %v971 = vpop.f32.mrf.mxu0
  %v972 = vadd.f32 %v212, %v971
  %v973 = vpop.f32.mrf.mxu0
  %974 = vmatprep.mubr.bf16.mxu0 %v431
  %975 = vmatmul.mubr.bf16.gmra.mxu0 %v430
  %v976 = vpop.f32.mrf.mxu0
  %v977 = vadd.f32 %v212, %v976
  %v978 = vpop.f32.mrf.mxu0
  %v979 = vpop.f32.mrf.mxu0
  %v980 = vadd.f32 %v212, %v979
  %v981 = vpop.f32.mrf.mxu0
  %982 = vmatprep.mubr.bf16.mxu0 %v439
  %983 = vmatmul.mubr.bf16.gmra.mxu0 %v438
  %v984 = vpop.f32.mrf.mxu0
  %v985 = vadd.f32 %v212, %v984
  %v986 = vpop.f32.mrf.mxu0
  %v987 = vpop.f32.mrf.mxu0
  %v988 = vadd.f32 %v212, %v987
  %v989 = vpop.f32.mrf.mxu0
  %990 = vmatprep.mubr.bf16.mxu0 %v447
  %991 = vmatmul.mubr.bf16.gmra.mxu0 %v446
  %v992 = vpop.f32.mrf.mxu0
  %v993 = vadd.f32 %v212, %v992
  %v994 = vpop.f32.mrf.mxu0
  %v995 = vpop.f32.mrf.mxu0
  %v996 = vadd.f32 %v212, %v995
  %v997 = vpop.f32.mrf.mxu0
  %998 = vmatprep.mubr.bf16.mxu0 %v455
  %999 = vmatmul.mubr.bf16.gmra.mxu0 %v454
  %v1000 = vpop.f32.mrf.mxu0
  %v1001 = vadd.f32 %v212, %v1000
  %v1002 = vpop.f32.mrf.mxu0
  %v1003 = vpop.f32.mrf.mxu0
  %v1004 = vadd.f32 %v212, %v1003
  %v1005 = vpop.f32.mrf.mxu0
  %1006 = vmatprep.mubr.bf16.mxu0 %v463
  %1007 = vmatmul.mubr.bf16.gmra.mxu0 %v462
  %v1008 = vpop.f32.mrf.mxu0
  %v1009 = vadd.f32 %v212, %v1008
  %v1010 = vpop.f32.mrf.mxu0
  %v1011 = vpop.f32.mrf.mxu0
  %v1012 = vadd.f32 %v212, %v1011
  %v1013 = vpop.f32.mrf.mxu0
  %1014 = vdwg.mxu0
  %1015 = vmatprep.subr.bf16.mxu0 0
  %1016 = vmatpush1.bf16.msra.mxu0 %v813
  %1017 = vmatprep.subr.bf16.mxu0 0
  %1018 = vmatpush1.bf16.msra.mxu0 %v812
  %1019 = vmatprep.subr.bf16.mxu0 0
  %1020 = vmatpush1.bf16.msra.mxu0 %v811
  %1021 = vmatprep.subr.bf16.mxu0 0
  %1022 = vmatpush1.bf16.msra.mxu0 %v810
  %1023 = vmatprep.subr.bf16.mxu0 0
  %1024 = vmatpush1.bf16.msra.mxu0 %v809
  %1025 = vmatprep.subr.bf16.mxu0 0
  %1026 = vmatpush1.bf16.msra.mxu0 %v808
  %1027 = vmatprep.subr.bf16.mxu0 0
  %1028 = vmatpush1.bf16.msra.mxu0 %v807
  %1029 = vmatprep.subr.bf16.mxu0 0
  %1030 = vmatpush1.bf16.msra.mxu0 %v806
  %1031 = vmatprep.subr.bf16.mxu0 0
  %1032 = vmatpush2.bf16.msra.mxu0 %v821
  %1033 = vmatprep.subr.bf16.mxu0 0
  %1034 = vmatpush2.bf16.msra.mxu0 %v820
  %1035 = vmatprep.subr.bf16.mxu0 0
  %1036 = vmatpush2.bf16.msra.mxu0 %v819
  %1037 = vmatprep.subr.bf16.mxu0 0
  %1038 = vmatpush2.bf16.msra.mxu0 %v818
  %1039 = vmatprep.subr.bf16.mxu0 0
  %1040 = vmatpush2.bf16.msra.mxu0 %v817
  %1041 = vmatprep.subr.bf16.mxu0 0
  %1042 = vmatpush2.bf16.msra.mxu0 %v816
  %1043 = vmatprep.subr.bf16.mxu0 0
  %1044 = vmatpush2.bf16.msra.mxu0 %v815
  %1045 = vmatprep.subr.bf16.mxu0 0
  %1046 = vmatpush2.bf16.msra.mxu0 %v814
  %1047 = vmatprep.mubr.bf16.mxu0 %v409
  %1048 = vmatmul.mubr.bf16.gmra.mxu0 %v408
  %v1049 = vpop.f32.mrf.mxu0
  %v1050 = vadd.f32 %v953, %v1049
  %v1051 = vpop.f32.mrf.mxu0
  %v1052 = vpop.f32.mrf.mxu0
  %v1053 = vadd.f32 %v956, %v1052
  %v1054 = vpop.f32.mrf.mxu0
  %1055 = vmatprep.mubr.bf16.mxu0 %v417
  %1056 = vmatmul.mubr.bf16.gmra.mxu0 %v416
  %v1057 = vpop.f32.mrf.mxu0
  %v1058 = vadd.f32 %v961, %v1057
  %v1059 = vpop.f32.mrf.mxu0
  %v1060 = vpop.f32.mrf.mxu0
  %v1061 = vadd.f32 %v964, %v1060
  %v1062 = vpop.f32.mrf.mxu0
  %1063 = vmatprep.mubr.bf16.mxu0 %v425
  %1064 = vmatmul.mubr.bf16.gmra.mxu0 %v424
  %v1065 = vpop.f32.mrf.mxu0
  %v1066 = vadd.f32 %v969, %v1065
  %v1067 = vpop.f32.mrf.mxu0
  %v1068 = vpop.f32.mrf.mxu0
  %v1069 = vadd.f32 %v972, %v1068
  %v1070 = vpop.f32.mrf.mxu0
  %1071 = vmatprep.mubr.bf16.mxu0 %v433
  %1072 = vmatmul.mubr.bf16.gmra.mxu0 %v432
  %v1073 = vpop.f32.mrf.mxu0
  %v1074 = vadd.f32 %v977, %v1073
  %v1075 = vpop.f32.mrf.mxu0
  %v1076 = vpop.f32.mrf.mxu0
  %v1077 = vadd.f32 %v980, %v1076
  %v1078 = vpop.f32.mrf.mxu0
  %1079 = vmatprep.mubr.bf16.mxu0 %v441
  %1080 = vmatmul.mubr.bf16.gmra.mxu0 %v440
  %v1081 = vpop.f32.mrf.mxu0
  %v1082 = vadd.f32 %v985, %v1081
  %v1083 = vpop.f32.mrf.mxu0
  %v1084 = vpop.f32.mrf.mxu0
  %v1085 = vadd.f32 %v988, %v1084
  %v1086 = vpop.f32.mrf.mxu0
  %1087 = vmatprep.mubr.bf16.mxu0 %v449
  %1088 = vmatmul.mubr.bf16.gmra.mxu0 %v448
  %v1089 = vpop.f32.mrf.mxu0
  %v1090 = vadd.f32 %v993, %v1089
  %v1091 = vpop.f32.mrf.mxu0
  %v1092 = vpop.f32.mrf.mxu0
  %v1093 = vadd.f32 %v996, %v1092
  %v1094 = vpop.f32.mrf.mxu0
  %1095 = vmatprep.mubr.bf16.mxu0 %v457
  %1096 = vmatmul.mubr.bf16.gmra.mxu0 %v456
  %v1097 = vpop.f32.mrf.mxu0
  %v1098 = vadd.f32 %v1001, %v1097
  %v1099 = vpop.f32.mrf.mxu0
  %v1100 = vpop.f32.mrf.mxu0
  %v1101 = vadd.f32 %v1004, %v1100
  %v1102 = vpop.f32.mrf.mxu0
  %1103 = vmatprep.mubr.bf16.mxu0 %v465
  %1104 = vmatmul.mubr.bf16.gmra.mxu0 %v464
  %v1105 = vpop.f32.mrf.mxu0
  %v1106 = vadd.f32 %v1009, %v1105
  %v1107 = vpop.f32.mrf.mxu0
  %v1108 = vpop.f32.mrf.mxu0
  %v1109 = vadd.f32 %v1012, %v1108
  %v1110 = vpop.f32.mrf.mxu0
  %1111 = vdwg.mxu0
  %1112 = vmatprep.subr.bf16.mxu0 0
  %1113 = vmatpush1.bf16.msra.mxu0 %v829
  %1114 = vmatprep.subr.bf16.mxu0 0
  %1115 = vmatpush1.bf16.msra.mxu0 %v828
  %1116 = vmatprep.subr.bf16.mxu0 0
  %1117 = vmatpush1.bf16.msra.mxu0 %v827
  %1118 = vmatprep.subr.bf16.mxu0 0
  %1119 = vmatpush1.bf16.msra.mxu0 %v826
  %1120 = vmatprep.subr.bf16.mxu0 0
  %1121 = vmatpush1.bf16.msra.mxu0 %v825
  %1122 = vmatprep.subr.bf16.mxu0 0
  %1123 = vmatpush1.bf16.msra.mxu0 %v824
  %1124 = vmatprep.subr.bf16.mxu0 0
  %1125 = vmatpush1.bf16.msra.mxu0 %v823
  %1126 = vmatprep.subr.bf16.mxu0 0
  %1127 = vmatpush1.bf16.msra.mxu0 %v822
  %1128 = vmatprep.subr.bf16.mxu0 0
  %1129 = vmatpush2.bf16.msra.mxu0 %v837
  %1130 = vmatprep.subr.bf16.mxu0 0
  %1131 = vmatpush2.bf16.msra.mxu0 %v836
  %1132 = vmatprep.subr.bf16.mxu0 0
  %1133 = vmatpush2.bf16.msra.mxu0 %v835
  %1134 = vmatprep.subr.bf16.mxu0 0
  %1135 = vmatpush2.bf16.msra.mxu0 %v834
  %1136 = vmatprep.subr.bf16.mxu0 0
  %1137 = vmatpush2.bf16.msra.mxu0 %v833
  %1138 = vmatprep.subr.bf16.mxu0 0
  %1139 = vmatpush2.bf16.msra.mxu0 %v832
  %1140 = vmatprep.subr.bf16.mxu0 0
  %1141 = vmatpush2.bf16.msra.mxu0 %v831
  %1142 = vmatprep.subr.bf16.mxu0 0
  %1143 = vmatpush2.bf16.msra.mxu0 %v830
  %1144 = vmatprep.mubr.bf16.mxu0 %v411
  %1145 = vmatmul.mubr.bf16.gmra.mxu0 %v410
  %v1146 = vpop.f32.mrf.mxu0
  %v1147 = vadd.f32 %v1050, %v1146
  %v1148 = vpop.f32.mrf.mxu0
  %v1149 = vpop.f32.mrf.mxu0
  %v1150 = vadd.f32 %v1053, %v1149
  %v1151 = vpop.f32.mrf.mxu0
  %1152 = vmatprep.mubr.bf16.mxu0 %v419
  %1153 = vmatmul.mubr.bf16.gmra.mxu0 %v418
  %v1154 = vpop.f32.mrf.mxu0
  %v1155 = vadd.f32 %v1058, %v1154
  %v1156 = vpop.f32.mrf.mxu0
  %v1157 = vpop.f32.mrf.mxu0
  %v1158 = vadd.f32 %v1061, %v1157
  %v1159 = vpop.f32.mrf.mxu0
  %1160 = vmatprep.mubr.bf16.mxu0 %v427
  %1161 = vmatmul.mubr.bf16.gmra.mxu0 %v426
  %v1162 = vpop.f32.mrf.mxu0
  %v1163 = vadd.f32 %v1066, %v1162
  %v1164 = vpop.f32.mrf.mxu0
  %v1165 = vpop.f32.mrf.mxu0
  %v1166 = vadd.f32 %v1069, %v1165
  %v1167 = vpop.f32.mrf.mxu0
  %1168 = vmatprep.mubr.bf16.mxu0 %v435
  %1169 = vmatmul.mubr.bf16.gmra.mxu0 %v434
  %v1170 = vpop.f32.mrf.mxu0
  %v1171 = vadd.f32 %v1074, %v1170
  %v1172 = vpop.f32.mrf.mxu0
  %v1173 = vpop.f32.mrf.mxu0
  %v1174 = vadd.f32 %v1077, %v1173
  %v1175 = vpop.f32.mrf.mxu0
  %1176 = vmatprep.mubr.bf16.mxu0 %v443
  %1177 = vmatmul.mubr.bf16.gmra.mxu0 %v442
  %v1178 = vpop.f32.mrf.mxu0
  %v1179 = vadd.f32 %v1082, %v1178
  %v1180 = vpop.f32.mrf.mxu0
  %v1181 = vpop.f32.mrf.mxu0
  %v1182 = vadd.f32 %v1085, %v1181
  %v1183 = vpop.f32.mrf.mxu0
  %1184 = vmatprep.mubr.bf16.mxu0 %v451
  %1185 = vmatmul.mubr.bf16.gmra.mxu0 %v450
  %v1186 = vpop.f32.mrf.mxu0
  %v1187 = vadd.f32 %v1090, %v1186
  %v1188 = vpop.f32.mrf.mxu0
  %v1189 = vpop.f32.mrf.mxu0
  %v1190 = vadd.f32 %v1093, %v1189
  %v1191 = vpop.f32.mrf.mxu0
  %1192 = vmatprep.mubr.bf16.mxu0 %v459
  %1193 = vmatmul.mubr.bf16.gmra.mxu0 %v458
  %v1194 = vpop.f32.mrf.mxu0
  %v1195 = vadd.f32 %v1098, %v1194
  %v1196 = vpop.f32.mrf.mxu0
  %v1197 = vpop.f32.mrf.mxu0
  %v1198 = vadd.f32 %v1101, %v1197
  %v1199 = vpop.f32.mrf.mxu0
  %1200 = vmatprep.mubr.bf16.mxu0 %v467
  %1201 = vmatmul.mubr.bf16.gmra.mxu0 %v466
  %v1202 = vpop.f32.mrf.mxu0
  %v1203 = vadd.f32 %v1106, %v1202
  %v1204 = vpop.f32.mrf.mxu0
  %v1205 = vpop.f32.mrf.mxu0
  %v1206 = vadd.f32 %v1109, %v1205
  %v1207 = vpop.f32.mrf.mxu0
  %1208 = vdwg.mxu0
  %1209 = vmatprep.subr.bf16.mxu0 0
  %1210 = vmatpush1.bf16.msra.mxu0 %v845
  %1211 = vmatprep.subr.bf16.mxu0 0
  %1212 = vmatpush1.bf16.msra.mxu0 %v844
  %1213 = vmatprep.subr.bf16.mxu0 0
  %1214 = vmatpush1.bf16.msra.mxu0 %v843
  %1215 = vmatprep.subr.bf16.mxu0 0
  %1216 = vmatpush1.bf16.msra.mxu0 %v842
  %1217 = vmatprep.subr.bf16.mxu0 0
  %1218 = vmatpush1.bf16.msra.mxu0 %v841
  %1219 = vmatprep.subr.bf16.mxu0 0
  %1220 = vmatpush1.bf16.msra.mxu0 %v840
  %1221 = vmatprep.subr.bf16.mxu0 0
  %1222 = vmatpush1.bf16.msra.mxu0 %v839
  %1223 = vmatprep.subr.bf16.mxu0 0
  %1224 = vmatpush1.bf16.msra.mxu0 %v838
  %1225 = vmatprep.subr.bf16.mxu0 0
  %1226 = vmatpush2.bf16.msra.mxu0 %v853
  %1227 = vmatprep.subr.bf16.mxu0 0
  %1228 = vmatpush2.bf16.msra.mxu0 %v852
  %1229 = vmatprep.subr.bf16.mxu0 0
  %1230 = vmatpush2.bf16.msra.mxu0 %v851
  %1231 = vmatprep.subr.bf16.mxu0 0
  %1232 = vmatpush2.bf16.msra.mxu0 %v850
  %1233 = vmatprep.subr.bf16.mxu0 0
  %1234 = vmatpush2.bf16.msra.mxu0 %v849
  %1235 = vmatprep.subr.bf16.mxu0 0
  %1236 = vmatpush2.bf16.msra.mxu0 %v848
  %1237 = vmatprep.subr.bf16.mxu0 0
  %1238 = vmatpush2.bf16.msra.mxu0 %v847
  %1239 = vmatprep.subr.bf16.mxu0 0
  %1240 = vmatpush2.bf16.msra.mxu0 %v846
  %1241 = vmatprep.mubr.bf16.mxu0 %v413
  %1242 = vmatmul.mubr.bf16.gmra.mxu0 %v412
  %v1243 = vpop.f32.mrf.mxu0
  %v1244 = vadd.f32 %v1147, %v1243
  %v1245 = vpop.f32.mrf.mxu0
  %v1246 = vpop.f32.mrf.mxu0
  %v1247 = vadd.f32 %v1150, %v1246
  %v1248 = vpop.f32.mrf.mxu0
  %1249 = vmatprep.mubr.bf16.mxu0 %v421
  %1250 = vmatmul.mubr.bf16.gmra.mxu0 %v420
  %v1251 = vpop.f32.mrf.mxu0
  %v1252 = vadd.f32 %v1155, %v1251
  %v1253 = vpop.f32.mrf.mxu0
  %v1254 = vpop.f32.mrf.mxu0
  %v1255 = vadd.f32 %v1158, %v1254
  %v1256 = vpop.f32.mrf.mxu0
  %1257 = vmatprep.mubr.bf16.mxu0 %v429
  %1258 = vmatmul.mubr.bf16.gmra.mxu0 %v428
  %v1259 = vpop.f32.mrf.mxu0
  %v1260 = vadd.f32 %v1163, %v1259
  %v1261 = vpop.f32.mrf.mxu0
  %v1262 = vpop.f32.mrf.mxu0
  %v1263 = vadd.f32 %v1166, %v1262
  %v1264 = vpop.f32.mrf.mxu0
  %1265 = vmatprep.mubr.bf16.mxu0 %v437
  %1266 = vmatmul.mubr.bf16.gmra.mxu0 %v436
  %v1267 = vpop.f32.mrf.mxu0
  %v1268 = vadd.f32 %v1171, %v1267
  %v1269 = vpop.f32.mrf.mxu0
  %v1270 = vpop.f32.mrf.mxu0
  %v1271 = vadd.f32 %v1174, %v1270
  %v1272 = vpop.f32.mrf.mxu0
  %1273 = vmatprep.mubr.bf16.mxu0 %v445
  %1274 = vmatmul.mubr.bf16.gmra.mxu0 %v444
  %v1275 = vpop.f32.mrf.mxu0
  %v1276 = vadd.f32 %v1179, %v1275
  %v1277 = vpop.f32.mrf.mxu0
  %v1278 = vpop.f32.mrf.mxu0
  %v1279 = vadd.f32 %v1182, %v1278
  %v1280 = vpop.f32.mrf.mxu0
  %1281 = vmatprep.mubr.bf16.mxu0 %v453
  %1282 = vmatmul.mubr.bf16.gmra.mxu0 %v452
  %v1283 = vpop.f32.mrf.mxu0
  %v1284 = vadd.f32 %v1187, %v1283
  %v1285 = vpop.f32.mrf.mxu0
  %v1286 = vpop.f32.mrf.mxu0
  %v1287 = vadd.f32 %v1190, %v1286
  %v1288 = vpop.f32.mrf.mxu0
  %1289 = vmatprep.mubr.bf16.mxu0 %v461
  %1290 = vmatmul.mubr.bf16.gmra.mxu0 %v460
  %v1291 = vpop.f32.mrf.mxu0
  %v1292 = vadd.f32 %v1195, %v1291
  %v1293 = vpop.f32.mrf.mxu0
  %v1294 = vpop.f32.mrf.mxu0
  %v1295 = vadd.f32 %v1198, %v1294
  %v1296 = vpop.f32.mrf.mxu0
  %1297 = vmatprep.mubr.bf16.mxu0 %v469
  %1298 = vmatmul.mubr.bf16.gmra.mxu0 %v468
  %v1299 = vpop.f32.mrf.mxu0
  %v1300 = vadd.f32 %v1203, %v1299
  %v1301 = vpop.f32.mrf.mxu0
  %v1302 = vpop.f32.mrf.mxu0
  %v1303 = vadd.f32 %v1206, %v1302
  %v1304 = vpop.f32.mrf.mxu0
  %1305 = vdwg.mxu0
  %v1306 = vmul.f32 %v1244, 0.2
  %v1307 = vmul.f32 %v1247, 0.2
  %v1308 = vmul.f32 %v1252, 0.2
  %v1309 = vmul.f32 %v1255, 0.2
  %v1310 = vmul.f32 %v1260, 0.2
  %v1311 = vmul.f32 %v1263, 0.2
  %v1312 = vmul.f32 %v1268, 0.2
  %v1313 = vmul.f32 %v1271, 0.2
  %v1314 = vmul.f32 %v1276, 0.2
  %v1315 = vmul.f32 %v1279, 0.2
  %v1316 = vmul.f32 %v1284, 0.2
  %v1317 = vmul.f32 %v1287, 0.2
  %v1318 = vmul.f32 %v1292, 0.2
  %v1319 = vmul.f32 %v1295, 0.2
  %v1320 = vmul.f32 %v1300, 0.2
  %v1321 = vmul.f32 %v1303, 0.2
  %v1322 = vmax.f32 %v1244, %v1306
  %v1323 = vmax.f32 %v1247, %v1307
  %v1324 = vmax.f32 %v1252, %v1308
  %v1325 = vmax.f32 %v1255, %v1309
  %v1326 = vmax.f32 %v1260, %v1310
  %v1327 = vmax.f32 %v1263, %v1311
  %v1328 = vmax.f32 %v1268, %v1312
  %v1329 = vmax.f32 %v1271, %v1313
  %v1330 = vmax.f32 %v1276, %v1314
  %v1331 = vmax.f32 %v1279, %v1315
  %v1332 = vmax.f32 %v1284, %v1316
  %v1333 = vmax.f32 %v1287, %v1317
  %v1334 = vmax.f32 %v1292, %v1318
  %v1335 = vmax.f32 %v1295, %v1319
  %v1336 = vmax.f32 %v1300, %v1320
  %v1337 = vmax.f32 %v1303, %v1321
  %v1338 = vpack.c.bf16 %v1323, %v1322
  %v1339 = vpack.c.bf16 %v1325, %v1324
  %v1340 = vpack.c.bf16 %v1327, %v1326
  %v1341 = vpack.c.bf16 %v1329, %v1328
  %v1342 = vpack.c.bf16 %v1331, %v1330
  %v1343 = vpack.c.bf16 %v1333, %v1332
  %v1344 = vpack.c.bf16 %v1335, %v1334
  %v1345 = vpack.c.bf16 %v1337, %v1336
  %v1354 = vunpack.c.l.b16 %v1338
  %v1355 = vunpack.c.h.b16 %v1338
  %v1356 = vunpack.c.l.b16 %v1339
  %v1357 = vunpack.c.h.b16 %v1339
  %v1358 = vunpack.c.l.b16 %v1340
  %v1359 = vunpack.c.h.b16 %v1340
  %v1360 = vunpack.c.l.b16 %v1341
  %v1361 = vunpack.c.h.b16 %v1341
  %v1362 = vunpack.c.l.b16 %v1342
  %v1363 = vunpack.c.h.b16 %v1342
  %v1364 = vunpack.c.l.b16 %v1343
  %v1365 = vunpack.c.h.b16 %v1343
  %v1366 = vunpack.c.l.b16 %v1344
  %v1367 = vunpack.c.h.b16 %v1344
  %v1368 = vunpack.c.l.b16 %v1345
  %v1369 = vunpack.c.h.b16 %v1345
  %v1370 = vpack.c.b16 %v1354, %v1354
  %v1371 = vpack.c.b16 %v1355, %v1355
  %v1372 = vpack.c.b16 %v1356, %v1356
  %v1373 = vpack.c.b16 %v1357, %v1357
  %v1374 = vpack.c.b16 %v1358, %v1358
  %v1375 = vpack.c.b16 %v1359, %v1359
  %v1376 = vpack.c.b16 %v1360, %v1360
  %v1377 = vpack.c.b16 %v1361, %v1361
  %v1378 = vpack.c.b16 %v1362, %v1362
  %v1379 = vpack.c.b16 %v1363, %v1363
  %v1380 = vpack.c.b16 %v1364, %v1364
  %v1381 = vpack.c.b16 %v1365, %v1365
  %v1382 = vpack.c.b16 %v1366, %v1366
  %v1383 = vpack.c.b16 %v1367, %v1367
  %v1384 = vpack.c.b16 %v1368, %v1368
  %v1385 = vpack.c.b16 %v1369, %v1369
  %1402 = vst [vmem:[%s3] sm:$0xf] %v1370
  %1403 = vst [vmem:[%s3 + $0x4] sm:$0xf] %v1371
  %1404 = vst [vmem:[%s3 + $0x8] sm:$0xf] %v1372
  %1405 = vst [vmem:[%s3 + $0xc] sm:$0xf] %v1373
  %1406 = vst [vmem:[%s3 + $0x10] sm:$0xf] %v1374
  %1407 = vst [vmem:[%s3 + $0x14] sm:$0xf] %v1375
  %1408 = vst [vmem:[%s3 + $0x18] sm:$0xf] %v1376
  %1409 = vst [vmem:[%s3 + $0x1c] sm:$0xf] %v1377
  %1410 = vst [vmem:[%s3 + $0x20] sm:$0xf] %v1378
  %1411 = vst [vmem:[%s3 + $0x24] sm:$0xf] %v1379
  %1412 = vst [vmem:[%s3 + $0x28] sm:$0xf] %v1380
  %1413 = vst [vmem:[%s3 + $0x2c] sm:$0xf] %v1381
  %1414 = vst [vmem:[%s3 + $0x30] sm:$0xf] %v1382
  %1415 = vst [vmem:[%s3 + $0x34] sm:$0xf] %v1383
  %1416 = vst [vmem:[%s3 + $0x38] sm:$0xf] %v1384
  %1417 = vst [vmem:[%s3 + $0x3c] sm:$0xf] %v1385
  // Predicated region
  $region14: #{discriminator_forward.6} parent=0 // pred_check
    _
  $region15: #{discriminator_forward.6} parent=0 // pred_check_branch
    %1419 = sbr.rel (0) target = $region17
  $region16: #{discriminator_forward.6} parent=0 // pred_region
    _
  $region17: #{discriminator_forward.6} parent=0 // pred_fallthru
    _
  // Predicated region
  $region18: #{discriminator_forward.6} parent=0 // pred_check
    _
  $region19: #{discriminator_forward.6} parent=0 // pred_check_branch
    %1421 = sbr.rel (0) target = $region21
  $region20: #{discriminator_forward.6} parent=0 // pred_region
    _
  $region21: #{discriminator_forward.6} parent=0 // pred_fallthru
    _

// kernel: discriminator_forward.7
$region0: #{discriminator_forward.7}
  #allocation0 [shape = 'u32[]', space=smem, size = 0x4, offset = 0x4, fixed_abs, tag = 'smem constant byte address 0x4 - core index']
  #allocation1 [shape = 'u32[144,128]{1,0:T(1,128)}', space=vmem, size = 0x12000, scoped, tag = 'internal scratch']
  %s0 = inlined_call_operand.vmem [shape: bf16[32,2048], index: 0, kind: input, shape index: {}]
  %s1 = inlined_call_operand.vmem [shape: bf16[2048,256], index: 1, kind: input, shape index: {}]
  %s2 = inlined_call_operand.vmem [shape: f32[1,256], index: 2, kind: input, shape index: {}]
  %s3 = inlined_call_operand.vmem [shape: f32[16,256], index: 3, kind: input, shape index: {}]
  %s4 = inlined_call_operand.vmem [shape: f32[2,1], index: 4, kind: output, shape index: {0}]
  %s5 = inlined_call_operand.vmem [shape: f32[2,256], index: 5, kind: output, shape index: {1}]
  %6 = xla_tuple %s4, %s5
  %s7 = sld [smem:[#allocation0]]
  $region34: #{discriminator_forward.7} parent=0
    _
  %s9 = ssub.s32 1, %s7
  %s10 = scalar_select 0, %s9, %s7
  // Predicated region
  $region2: #{discriminator_forward.7} parent=0 // pred_check
    _
  $region3: #{discriminator_forward.7} parent=0 // pred_check_branch
    %12 = sbr.rel (0) target = $region5
  $region4: #{discriminator_forward.7} parent=0 // pred_region
    _
  $region5: #{discriminator_forward.7} parent=0 // pred_fallthru
    _
  // Predicated region
  $region6: #{discriminator_forward.7} parent=0 // pred_check
    _
  $region7: #{discriminator_forward.7} parent=0 // pred_check_branch
    %14 = sbr.rel (0) target = $region9
  $region8: #{discriminator_forward.7} parent=0 // pred_region
    _
  $region9: #{discriminator_forward.7} parent=0 // pred_fallthru
    _
  // Predicated region
  $region10: #{discriminator_forward.7} parent=0 // pred_check
    _
  $region11: #{discriminator_forward.7} parent=0 // pred_check_branch
    %16 = sbr.rel (0) target = $region13
  $region12: #{discriminator_forward.7} parent=0 // pred_region
    _
  $region13: #{discriminator_forward.7} parent=0 // pred_fallthru
    _
  // Predicated region
  $region14: #{discriminator_forward.7} parent=0 // pred_check
    _
  $region15: #{discriminator_forward.7} parent=0 // pred_check_branch
    %18 = sbr.rel (0) target = $region17
  $region16: #{discriminator_forward.7} parent=0 // pred_region
    _
  $region17: #{discriminator_forward.7} parent=0 // pred_fallthru
    _
  %v19 = vld [vmem:[%s0] sm:$0xff]
  %v20 = vld [vmem:[%s0 + $0x8] sm:$0xff]
  %v21 = vld [vmem:[%s0 + $0x10] sm:$0xff]
  %v22 = vld [vmem:[%s0 + $0x18] sm:$0xff]
  %v23 = vld [vmem:[%s0 + $0x20] sm:$0xff]
  %v24 = vld [vmem:[%s0 + $0x28] sm:$0xff]
  %v25 = vld [vmem:[%s0 + $0x30] sm:$0xff]
  %v26 = vld [vmem:[%s0 + $0x38] sm:$0xff]
  %v27 = vld [vmem:[%s0 + $0x40] sm:$0xff]
  %v28 = vld [vmem:[%s0 + $0x48] sm:$0xff]
  %v29 = vld [vmem:[%s0 + $0x50] sm:$0xff]
  %v30 = vld [vmem:[%s0 + $0x58] sm:$0xff]
  %v31 = vld [vmem:[%s0 + $0x60] sm:$0xff]
  %v32 = vld [vmem:[%s0 + $0x68] sm:$0xff]
  %v33 = vld [vmem:[%s0 + $0x70] sm:$0xff]
  %v34 = vld [vmem:[%s0 + $0x78] sm:$0xff]
  %v35 = vld [vmem:[%s0 + $0x80] sm:$0xff]
  %v36 = vld [vmem:[%s0 + $0x88] sm:$0xff]
  %v37 = vld [vmem:[%s0 + $0x90] sm:$0xff]
  %v38 = vld [vmem:[%s0 + $0x98] sm:$0xff]
  %v39 = vld [vmem:[%s0 + $0xa0] sm:$0xff]
  %v40 = vld [vmem:[%s0 + $0xa8] sm:$0xff]
  %v41 = vld [vmem:[%s0 + $0xb0] sm:$0xff]
  %v42 = vld [vmem:[%s0 + $0xb8] sm:$0xff]
  %v43 = vld [vmem:[%s0 + $0xc0] sm:$0xff]
  %v44 = vld [vmem:[%s0 + $0xc8] sm:$0xff]
  %v45 = vld [vmem:[%s0 + $0xd0] sm:$0xff]
  %v46 = vld [vmem:[%s0 + $0xd8] sm:$0xff]
  %v47 = vld [vmem:[%s0 + $0xe0] sm:$0xff]
  %v48 = vld [vmem:[%s0 + $0xe8] sm:$0xff]
  %v49 = vld [vmem:[%s0 + $0xf0] sm:$0xff]
  %v50 = vld [vmem:[%s0 + $0xf8] sm:$0xff]
  %v51 = vld [vmem:[%s1] sm:$0xff]
  %v52 = vld [vmem:[%s1 + $0x8] sm:$0xff]
  %v53 = vld [vmem:[%s1 + $0x10] sm:$0xff]
  %v54 = vld [vmem:[%s1 + $0x18] sm:$0xff]
  %v55 = vld [vmem:[%s1 + $0x20] sm:$0xff]
  %v56 = vld [vmem:[%s1 + $0x28] sm:$0xff]
  %v57 = vld [vmem:[%s1 + $0x30] sm:$0xff]
  %v58 = vld [vmem:[%s1 + $0x38] sm:$0xff]
  %v59 = vld [vmem:[%s1 + $0x40] sm:$0xff]
  %v60 = vld [vmem:[%s1 + $0x48] sm:$0xff]
  %v61 = vld [vmem:[%s1 + $0x50] sm:$0xff]
  %v62 = vld [vmem:[%s1 + $0x58] sm:$0xff]
  %v63 = vld [vmem:[%s1 + $0x60] sm:$0xff]
  %v64 = vld [vmem:[%s1 + $0x68] sm:$0xff]
  %v65 = vld [vmem:[%s1 + $0x70] sm:$0xff]
  %v66 = vld [vmem:[%s1 + $0x78] sm:$0xff]
  %v67 = vld [vmem:[%s1 + $0x80] sm:$0xff]
  %v68 = vld [vmem:[%s1 + $0x88] sm:$0xff]
  %v69 = vld [vmem:[%s1 + $0x90] sm:$0xff]
  %v70 = vld [vmem:[%s1 + $0x98] sm:$0xff]
  %v71 = vld [vmem:[%s1 + $0xa0] sm:$0xff]
  %v72 = vld [vmem:[%s1 + $0xa8] sm:$0xff]
  %v73 = vld [vmem:[%s1 + $0xb0] sm:$0xff]
  %v74 = vld [vmem:[%s1 + $0xb8] sm:$0xff]
  %v75 = vld [vmem:[%s1 + $0xc0] sm:$0xff]
  %v76 = vld [vmem:[%s1 + $0xc8] sm:$0xff]
  %v77 = vld [vmem:[%s1 + $0xd0] sm:$0xff]
  %v78 = vld [vmem:[%s1 + $0xd8] sm:$0xff]
  %v79 = vld [vmem:[%s1 + $0xe0] sm:$0xff]
  %v80 = vld [vmem:[%s1 + $0xe8] sm:$0xff]
  %v81 = vld [vmem:[%s1 + $0xf0] sm:$0xff]
  %v82 = vld [vmem:[%s1 + $0xf8] sm:$0xff]
  %v83 = vld [vmem:[%s1 + $0x100] sm:$0xff]
  %v84 = vld [vmem:[%s1 + $0x108] sm:$0xff]
  %v85 = vld [vmem:[%s1 + $0x110] sm:$0xff]
  %v86 = vld [vmem:[%s1 + $0x118] sm:$0xff]
  %v87 = vld [vmem:[%s1 + $0x120] sm:$0xff]
  %v88 = vld [vmem:[%s1 + $0x128] sm:$0xff]
  %v89 = vld [vmem:[%s1 + $0x130] sm:$0xff]
  %v90 = vld [vmem:[%s1 + $0x138] sm:$0xff]
  %v91 = vld [vmem:[%s1 + $0x140] sm:$0xff]
  %v92 = vld [vmem:[%s1 + $0x148] sm:$0xff]
  %v93 = vld [vmem:[%s1 + $0x150] sm:$0xff]
  %v94 = vld [vmem:[%s1 + $0x158] sm:$0xff]
  %v95 = vld [vmem:[%s1 + $0x160] sm:$0xff]
  %v96 = vld [vmem:[%s1 + $0x168] sm:$0xff]
  %v97 = vld [vmem:[%s1 + $0x170] sm:$0xff]
  %v98 = vld [vmem:[%s1 + $0x178] sm:$0xff]
  %v99 = vld [vmem:[%s1 + $0x180] sm:$0xff]
  %v100 = vld [vmem:[%s1 + $0x188] sm:$0xff]
  %v101 = vld [vmem:[%s1 + $0x190] sm:$0xff]
  %v102 = vld [vmem:[%s1 + $0x198] sm:$0xff]
  %v103 = vld [vmem:[%s1 + $0x1a0] sm:$0xff]
  %v104 = vld [vmem:[%s1 + $0x1a8] sm:$0xff]
  %v105 = vld [vmem:[%s1 + $0x1b0] sm:$0xff]
  %v106 = vld [vmem:[%s1 + $0x1b8] sm:$0xff]
  %v107 = vld [vmem:[%s1 + $0x1c0] sm:$0xff]
  %v108 = vld [vmem:[%s1 + $0x1c8] sm:$0xff]
  %v109 = vld [vmem:[%s1 + $0x1d0] sm:$0xff]
  %v110 = vld [vmem:[%s1 + $0x1d8] sm:$0xff]
  %v111 = vld [vmem:[%s1 + $0x1e0] sm:$0xff]
  %v112 = vld [vmem:[%s1 + $0x1e8] sm:$0xff]
  %v113 = vld [vmem:[%s1 + $0x1f0] sm:$0xff]
  %v114 = vld [vmem:[%s1 + $0x1f8] sm:$0xff]
  %v115 = vld [vmem:[%s1 + $0x200] sm:$0xff]
  %v116 = vld [vmem:[%s1 + $0x208] sm:$0xff]
  %v117 = vld [vmem:[%s1 + $0x210] sm:$0xff]
  %v118 = vld [vmem:[%s1 + $0x218] sm:$0xff]
  %v119 = vld [vmem:[%s1 + $0x220] sm:$0xff]
  %v120 = vld [vmem:[%s1 + $0x228] sm:$0xff]
  %v121 = vld [vmem:[%s1 + $0x230] sm:$0xff]
  %v122 = vld [vmem:[%s1 + $0x238] sm:$0xff]
  %v123 = vld [vmem:[%s1 + $0x240] sm:$0xff]
  %v124 = vld [vmem:[%s1 + $0x248] sm:$0xff]
  %v125 = vld [vmem:[%s1 + $0x250] sm:$0xff]
  %v126 = vld [vmem:[%s1 + $0x258] sm:$0xff]
  %v127 = vld [vmem:[%s1 + $0x260] sm:$0xff]
  %v128 = vld [vmem:[%s1 + $0x268] sm:$0xff]
  %v129 = vld [vmem:[%s1 + $0x270] sm:$0xff]
  %v130 = vld [vmem:[%s1 + $0x278] sm:$0xff]
  %v131 = vld [vmem:[%s1 + $0x280] sm:$0xff]
  %v132 = vld [vmem:[%s1 + $0x288] sm:$0xff]
  %v133 = vld [vmem:[%s1 + $0x290] sm:$0xff]
  %v134 = vld [vmem:[%s1 + $0x298] sm:$0xff]
  %v135 = vld [vmem:[%s1 + $0x2a0] sm:$0xff]
  %v136 = vld [vmem:[%s1 + $0x2a8] sm:$0xff]
  %v137 = vld [vmem:[%s1 + $0x2b0] sm:$0xff]
  %v138 = vld [vmem:[%s1 + $0x2b8] sm:$0xff]
  %v139 = vld [vmem:[%s1 + $0x2c0] sm:$0xff]
  %v140 = vld [vmem:[%s1 + $0x2c8] sm:$0xff]
  %v141 = vld [vmem:[%s1 + $0x2d0] sm:$0xff]
  %v142 = vld [vmem:[%s1 + $0x2d8] sm:$0xff]
  %v143 = vld [vmem:[%s1 + $0x2e0] sm:$0xff]
  %v144 = vld [vmem:[%s1 + $0x2e8] sm:$0xff]
  %v145 = vld [vmem:[%s1 + $0x2f0] sm:$0xff]
  %v146 = vld [vmem:[%s1 + $0x2f8] sm:$0xff]
  %v147 = vld [vmem:[%s1 + $0x300] sm:$0xff]
  %v148 = vld [vmem:[%s1 + $0x308] sm:$0xff]
  %v149 = vld [vmem:[%s1 + $0x310] sm:$0xff]
  %v150 = vld [vmem:[%s1 + $0x318] sm:$0xff]
  %v151 = vld [vmem:[%s1 + $0x320] sm:$0xff]
  %v152 = vld [vmem:[%s1 + $0x328] sm:$0xff]
  %v153 = vld [vmem:[%s1 + $0x330] sm:$0xff]
  %v154 = vld [vmem:[%s1 + $0x338] sm:$0xff]
  %v155 = vld [vmem:[%s1 + $0x340] sm:$0xff]
  %v156 = vld [vmem:[%s1 + $0x348] sm:$0xff]
  %v157 = vld [vmem:[%s1 + $0x350] sm:$0xff]
  %v158 = vld [vmem:[%s1 + $0x358] sm:$0xff]
  %v159 = vld [vmem:[%s1 + $0x360] sm:$0xff]
  %v160 = vld [vmem:[%s1 + $0x368] sm:$0xff]
  %v161 = vld [vmem:[%s1 + $0x370] sm:$0xff]
  %v162 = vld [vmem:[%s1 + $0x378] sm:$0xff]
  %v163 = vld [vmem:[%s1 + $0x380] sm:$0xff]
  %v164 = vld [vmem:[%s1 + $0x388] sm:$0xff]
  %v165 = vld [vmem:[%s1 + $0x390] sm:$0xff]
  %v166 = vld [vmem:[%s1 + $0x398] sm:$0xff]
  %v167 = vld [vmem:[%s1 + $0x3a0] sm:$0xff]
  %v168 = vld [vmem:[%s1 + $0x3a8] sm:$0xff]
  %v169 = vld [vmem:[%s1 + $0x3b0] sm:$0xff]
  %v170 = vld [vmem:[%s1 + $0x3b8] sm:$0xff]
  %v171 = vld [vmem:[%s1 + $0x3c0] sm:$0xff]
  %v172 = vld [vmem:[%s1 + $0x3c8] sm:$0xff]
  %v173 = vld [vmem:[%s1 + $0x3d0] sm:$0xff]
  %v174 = vld [vmem:[%s1 + $0x3d8] sm:$0xff]
  %v175 = vld [vmem:[%s1 + $0x3e0] sm:$0xff]
  %v176 = vld [vmem:[%s1 + $0x3e8] sm:$0xff]
  %v177 = vld [vmem:[%s1 + $0x3f0] sm:$0xff]
  %v178 = vld [vmem:[%s1 + $0x3f8] sm:$0xff]
  %v179 = vld [vmem:[%s1 + $0x400] sm:$0xff]
  %v180 = vld [vmem:[%s1 + $0x408] sm:$0xff]
  %v181 = vld [vmem:[%s1 + $0x410] sm:$0xff]
  %v182 = vld [vmem:[%s1 + $0x418] sm:$0xff]
  %v183 = vld [vmem:[%s1 + $0x420] sm:$0xff]
  %v184 = vld [vmem:[%s1 + $0x428] sm:$0xff]
  %v185 = vld [vmem:[%s1 + $0x430] sm:$0xff]
  %v186 = vld [vmem:[%s1 + $0x438] sm:$0xff]
  %v187 = vld [vmem:[%s1 + $0x440] sm:$0xff]
  %v188 = vld [vmem:[%s1 + $0x448] sm:$0xff]
  %v189 = vld [vmem:[%s1 + $0x450] sm:$0xff]
  %v190 = vld [vmem:[%s1 + $0x458] sm:$0xff]
  %v191 = vld [vmem:[%s1 + $0x460] sm:$0xff]
  %v192 = vld [vmem:[%s1 + $0x468] sm:$0xff]
  %v193 = vld [vmem:[%s1 + $0x470] sm:$0xff]
  %v194 = vld [vmem:[%s1 + $0x478] sm:$0xff]
  %v195 = vld [vmem:[%s1 + $0x480] sm:$0xff]
  %v196 = vld [vmem:[%s1 + $0x488] sm:$0xff]
  %v197 = vld [vmem:[%s1 + $0x490] sm:$0xff]
  %v198 = vld [vmem:[%s1 + $0x498] sm:$0xff]
  %v199 = vld [vmem:[%s1 + $0x4a0] sm:$0xff]
  %v200 = vld [vmem:[%s1 + $0x4a8] sm:$0xff]
  %v201 = vld [vmem:[%s1 + $0x4b0] sm:$0xff]
  %v202 = vld [vmem:[%s1 + $0x4b8] sm:$0xff]
  %v203 = vld [vmem:[%s1 + $0x4c0] sm:$0xff]
  %v204 = vld [vmem:[%s1 + $0x4c8] sm:$0xff]
  %v205 = vld [vmem:[%s1 + $0x4d0] sm:$0xff]
  %v206 = vld [vmem:[%s1 + $0x4d8] sm:$0xff]
  %v207 = vld [vmem:[%s1 + $0x4e0] sm:$0xff]
  %v208 = vld [vmem:[%s1 + $0x4e8] sm:$0xff]
  %v209 = vld [vmem:[%s1 + $0x4f0] sm:$0xff]
  %v210 = vld [vmem:[%s1 + $0x4f8] sm:$0xff]
  %v211 = vld [vmem:[%s1 + $0x500] sm:$0xff]
  %v212 = vld [vmem:[%s1 + $0x508] sm:$0xff]
  %v213 = vld [vmem:[%s1 + $0x510] sm:$0xff]
  %v214 = vld [vmem:[%s1 + $0x518] sm:$0xff]
  %v215 = vld [vmem:[%s1 + $0x520] sm:$0xff]
  %v216 = vld [vmem:[%s1 + $0x528] sm:$0xff]
  %v217 = vld [vmem:[%s1 + $0x530] sm:$0xff]
  %v218 = vld [vmem:[%s1 + $0x538] sm:$0xff]
  %v219 = vld [vmem:[%s1 + $0x540] sm:$0xff]
  %v220 = vld [vmem:[%s1 + $0x548] sm:$0xff]
  %v221 = vld [vmem:[%s1 + $0x550] sm:$0xff]
  %v222 = vld [vmem:[%s1 + $0x558] sm:$0xff]
  %v223 = vld [vmem:[%s1 + $0x560] sm:$0xff]
  %v224 = vld [vmem:[%s1 + $0x568] sm:$0xff]
  %v225 = vld [vmem:[%s1 + $0x570] sm:$0xff]
  %v226 = vld [vmem:[%s1 + $0x578] sm:$0xff]
  %v227 = vld [vmem:[%s1 + $0x580] sm:$0xff]
  %v228 = vld [vmem:[%s1 + $0x588] sm:$0xff]
  %v229 = vld [vmem:[%s1 + $0x590] sm:$0xff]
  %v230 = vld [vmem:[%s1 + $0x598] sm:$0xff]
  %v231 = vld [vmem:[%s1 + $0x5a0] sm:$0xff]
  %v232 = vld [vmem:[%s1 + $0x5a8] sm:$0xff]
  %v233 = vld [vmem:[%s1 + $0x5b0] sm:$0xff]
  %v234 = vld [vmem:[%s1 + $0x5b8] sm:$0xff]
  %v235 = vld [vmem:[%s1 + $0x5c0] sm:$0xff]
  %v236 = vld [vmem:[%s1 + $0x5c8] sm:$0xff]
  %v237 = vld [vmem:[%s1 + $0x5d0] sm:$0xff]
  %v238 = vld [vmem:[%s1 + $0x5d8] sm:$0xff]
  %v239 = vld [vmem:[%s1 + $0x5e0] sm:$0xff]
  %v240 = vld [vmem:[%s1 + $0x5e8] sm:$0xff]
  %v241 = vld [vmem:[%s1 + $0x5f0] sm:$0xff]
  %v242 = vld [vmem:[%s1 + $0x5f8] sm:$0xff]
  %v243 = vld [vmem:[%s1 + $0x600] sm:$0xff]
  %v244 = vld [vmem:[%s1 + $0x608] sm:$0xff]
  %v245 = vld [vmem:[%s1 + $0x610] sm:$0xff]
  %v246 = vld [vmem:[%s1 + $0x618] sm:$0xff]
  %v247 = vld [vmem:[%s1 + $0x620] sm:$0xff]
  %v248 = vld [vmem:[%s1 + $0x628] sm:$0xff]
  %v249 = vld [vmem:[%s1 + $0x630] sm:$0xff]
  %v250 = vld [vmem:[%s1 + $0x638] sm:$0xff]
  %v251 = vld [vmem:[%s1 + $0x640] sm:$0xff]
  %v252 = vld [vmem:[%s1 + $0x648] sm:$0xff]
  %v253 = vld [vmem:[%s1 + $0x650] sm:$0xff]
  %v254 = vld [vmem:[%s1 + $0x658] sm:$0xff]
  %v255 = vld [vmem:[%s1 + $0x660] sm:$0xff]
  %v256 = vld [vmem:[%s1 + $0x668] sm:$0xff]
  %v257 = vld [vmem:[%s1 + $0x670] sm:$0xff]
  %v258 = vld [vmem:[%s1 + $0x678] sm:$0xff]
  %v259 = vld [vmem:[%s1 + $0x680] sm:$0xff]
  %v260 = vld [vmem:[%s1 + $0x688] sm:$0xff]
  %v261 = vld [vmem:[%s1 + $0x690] sm:$0xff]
  %v262 = vld [vmem:[%s1 + $0x698] sm:$0xff]
  %v263 = vld [vmem:[%s1 + $0x6a0] sm:$0xff]
  %v264 = vld [vmem:[%s1 + $0x6a8] sm:$0xff]
  %v265 = vld [vmem:[%s1 + $0x6b0] sm:$0xff]
  %v266 = vld [vmem:[%s1 + $0x6b8] sm:$0xff]
  %v267 = vld [vmem:[%s1 + $0x6c0] sm:$0xff]
  %v268 = vld [vmem:[%s1 + $0x6c8] sm:$0xff]
  %v269 = vld [vmem:[%s1 + $0x6d0] sm:$0xff]
  %v270 = vld [vmem:[%s1 + $0x6d8] sm:$0xff]
  %v271 = vld [vmem:[%s1 + $0x6e0] sm:$0xff]
  %v272 = vld [vmem:[%s1 + $0x6e8] sm:$0xff]
  %v273 = vld [vmem:[%s1 + $0x6f0] sm:$0xff]
  %v274 = vld [vmem:[%s1 + $0x6f8] sm:$0xff]
  %v275 = vld [vmem:[%s1 + $0x700] sm:$0xff]
  %v276 = vld [vmem:[%s1 + $0x708] sm:$0xff]
  %v277 = vld [vmem:[%s1 + $0x710] sm:$0xff]
  %v278 = vld [vmem:[%s1 + $0x718] sm:$0xff]
  %v279 = vld [vmem:[%s1 + $0x720] sm:$0xff]
  %v280 = vld [vmem:[%s1 + $0x728] sm:$0xff]
  %v281 = vld [vmem:[%s1 + $0x730] sm:$0xff]
  %v282 = vld [vmem:[%s1 + $0x738] sm:$0xff]
  %v283 = vld [vmem:[%s1 + $0x740] sm:$0xff]
  %v284 = vld [vmem:[%s1 + $0x748] sm:$0xff]
  %v285 = vld [vmem:[%s1 + $0x750] sm:$0xff]
  %v286 = vld [vmem:[%s1 + $0x758] sm:$0xff]
  %v287 = vld [vmem:[%s1 + $0x760] sm:$0xff]
  %v288 = vld [vmem:[%s1 + $0x768] sm:$0xff]
  %v289 = vld [vmem:[%s1 + $0x770] sm:$0xff]
  %v290 = vld [vmem:[%s1 + $0x778] sm:$0xff]
  %v291 = vld [vmem:[%s1 + $0x780] sm:$0xff]
  %v292 = vld [vmem:[%s1 + $0x788] sm:$0xff]
  %v293 = vld [vmem:[%s1 + $0x790] sm:$0xff]
  %v294 = vld [vmem:[%s1 + $0x798] sm:$0xff]
  %v295 = vld [vmem:[%s1 + $0x7a0] sm:$0xff]
  %v296 = vld [vmem:[%s1 + $0x7a8] sm:$0xff]
  %v297 = vld [vmem:[%s1 + $0x7b0] sm:$0xff]
  %v298 = vld [vmem:[%s1 + $0x7b8] sm:$0xff]
  %v299 = vld [vmem:[%s1 + $0x7c0] sm:$0xff]
  %v300 = vld [vmem:[%s1 + $0x7c8] sm:$0xff]
  %v301 = vld [vmem:[%s1 + $0x7d0] sm:$0xff]
  %v302 = vld [vmem:[%s1 + $0x7d8] sm:$0xff]
  %v303 = vld [vmem:[%s1 + $0x7e0] sm:$0xff]
  %v304 = vld [vmem:[%s1 + $0x7e8] sm:$0xff]
  %v305 = vld [vmem:[%s1 + $0x7f0] sm:$0xff]
  %v306 = vld [vmem:[%s1 + $0x7f8] sm:$0xff]
  %v307 = vld [vmem:[%s2] sm:$0x3]
  %v309 = vlaneseq
  %v310 = vshrl.u32 %v309, 7
  %v311 = vsub.s32 0, %v310
  %v312 = vrot.slane %v307, %v311
  %v313 = vlaneseq
  %v314 = vshrl.u32 %v313, 7
  %v315 = vsub.s32 1, %v314
  %v316 = vrot.slane %v307, %v315
  %v351 = vunpack.c.l.b16 %v19
  %v352 = vunpack.c.h.b16 %v19
  %v353 = vunpack.c.l.b16 %v20
  %v354 = vunpack.c.h.b16 %v20
  %v355 = vunpack.c.l.b16 %v21
  %v356 = vunpack.c.h.b16 %v21
  %v357 = vunpack.c.l.b16 %v22
  %v358 = vunpack.c.h.b16 %v22
  %v359 = vunpack.c.l.b16 %v23
  %v360 = vunpack.c.h.b16 %v23
  %v361 = vunpack.c.l.b16 %v24
  %v362 = vunpack.c.h.b16 %v24
  %v363 = vunpack.c.l.b16 %v25
  %v364 = vunpack.c.h.b16 %v25
  %v365 = vunpack.c.l.b16 %v26
  %v366 = vunpack.c.h.b16 %v26
  %v367 = vunpack.c.l.b16 %v27
  %v368 = vunpack.c.h.b16 %v27
  %v369 = vunpack.c.l.b16 %v28
  %v370 = vunpack.c.h.b16 %v28
  %v371 = vunpack.c.l.b16 %v29
  %v372 = vunpack.c.h.b16 %v29
  %v373 = vunpack.c.l.b16 %v30
  %v374 = vunpack.c.h.b16 %v30
  %v375 = vunpack.c.l.b16 %v31
  %v376 = vunpack.c.h.b16 %v31
  %v377 = vunpack.c.l.b16 %v32
  %v378 = vunpack.c.h.b16 %v32
  %v379 = vunpack.c.l.b16 %v33
  %v380 = vunpack.c.h.b16 %v33
  %v381 = vunpack.c.l.b16 %v34
  %v382 = vunpack.c.h.b16 %v34
  %v383 = vunpack.c.l.b16 %v35
  %v384 = vunpack.c.h.b16 %v35
  %v385 = vunpack.c.l.b16 %v36
  %v386 = vunpack.c.h.b16 %v36
  %v387 = vunpack.c.l.b16 %v37
  %v388 = vunpack.c.h.b16 %v37
  %v389 = vunpack.c.l.b16 %v38
  %v390 = vunpack.c.h.b16 %v38
  %v391 = vunpack.c.l.b16 %v39
  %v392 = vunpack.c.h.b16 %v39
  %v393 = vunpack.c.l.b16 %v40
  %v394 = vunpack.c.h.b16 %v40
  %v395 = vunpack.c.l.b16 %v41
  %v396 = vunpack.c.h.b16 %v41
  %v397 = vunpack.c.l.b16 %v42
  %v398 = vunpack.c.h.b16 %v42
  %v399 = vunpack.c.l.b16 %v43
  %v400 = vunpack.c.h.b16 %v43
  %v401 = vunpack.c.l.b16 %v44
  %v402 = vunpack.c.h.b16 %v44
  %v403 = vunpack.c.l.b16 %v45
  %v404 = vunpack.c.h.b16 %v45
  %v405 = vunpack.c.l.b16 %v46
  %v406 = vunpack.c.h.b16 %v46
  %v407 = vunpack.c.l.b16 %v47
  %v408 = vunpack.c.h.b16 %v47
  %v409 = vunpack.c.l.b16 %v48
  %v410 = vunpack.c.h.b16 %v48
  %v411 = vunpack.c.l.b16 %v49
  %v412 = vunpack.c.h.b16 %v49
  %v413 = vunpack.c.l.b16 %v50
  %v414 = vunpack.c.h.b16 %v50
  %v415 = vpack.c.b16 %v367, %v351
  %v416 = vpack.c.b16 %v368, %v352
  %v417 = vpack.c.b16 %v369, %v353
  %v418 = vpack.c.b16 %v370, %v354
  %v419 = vpack.c.b16 %v371, %v355
  %v420 = vpack.c.b16 %v372, %v356
  %v421 = vpack.c.b16 %v373, %v357
  %v422 = vpack.c.b16 %v374, %v358
  %v423 = vpack.c.b16 %v375, %v359
  %v424 = vpack.c.b16 %v376, %v360
  %v425 = vpack.c.b16 %v377, %v361
  %v426 = vpack.c.b16 %v378, %v362
  %v427 = vpack.c.b16 %v379, %v363
  %v428 = vpack.c.b16 %v380, %v364
  %v429 = vpack.c.b16 %v381, %v365
  %v430 = vpack.c.b16 %v382, %v366
  %v431 = vpack.c.b16 %v399, %v383
  %v432 = vpack.c.b16 %v400, %v384
  %v433 = vpack.c.b16 %v401, %v385
  %v434 = vpack.c.b16 %v402, %v386
  %v435 = vpack.c.b16 %v403, %v387
  %v436 = vpack.c.b16 %v404, %v388
  %v437 = vpack.c.b16 %v405, %v389
  %v438 = vpack.c.b16 %v406, %v390
  %v439 = vpack.c.b16 %v407, %v391
  %v440 = vpack.c.b16 %v408, %v392
  %v441 = vpack.c.b16 %v409, %v393
  %v442 = vpack.c.b16 %v410, %v394
  %v443 = vpack.c.b16 %v411, %v395
  %v444 = vpack.c.b16 %v412, %v396
  %v445 = vpack.c.b16 %v413, %v397
  %v446 = vpack.c.b16 %v414, %v398
  %v735 = vunpack.c.l.b16 %v51
  %v736 = vunpack.c.h.b16 %v51
  %v737 = vunpack.c.l.b16 %v52
  %v738 = vunpack.c.h.b16 %v52
  %v739 = vunpack.c.l.b16 %v53
  %v740 = vunpack.c.h.b16 %v53
  %v741 = vunpack.c.l.b16 %v54
  %v742 = vunpack.c.h.b16 %v54
  %v743 = vunpack.c.l.b16 %v55
  %v744 = vunpack.c.h.b16 %v55
  %v745 = vunpack.c.l.b16 %v56
  %v746 = vunpack.c.h.b16 %v56
  %v747 = vunpack.c.l.b16 %v57
  %v748 = vunpack.c.h.b16 %v57
  %v749 = vunpack.c.l.b16 %v58
  %v750 = vunpack.c.h.b16 %v58
  %v751 = vunpack.c.l.b16 %v59
  %v752 = vunpack.c.h.b16 %v59
  %v753 = vunpack.c.l.b16 %v60
  %v754 = vunpack.c.h.b16 %v60
  %v755 = vunpack.c.l.b16 %v61
  %v756 = vunpack.c.h.b16 %v61
  %v757 = vunpack.c.l.b16 %v62
  %v758 = vunpack.c.h.b16 %v62
  %v759 = vunpack.c.l.b16 %v63
  %v760 = vunpack.c.h.b16 %v63
  %v761 = vunpack.c.l.b16 %v64
  %v762 = vunpack.c.h.b16 %v64
  %v763 = vunpack.c.l.b16 %v65
  %v764 = vunpack.c.h.b16 %v65
  %v765 = vunpack.c.l.b16 %v66
  %v766 = vunpack.c.h.b16 %v66
  %v767 = vunpack.c.l.b16 %v67
  %v768 = vunpack.c.h.b16 %v67
  %v769 = vunpack.c.l.b16 %v68
  %v770 = vunpack.c.h.b16 %v68
  %v771 = vunpack.c.l.b16 %v69
  %v772 = vunpack.c.h.b16 %v69
  %v773 = vunpack.c.l.b16 %v70
  %v774 = vunpack.c.h.b16 %v70
  %v775 = vunpack.c.l.b16 %v71
  %v776 = vunpack.c.h.b16 %v71
  %v777 = vunpack.c.l.b16 %v72
  %v778 = vunpack.c.h.b16 %v72
  %v779 = vunpack.c.l.b16 %v73
  %v780 = vunpack.c.h.b16 %v73
  %v781 = vunpack.c.l.b16 %v74
  %v782 = vunpack.c.h.b16 %v74
  %v783 = vunpack.c.l.b16 %v75
  %v784 = vunpack.c.h.b16 %v75
  %v785 = vunpack.c.l.b16 %v76
  %v786 = vunpack.c.h.b16 %v76
  %v787 = vunpack.c.l.b16 %v77
  %v788 = vunpack.c.h.b16 %v77
  %v789 = vunpack.c.l.b16 %v78
  %v790 = vunpack.c.h.b16 %v78
  %v791 = vunpack.c.l.b16 %v79
  %v792 = vunpack.c.h.b16 %v79
  %v793 = vunpack.c.l.b16 %v80
  %v794 = vunpack.c.h.b16 %v80
  %v795 = vunpack.c.l.b16 %v81
  %v796 = vunpack.c.h.b16 %v81
  %v797 = vunpack.c.l.b16 %v82
  %v798 = vunpack.c.h.b16 %v82
  %v799 = vunpack.c.l.b16 %v83
  %v800 = vunpack.c.h.b16 %v83
  %v801 = vunpack.c.l.b16 %v84
  %v802 = vunpack.c.h.b16 %v84
  %v803 = vunpack.c.l.b16 %v85
  %v804 = vunpack.c.h.b16 %v85
  %v805 = vunpack.c.l.b16 %v86
  %v806 = vunpack.c.h.b16 %v86
  %v807 = vunpack.c.l.b16 %v87
  %v808 = vunpack.c.h.b16 %v87
  %v809 = vunpack.c.l.b16 %v88
  %v810 = vunpack.c.h.b16 %v88
  %v811 = vunpack.c.l.b16 %v89
  %v812 = vunpack.c.h.b16 %v89
  %v813 = vunpack.c.l.b16 %v90
  %v814 = vunpack.c.h.b16 %v90
  %v815 = vunpack.c.l.b16 %v91
  %v816 = vunpack.c.h.b16 %v91
  %v817 = vunpack.c.l.b16 %v92
  %v818 = vunpack.c.h.b16 %v92
  %v819 = vunpack.c.l.b16 %v93
  %v820 = vunpack.c.h.b16 %v93
  %v821 = vunpack.c.l.b16 %v94
  %v822 = vunpack.c.h.b16 %v94
  %v823 = vunpack.c.l.b16 %v95
  %v824 = vunpack.c.h.b16 %v95
  %v825 = vunpack.c.l.b16 %v96
  %v826 = vunpack.c.h.b16 %v96
  %v827 = vunpack.c.l.b16 %v97
  %v828 = vunpack.c.h.b16 %v97
  %v829 = vunpack.c.l.b16 %v98
  %v830 = vunpack.c.h.b16 %v98
  %v831 = vunpack.c.l.b16 %v99
  %v832 = vunpack.c.h.b16 %v99
  %v833 = vunpack.c.l.b16 %v100
  %v834 = vunpack.c.h.b16 %v100
  %v835 = vunpack.c.l.b16 %v101
  %v836 = vunpack.c.h.b16 %v101
  %v837 = vunpack.c.l.b16 %v102
  %v838 = vunpack.c.h.b16 %v102
  %v839 = vunpack.c.l.b16 %v103
  %v840 = vunpack.c.h.b16 %v103
  %v841 = vunpack.c.l.b16 %v104
  %v842 = vunpack.c.h.b16 %v104
  %v843 = vunpack.c.l.b16 %v105
  %v844 = vunpack.c.h.b16 %v105
  %v845 = vunpack.c.l.b16 %v106
  %v846 = vunpack.c.h.b16 %v106
  %v847 = vunpack.c.l.b16 %v107
  %v848 = vunpack.c.h.b16 %v107
  %v849 = vunpack.c.l.b16 %v108
  %v850 = vunpack.c.h.b16 %v108
  %v851 = vunpack.c.l.b16 %v109
  %v852 = vunpack.c.h.b16 %v109
  %v853 = vunpack.c.l.b16 %v110
  %v854 = vunpack.c.h.b16 %v110
  %v855 = vunpack.c.l.b16 %v111
  %v856 = vunpack.c.h.b16 %v111
  %v857 = vunpack.c.l.b16 %v112
  %v858 = vunpack.c.h.b16 %v112
  %v859 = vunpack.c.l.b16 %v113
  %v860 = vunpack.c.h.b16 %v113
  %v861 = vunpack.c.l.b16 %v114
  %v862 = vunpack.c.h.b16 %v114
  %v863 = vunpack.c.l.b16 %v115
  %v864 = vunpack.c.h.b16 %v115
  %v865 = vunpack.c.l.b16 %v116
  %v866 = vunpack.c.h.b16 %v116
  %v867 = vunpack.c.l.b16 %v117
  %v868 = vunpack.c.h.b16 %v117
  %v869 = vunpack.c.l.b16 %v118
  %v870 = vunpack.c.h.b16 %v118
  %v871 = vunpack.c.l.b16 %v119
  %v872 = vunpack.c.h.b16 %v119
  %v873 = vunpack.c.l.b16 %v120
  %v874 = vunpack.c.h.b16 %v120
  %v875 = vunpack.c.l.b16 %v121
  %v876 = vunpack.c.h.b16 %v121
  %v877 = vunpack.c.l.b16 %v122
  %v878 = vunpack.c.h.b16 %v122
  %v879 = vunpack.c.l.b16 %v123
  %v880 = vunpack.c.h.b16 %v123
  %v881 = vunpack.c.l.b16 %v124
  %v882 = vunpack.c.h.b16 %v124
  %v883 = vunpack.c.l.b16 %v125
  %v884 = vunpack.c.h.b16 %v125
  %v885 = vunpack.c.l.b16 %v126
  %v886 = vunpack.c.h.b16 %v126
  %v887 = vunpack.c.l.b16 %v127
  %v888 = vunpack.c.h.b16 %v127
  %v889 = vunpack.c.l.b16 %v128
  %v890 = vunpack.c.h.b16 %v128
  %v891 = vunpack.c.l.b16 %v129
  %v892 = vunpack.c.h.b16 %v129
  %v893 = vunpack.c.l.b16 %v130
  %v894 = vunpack.c.h.b16 %v130
  %v895 = vunpack.c.l.b16 %v131
  %v896 = vunpack.c.h.b16 %v131
  %v897 = vunpack.c.l.b16 %v132
  %v898 = vunpack.c.h.b16 %v132
  %v899 = vunpack.c.l.b16 %v133
  %v900 = vunpack.c.h.b16 %v133
  %v901 = vunpack.c.l.b16 %v134
  %v902 = vunpack.c.h.b16 %v134
  %v903 = vunpack.c.l.b16 %v135
  %v904 = vunpack.c.h.b16 %v135
  %v905 = vunpack.c.l.b16 %v136
  %v906 = vunpack.c.h.b16 %v136
  %v907 = vunpack.c.l.b16 %v137
  %v908 = vunpack.c.h.b16 %v137
  %v909 = vunpack.c.l.b16 %v138
  %v910 = vunpack.c.h.b16 %v138
  %v911 = vunpack.c.l.b16 %v139
  %v912 = vunpack.c.h.b16 %v139
  %v913 = vunpack.c.l.b16 %v140
  %v914 = vunpack.c.h.b16 %v140
  %v915 = vunpack.c.l.b16 %v141
  %v916 = vunpack.c.h.b16 %v141
  %v917 = vunpack.c.l.b16 %v142
  %v918 = vunpack.c.h.b16 %v142
  %v919 = vunpack.c.l.b16 %v143
  %v920 = vunpack.c.h.b16 %v143
  %v921 = vunpack.c.l.b16 %v144
  %v922 = vunpack.c.h.b16 %v144
  %v923 = vunpack.c.l.b16 %v145
  %v924 = vunpack.c.h.b16 %v145
  %v925 = vunpack.c.l.b16 %v146
  %v926 = vunpack.c.h.b16 %v146
  %v927 = vunpack.c.l.b16 %v147
  %v928 = vunpack.c.h.b16 %v147
  %v929 = vunpack.c.l.b16 %v148
  %v930 = vunpack.c.h.b16 %v148
  %v931 = vunpack.c.l.b16 %v149
  %v932 = vunpack.c.h.b16 %v149
  %v933 = vunpack.c.l.b16 %v150
  %v934 = vunpack.c.h.b16 %v150
  %v935 = vunpack.c.l.b16 %v151
  %v936 = vunpack.c.h.b16 %v151
  %v937 = vunpack.c.l.b16 %v152
  %v938 = vunpack.c.h.b16 %v152
  %v939 = vunpack.c.l.b16 %v153
  %v940 = vunpack.c.h.b16 %v153
  %v941 = vunpack.c.l.b16 %v154
  %v942 = vunpack.c.h.b16 %v154
  %v943 = vunpack.c.l.b16 %v155
  %v944 = vunpack.c.h.b16 %v155
  %v945 = vunpack.c.l.b16 %v156
  %v946 = vunpack.c.h.b16 %v156
  %v947 = vunpack.c.l.b16 %v157
  %v948 = vunpack.c.h.b16 %v157
  %v949 = vunpack.c.l.b16 %v158
  %v950 = vunpack.c.h.b16 %v158
  %v951 = vunpack.c.l.b16 %v159
  %v952 = vunpack.c.h.b16 %v159
  %v953 = vunpack.c.l.b16 %v160
  %v954 = vunpack.c.h.b16 %v160
  %v955 = vunpack.c.l.b16 %v161
  %v956 = vunpack.c.h.b16 %v161
  %v957 = vunpack.c.l.b16 %v162
  %v958 = vunpack.c.h.b16 %v162
  %v959 = vunpack.c.l.b16 %v163
  %v960 = vunpack.c.h.b16 %v163
  %v961 = vunpack.c.l.b16 %v164
  %v962 = vunpack.c.h.b16 %v164
  %v963 = vunpack.c.l.b16 %v165
  %v964 = vunpack.c.h.b16 %v165
  %v965 = vunpack.c.l.b16 %v166
  %v966 = vunpack.c.h.b16 %v166
  %v967 = vunpack.c.l.b16 %v167
  %v968 = vunpack.c.h.b16 %v167
  %v969 = vunpack.c.l.b16 %v168
  %v970 = vunpack.c.h.b16 %v168
  %v971 = vunpack.c.l.b16 %v169
  %v972 = vunpack.c.h.b16 %v169
  %v973 = vunpack.c.l.b16 %v170
  %v974 = vunpack.c.h.b16 %v170
  %v975 = vunpack.c.l.b16 %v171
  %v976 = vunpack.c.h.b16 %v171
  %v977 = vunpack.c.l.b16 %v172
  %v978 = vunpack.c.h.b16 %v172
  %v979 = vunpack.c.l.b16 %v173
  %v980 = vunpack.c.h.b16 %v173
  %v981 = vunpack.c.l.b16 %v174
  %v982 = vunpack.c.h.b16 %v174
  %v983 = vunpack.c.l.b16 %v175
  %v984 = vunpack.c.h.b16 %v175
  %v985 = vunpack.c.l.b16 %v176
  %v986 = vunpack.c.h.b16 %v176
  %v987 = vunpack.c.l.b16 %v177
  %v988 = vunpack.c.h.b16 %v177
  %v989 = vunpack.c.l.b16 %v178
  %v990 = vunpack.c.h.b16 %v178
  %v991 = vunpack.c.l.b16 %v179
  %v992 = vunpack.c.h.b16 %v179
  %v993 = vunpack.c.l.b16 %v180
  %v994 = vunpack.c.h.b16 %v180
  %v995 = vunpack.c.l.b16 %v181
  %v996 = vunpack.c.h.b16 %v181
  %v997 = vunpack.c.l.b16 %v182
  %v998 = vunpack.c.h.b16 %v182
  %v999 = vunpack.c.l.b16 %v183
  %v1000 = vunpack.c.h.b16 %v183
  %v1001 = vunpack.c.l.b16 %v184
  %v1002 = vunpack.c.h.b16 %v184
  %v1003 = vunpack.c.l.b16 %v185
  %v1004 = vunpack.c.h.b16 %v185
  %v1005 = vunpack.c.l.b16 %v186
  %v1006 = vunpack.c.h.b16 %v186
  %v1007 = vunpack.c.l.b16 %v187
  %v1008 = vunpack.c.h.b16 %v187
  %v1009 = vunpack.c.l.b16 %v188
  %v1010 = vunpack.c.h.b16 %v188
  %v1011 = vunpack.c.l.b16 %v189
  %v1012 = vunpack.c.h.b16 %v189
  %v1013 = vunpack.c.l.b16 %v190
  %v1014 = vunpack.c.h.b16 %v190
  %v1015 = vunpack.c.l.b16 %v191
  %v1016 = vunpack.c.h.b16 %v191
  %v1017 = vunpack.c.l.b16 %v192
  %v1018 = vunpack.c.h.b16 %v192
  %v1019 = vunpack.c.l.b16 %v193
  %v1020 = vunpack.c.h.b16 %v193
  %v1021 = vunpack.c.l.b16 %v194
  %v1022 = vunpack.c.h.b16 %v194
  %v1023 = vunpack.c.l.b16 %v195
  %v1024 = vunpack.c.h.b16 %v195
  %v1025 = vunpack.c.l.b16 %v196
  %v1026 = vunpack.c.h.b16 %v196
  %v1027 = vunpack.c.l.b16 %v197
  %v1028 = vunpack.c.h.b16 %v197
  %v1029 = vunpack.c.l.b16 %v198
  %v1030 = vunpack.c.h.b16 %v198
  %v1031 = vunpack.c.l.b16 %v199
  %v1032 = vunpack.c.h.b16 %v199
  %v1033 = vunpack.c.l.b16 %v200
  %v1034 = vunpack.c.h.b16 %v200
  %v1035 = vunpack.c.l.b16 %v201
  %v1036 = vunpack.c.h.b16 %v201
  %v1037 = vunpack.c.l.b16 %v202
  %v1038 = vunpack.c.h.b16 %v202
  %v1039 = vunpack.c.l.b16 %v203
  %v1040 = vunpack.c.h.b16 %v203
  %v1041 = vunpack.c.l.b16 %v204
  %v1042 = vunpack.c.h.b16 %v204
  %v1043 = vunpack.c.l.b16 %v205
  %v1044 = vunpack.c.h.b16 %v205
  %v1045 = vunpack.c.l.b16 %v206
  %v1046 = vunpack.c.h.b16 %v206
  %v1047 = vunpack.c.l.b16 %v207
  %v1048 = vunpack.c.h.b16 %v207
  %v1049 = vunpack.c.l.b16 %v208
  %v1050 = vunpack.c.h.b16 %v208
  %v1051 = vunpack.c.l.b16 %v209
  %v1052 = vunpack.c.h.b16 %v209
  %v1053 = vunpack.c.l.b16 %v210
  %v1054 = vunpack.c.h.b16 %v210
  %v1055 = vunpack.c.l.b16 %v211
  %v1056 = vunpack.c.h.b16 %v211
  %v1057 = vunpack.c.l.b16 %v212
  %v1058 = vunpack.c.h.b16 %v212
  %v1059 = vunpack.c.l.b16 %v213
  %v1060 = vunpack.c.h.b16 %v213
  %v1061 = vunpack.c.l.b16 %v214
  %v1062 = vunpack.c.h.b16 %v214
  %v1063 = vunpack.c.l.b16 %v215
  %v1064 = vunpack.c.h.b16 %v215
  %v1065 = vunpack.c.l.b16 %v216
  %v1066 = vunpack.c.h.b16 %v216
  %v1067 = vunpack.c.l.b16 %v217
  %v1068 = vunpack.c.h.b16 %v217
  %v1069 = vunpack.c.l.b16 %v218
  %v1070 = vunpack.c.h.b16 %v218
  %v1071 = vunpack.c.l.b16 %v219
  %v1072 = vunpack.c.h.b16 %v219
  %v1073 = vunpack.c.l.b16 %v220
  %v1074 = vunpack.c.h.b16 %v220
  %v1075 = vunpack.c.l.b16 %v221
  %v1076 = vunpack.c.h.b16 %v221
  %v1077 = vunpack.c.l.b16 %v222
  %v1078 = vunpack.c.h.b16 %v222
  %v1079 = vunpack.c.l.b16 %v223
  %v1080 = vunpack.c.h.b16 %v223
  %v1081 = vunpack.c.l.b16 %v224
  %v1082 = vunpack.c.h.b16 %v224
  %v1083 = vunpack.c.l.b16 %v225
  %v1084 = vunpack.c.h.b16 %v225
  %v1085 = vunpack.c.l.b16 %v226
  %v1086 = vunpack.c.h.b16 %v226
  %v1087 = vunpack.c.l.b16 %v227
  %v1088 = vunpack.c.h.b16 %v227
  %v1089 = vunpack.c.l.b16 %v228
  %v1090 = vunpack.c.h.b16 %v228
  %v1091 = vunpack.c.l.b16 %v229
  %v1092 = vunpack.c.h.b16 %v229
  %v1093 = vunpack.c.l.b16 %v230
  %v1094 = vunpack.c.h.b16 %v230
  %v1095 = vunpack.c.l.b16 %v231
  %v1096 = vunpack.c.h.b16 %v231
  %v1097 = vunpack.c.l.b16 %v232
  %v1098 = vunpack.c.h.b16 %v232
  %v1099 = vunpack.c.l.b16 %v233
  %v1100 = vunpack.c.h.b16 %v233
  %v1101 = vunpack.c.l.b16 %v234
  %v1102 = vunpack.c.h.b16 %v234
  %v1103 = vunpack.c.l.b16 %v235
  %v1104 = vunpack.c.h.b16 %v235
  %v1105 = vunpack.c.l.b16 %v236
  %v1106 = vunpack.c.h.b16 %v236
  %v1107 = vunpack.c.l.b16 %v237
  %v1108 = vunpack.c.h.b16 %v237
  %v1109 = vunpack.c.l.b16 %v238
  %v1110 = vunpack.c.h.b16 %v238
  %v1111 = vunpack.c.l.b16 %v239
  %v1112 = vunpack.c.h.b16 %v239
  %v1113 = vunpack.c.l.b16 %v240
  %v1114 = vunpack.c.h.b16 %v240
  %v1115 = vunpack.c.l.b16 %v241
  %v1116 = vunpack.c.h.b16 %v241
  %v1117 = vunpack.c.l.b16 %v242
  %v1118 = vunpack.c.h.b16 %v242
  %v1119 = vunpack.c.l.b16 %v243
  %v1120 = vunpack.c.h.b16 %v243
  %v1121 = vunpack.c.l.b16 %v244
  %v1122 = vunpack.c.h.b16 %v244
  %v1123 = vunpack.c.l.b16 %v245
  %v1124 = vunpack.c.h.b16 %v245
  %v1125 = vunpack.c.l.b16 %v246
  %v1126 = vunpack.c.h.b16 %v246
  %v1127 = vunpack.c.l.b16 %v247
  %v1128 = vunpack.c.h.b16 %v247
  %v1129 = vunpack.c.l.b16 %v248
  %v1130 = vunpack.c.h.b16 %v248
  %v1131 = vunpack.c.l.b16 %v249
  %v1132 = vunpack.c.h.b16 %v249
  %v1133 = vunpack.c.l.b16 %v250
  %v1134 = vunpack.c.h.b16 %v250
  %v1135 = vunpack.c.l.b16 %v251
  %v1136 = vunpack.c.h.b16 %v251
  %v1137 = vunpack.c.l.b16 %v252
  %v1138 = vunpack.c.h.b16 %v252
  %v1139 = vunpack.c.l.b16 %v253
  %v1140 = vunpack.c.h.b16 %v253
  %v1141 = vunpack.c.l.b16 %v254
  %v1142 = vunpack.c.h.b16 %v254
  %v1143 = vunpack.c.l.b16 %v255
  %v1144 = vunpack.c.h.b16 %v255
  %v1145 = vunpack.c.l.b16 %v256
  %v1146 = vunpack.c.h.b16 %v256
  %v1147 = vunpack.c.l.b16 %v257
  %v1148 = vunpack.c.h.b16 %v257
  %v1149 = vunpack.c.l.b16 %v258
  %v1150 = vunpack.c.h.b16 %v258
  %v1151 = vunpack.c.l.b16 %v259
  %v1152 = vunpack.c.h.b16 %v259
  %v1153 = vunpack.c.l.b16 %v260
  %v1154 = vunpack.c.h.b16 %v260
  %v1155 = vunpack.c.l.b16 %v261
  %v1156 = vunpack.c.h.b16 %v261
  %v1157 = vunpack.c.l.b16 %v262
  %v1158 = vunpack.c.h.b16 %v262
  %v1159 = vunpack.c.l.b16 %v263
  %v1160 = vunpack.c.h.b16 %v263
  %v1161 = vunpack.c.l.b16 %v264
  %v1162 = vunpack.c.h.b16 %v264
  %v1163 = vunpack.c.l.b16 %v265
  %v1164 = vunpack.c.h.b16 %v265
  %v1165 = vunpack.c.l.b16 %v266
  %v1166 = vunpack.c.h.b16 %v266
  %v1167 = vunpack.c.l.b16 %v267
  %v1168 = vunpack.c.h.b16 %v267
  %v1169 = vunpack.c.l.b16 %v268
  %v1170 = vunpack.c.h.b16 %v268
  %v1171 = vunpack.c.l.b16 %v269
  %v1172 = vunpack.c.h.b16 %v269
  %v1173 = vunpack.c.l.b16 %v270
  %v1174 = vunpack.c.h.b16 %v270
  %v1175 = vunpack.c.l.b16 %v271
  %v1176 = vunpack.c.h.b16 %v271
  %v1177 = vunpack.c.l.b16 %v272
  %v1178 = vunpack.c.h.b16 %v272
  %v1179 = vunpack.c.l.b16 %v273
  %v1180 = vunpack.c.h.b16 %v273
  %v1181 = vunpack.c.l.b16 %v274
  %v1182 = vunpack.c.h.b16 %v274
  %v1183 = vunpack.c.l.b16 %v275
  %v1184 = vunpack.c.h.b16 %v275
  %v1185 = vunpack.c.l.b16 %v276
  %v1186 = vunpack.c.h.b16 %v276
  %v1187 = vunpack.c.l.b16 %v277
  %v1188 = vunpack.c.h.b16 %v277
  %v1189 = vunpack.c.l.b16 %v278
  %v1190 = vunpack.c.h.b16 %v278
  %v1191 = vunpack.c.l.b16 %v279
  %v1192 = vunpack.c.h.b16 %v279
  %v1193 = vunpack.c.l.b16 %v280
  %v1194 = vunpack.c.h.b16 %v280
  %v1195 = vunpack.c.l.b16 %v281
  %v1196 = vunpack.c.h.b16 %v281
  %v1197 = vunpack.c.l.b16 %v282
  %v1198 = vunpack.c.h.b16 %v282
  %v1199 = vunpack.c.l.b16 %v283
  %v1200 = vunpack.c.h.b16 %v283
  %v1201 = vunpack.c.l.b16 %v284
  %v1202 = vunpack.c.h.b16 %v284
  %v1203 = vunpack.c.l.b16 %v285
  %v1204 = vunpack.c.h.b16 %v285
  %v1205 = vunpack.c.l.b16 %v286
  %v1206 = vunpack.c.h.b16 %v286
  %v1207 = vunpack.c.l.b16 %v287
  %v1208 = vunpack.c.h.b16 %v287
  %v1209 = vunpack.c.l.b16 %v288
  %v1210 = vunpack.c.h.b16 %v288
  %v1211 = vunpack.c.l.b16 %v289
  %v1212 = vunpack.c.h.b16 %v289
  %v1213 = vunpack.c.l.b16 %v290
  %v1214 = vunpack.c.h.b16 %v290
  %v1215 = vunpack.c.l.b16 %v291
  %v1216 = vunpack.c.h.b16 %v291
  %v1217 = vunpack.c.l.b16 %v292
  %v1218 = vunpack.c.h.b16 %v292
  %v1219 = vunpack.c.l.b16 %v293
  %v1220 = vunpack.c.h.b16 %v293
  %v1221 = vunpack.c.l.b16 %v294
  %v1222 = vunpack.c.h.b16 %v294
  %v1223 = vunpack.c.l.b16 %v295
  %v1224 = vunpack.c.h.b16 %v295
  %v1225 = vunpack.c.l.b16 %v296
  %v1226 = vunpack.c.h.b16 %v296
  %v1227 = vunpack.c.l.b16 %v297
  %v1228 = vunpack.c.h.b16 %v297
  %v1229 = vunpack.c.l.b16 %v298
  %v1230 = vunpack.c.h.b16 %v298
  %v1231 = vunpack.c.l.b16 %v299
  %v1232 = vunpack.c.h.b16 %v299
  %v1233 = vunpack.c.l.b16 %v300
  %v1234 = vunpack.c.h.b16 %v300
  %v1235 = vunpack.c.l.b16 %v301
  %v1236 = vunpack.c.h.b16 %v301
  %v1237 = vunpack.c.l.b16 %v302
  %v1238 = vunpack.c.h.b16 %v302
  %v1239 = vunpack.c.l.b16 %v303
  %v1240 = vunpack.c.h.b16 %v303
  %v1241 = vunpack.c.l.b16 %v304
  %v1242 = vunpack.c.h.b16 %v304
  %v1243 = vunpack.c.l.b16 %v305
  %v1244 = vunpack.c.h.b16 %v305
  %v1245 = vunpack.c.l.b16 %v306
  %v1246 = vunpack.c.h.b16 %v306
  %v1247 = vpack.c.b16 %v737, %v735
  %v1248 = vpack.c.b16 %v738, %v736
  %v1249 = vpack.c.b16 %v741, %v739
  %v1250 = vpack.c.b16 %v742, %v740
  %v1251 = vpack.c.b16 %v745, %v743
  %v1252 = vpack.c.b16 %v746, %v744
  %v1253 = vpack.c.b16 %v749, %v747
  %v1254 = vpack.c.b16 %v750, %v748
  %v1255 = vpack.c.b16 %v753, %v751
  %v1256 = vpack.c.b16 %v754, %v752
  %v1257 = vpack.c.b16 %v757, %v755
  %v1258 = vpack.c.b16 %v758, %v756
  %v1259 = vpack.c.b16 %v761, %v759
  %v1260 = vpack.c.b16 %v762, %v760
  %v1261 = vpack.c.b16 %v765, %v763
  %v1262 = vpack.c.b16 %v766, %v764
  %v1263 = vpack.c.b16 %v769, %v767
  %v1264 = vpack.c.b16 %v770, %v768
  %v1265 = vpack.c.b16 %v773, %v771
  %v1266 = vpack.c.b16 %v774, %v772
  %v1267 = vpack.c.b16 %v777, %v775
  %v1268 = vpack.c.b16 %v778, %v776
  %v1269 = vpack.c.b16 %v781, %v779
  %v1270 = vpack.c.b16 %v782, %v780
  %v1271 = vpack.c.b16 %v785, %v783
  %v1272 = vpack.c.b16 %v786, %v784
  %v1273 = vpack.c.b16 %v789, %v787
  %v1274 = vpack.c.b16 %v790, %v788
  %v1275 = vpack.c.b16 %v793, %v791
  %v1276 = vpack.c.b16 %v794, %v792
  %v1277 = vpack.c.b16 %v797, %v795
  %v1278 = vpack.c.b16 %v798, %v796
  %v1279 = vpack.c.b16 %v801, %v799
  %v1280 = vpack.c.b16 %v802, %v800
  %v1281 = vpack.c.b16 %v805, %v803
  %v1282 = vpack.c.b16 %v806, %v804
  %v1283 = vpack.c.b16 %v809, %v807
  %v1284 = vpack.c.b16 %v810, %v808
  %v1285 = vpack.c.b16 %v813, %v811
  %v1286 = vpack.c.b16 %v814, %v812
  %v1287 = vpack.c.b16 %v817, %v815
  %v1288 = vpack.c.b16 %v818, %v816
  %v1289 = vpack.c.b16 %v821, %v819
  %v1290 = vpack.c.b16 %v822, %v820
  %v1291 = vpack.c.b16 %v825, %v823
  %v1292 = vpack.c.b16 %v826, %v824
  %v1293 = vpack.c.b16 %v829, %v827
  %v1294 = vpack.c.b16 %v830, %v828
  %v1295 = vpack.c.b16 %v833, %v831
  %v1296 = vpack.c.b16 %v834, %v832
  %v1297 = vpack.c.b16 %v837, %v835
  %v1298 = vpack.c.b16 %v838, %v836
  %v1299 = vpack.c.b16 %v841, %v839
  %v1300 = vpack.c.b16 %v842, %v840
  %v1301 = vpack.c.b16 %v845, %v843
  %v1302 = vpack.c.b16 %v846, %v844
  %v1303 = vpack.c.b16 %v849, %v847
  %v1304 = vpack.c.b16 %v850, %v848
  %v1305 = vpack.c.b16 %v853, %v851
  %v1306 = vpack.c.b16 %v854, %v852
  %v1307 = vpack.c.b16 %v857, %v855
  %v1308 = vpack.c.b16 %v858, %v856
  %v1309 = vpack.c.b16 %v861, %v859
  %v1310 = vpack.c.b16 %v862, %v860
  %v1311 = vpack.c.b16 %v865, %v863
  %v1312 = vpack.c.b16 %v866, %v864
  %v1313 = vpack.c.b16 %v869, %v867
  %v1314 = vpack.c.b16 %v870, %v868
  %v1315 = vpack.c.b16 %v873, %v871
  %v1316 = vpack.c.b16 %v874, %v872
  %v1317 = vpack.c.b16 %v877, %v875
  %v1318 = vpack.c.b16 %v878, %v876
  %v1319 = vpack.c.b16 %v881, %v879
  %v1320 = vpack.c.b16 %v882, %v880
  %v1321 = vpack.c.b16 %v885, %v883
  %v1322 = vpack.c.b16 %v886, %v884
  %v1323 = vpack.c.b16 %v889, %v887
  %v1324 = vpack.c.b16 %v890, %v888
  %v1325 = vpack.c.b16 %v893, %v891
  %v1326 = vpack.c.b16 %v894, %v892
  %v1327 = vpack.c.b16 %v897, %v895
  %v1328 = vpack.c.b16 %v898, %v896
  %v1329 = vpack.c.b16 %v901, %v899
  %v1330 = vpack.c.b16 %v902, %v900
  %v1331 = vpack.c.b16 %v905, %v903
  %v1332 = vpack.c.b16 %v906, %v904
  %v1333 = vpack.c.b16 %v909, %v907
  %v1334 = vpack.c.b16 %v910, %v908
  %v1335 = vpack.c.b16 %v913, %v911
  %v1336 = vpack.c.b16 %v914, %v912
  %v1337 = vpack.c.b16 %v917, %v915
  %v1338 = vpack.c.b16 %v918, %v916
  %v1339 = vpack.c.b16 %v921, %v919
  %v1340 = vpack.c.b16 %v922, %v920
  %v1341 = vpack.c.b16 %v925, %v923
  %v1342 = vpack.c.b16 %v926, %v924
  %v1343 = vpack.c.b16 %v929, %v927
  %v1344 = vpack.c.b16 %v930, %v928
  %v1345 = vpack.c.b16 %v933, %v931
  %v1346 = vpack.c.b16 %v934, %v932
  %v1347 = vpack.c.b16 %v937, %v935
  %v1348 = vpack.c.b16 %v938, %v936
  %v1349 = vpack.c.b16 %v941, %v939
  %v1350 = vpack.c.b16 %v942, %v940
  %v1351 = vpack.c.b16 %v945, %v943
  %v1352 = vpack.c.b16 %v946, %v944
  %v1353 = vpack.c.b16 %v949, %v947
  %v1354 = vpack.c.b16 %v950, %v948
  %v1355 = vpack.c.b16 %v953, %v951
  %v1356 = vpack.c.b16 %v954, %v952
  %v1357 = vpack.c.b16 %v957, %v955
  %v1358 = vpack.c.b16 %v958, %v956
  %v1359 = vpack.c.b16 %v961, %v959
  %v1360 = vpack.c.b16 %v962, %v960
  %v1361 = vpack.c.b16 %v965, %v963
  %v1362 = vpack.c.b16 %v966, %v964
  %v1363 = vpack.c.b16 %v969, %v967
  %v1364 = vpack.c.b16 %v970, %v968
  %v1365 = vpack.c.b16 %v973, %v971
  %v1366 = vpack.c.b16 %v974, %v972
  %v1367 = vpack.c.b16 %v977, %v975
  %v1368 = vpack.c.b16 %v978, %v976
  %v1369 = vpack.c.b16 %v981, %v979
  %v1370 = vpack.c.b16 %v982, %v980
  %v1371 = vpack.c.b16 %v985, %v983
  %v1372 = vpack.c.b16 %v986, %v984
  %v1373 = vpack.c.b16 %v989, %v987
  %v1374 = vpack.c.b16 %v990, %v988
  %v1375 = vpack.c.b16 %v993, %v991
  %v1376 = vpack.c.b16 %v994, %v992
  %v1377 = vpack.c.b16 %v997, %v995
  %v1378 = vpack.c.b16 %v998, %v996
  %v1379 = vpack.c.b16 %v1001, %v999
  %v1380 = vpack.c.b16 %v1002, %v1000
  %v1381 = vpack.c.b16 %v1005, %v1003
  %v1382 = vpack.c.b16 %v1006, %v1004
  %v1383 = vpack.c.b16 %v1009, %v1007
  %v1384 = vpack.c.b16 %v1010, %v1008
  %v1385 = vpack.c.b16 %v1013, %v1011
  %v1386 = vpack.c.b16 %v1014, %v1012
  %v1387 = vpack.c.b16 %v1017, %v1015
  %v1388 = vpack.c.b16 %v1018, %v1016
  %v1389 = vpack.c.b16 %v1021, %v1019
  %v1390 = vpack.c.b16 %v1022, %v1020
  %v1391 = vpack.c.b16 %v1025, %v1023
  %v1392 = vpack.c.b16 %v1026, %v1024
  %v1393 = vpack.c.b16 %v1029, %v1027
  %v1394 = vpack.c.b16 %v1030, %v1028
  %v1395 = vpack.c.b16 %v1033, %v1031
  %v1396 = vpack.c.b16 %v1034, %v1032
  %v1397 = vpack.c.b16 %v1037, %v1035
  %v1398 = vpack.c.b16 %v1038, %v1036
  %v1399 = vpack.c.b16 %v1041, %v1039
  %v1400 = vpack.c.b16 %v1042, %v1040
  %v1401 = vpack.c.b16 %v1045, %v1043
  %v1402 = vpack.c.b16 %v1046, %v1044
  %v1403 = vpack.c.b16 %v1049, %v1047
  %v1404 = vpack.c.b16 %v1050, %v1048
  %v1405 = vpack.c.b16 %v1053, %v1051
  %v1406 = vpack.c.b16 %v1054, %v1052
  %v1407 = vpack.c.b16 %v1057, %v1055
  %v1408 = vpack.c.b16 %v1058, %v1056
  %v1409 = vpack.c.b16 %v1061, %v1059
  %v1410 = vpack.c.b16 %v1062, %v1060
  %v1411 = vpack.c.b16 %v1065, %v1063
  %v1412 = vpack.c.b16 %v1066, %v1064
  %v1413 = vpack.c.b16 %v1069, %v1067
  %v1414 = vpack.c.b16 %v1070, %v1068
  %v1415 = vpack.c.b16 %v1073, %v1071
  %v1416 = vpack.c.b16 %v1074, %v1072
  %v1417 = vpack.c.b16 %v1077, %v1075
  %v1418 = vpack.c.b16 %v1078, %v1076
  %v1419 = vpack.c.b16 %v1081, %v1079
  %v1420 = vpack.c.b16 %v1082, %v1080
  %v1421 = vpack.c.b16 %v1085, %v1083
  %v1422 = vpack.c.b16 %v1086, %v1084
  %v1423 = vpack.c.b16 %v1089, %v1087
  %v1424 = vpack.c.b16 %v1090, %v1088
  %v1425 = vpack.c.b16 %v1093, %v1091
  %v1426 = vpack.c.b16 %v1094, %v1092
  %v1427 = vpack.c.b16 %v1097, %v1095
  %v1428 = vpack.c.b16 %v1098, %v1096
  %v1429 = vpack.c.b16 %v1101, %v1099
  %v1430 = vpack.c.b16 %v1102, %v1100
  %v1431 = vpack.c.b16 %v1105, %v1103
  %v1432 = vpack.c.b16 %v1106, %v1104
  %v1433 = vpack.c.b16 %v1109, %v1107
  %v1434 = vpack.c.b16 %v1110, %v1108
  %v1435 = vpack.c.b16 %v1113, %v1111
  %v1436 = vpack.c.b16 %v1114, %v1112
  %v1437 = vpack.c.b16 %v1117, %v1115
  %v1438 = vpack.c.b16 %v1118, %v1116
  %v1439 = vpack.c.b16 %v1121, %v1119
  %v1440 = vpack.c.b16 %v1122, %v1120
  %v1441 = vpack.c.b16 %v1125, %v1123
  %v1442 = vpack.c.b16 %v1126, %v1124
  %v1443 = vpack.c.b16 %v1129, %v1127
  %v1444 = vpack.c.b16 %v1130, %v1128
  %v1445 = vpack.c.b16 %v1133, %v1131
  %v1446 = vpack.c.b16 %v1134, %v1132
  %v1447 = vpack.c.b16 %v1137, %v1135
  %v1448 = vpack.c.b16 %v1138, %v1136
  %v1449 = vpack.c.b16 %v1141, %v1139
  %v1450 = vpack.c.b16 %v1142, %v1140
  %v1451 = vpack.c.b16 %v1145, %v1143
  %v1452 = vpack.c.b16 %v1146, %v1144
  %v1453 = vpack.c.b16 %v1149, %v1147
  %v1454 = vpack.c.b16 %v1150, %v1148
  %v1455 = vpack.c.b16 %v1153, %v1151
  %v1456 = vpack.c.b16 %v1154, %v1152
  %v1457 = vpack.c.b16 %v1157, %v1155
  %v1458 = vpack.c.b16 %v1158, %v1156
  %v1459 = vpack.c.b16 %v1161, %v1159
  %v1460 = vpack.c.b16 %v1162, %v1160
  %v1461 = vpack.c.b16 %v1165, %v1163
  %v1462 = vpack.c.b16 %v1166, %v1164
  %v1463 = vpack.c.b16 %v1169, %v1167
  %v1464 = vpack.c.b16 %v1170, %v1168
  %v1465 = vpack.c.b16 %v1173, %v1171
  %v1466 = vpack.c.b16 %v1174, %v1172
  %v1467 = vpack.c.b16 %v1177, %v1175
  %v1468 = vpack.c.b16 %v1178, %v1176
  %v1469 = vpack.c.b16 %v1181, %v1179
  %v1470 = vpack.c.b16 %v1182, %v1180
  %v1471 = vpack.c.b16 %v1185, %v1183
  %v1472 = vpack.c.b16 %v1186, %v1184
  %v1473 = vpack.c.b16 %v1189, %v1187
  %v1474 = vpack.c.b16 %v1190, %v1188
  %v1475 = vpack.c.b16 %v1193, %v1191
  %v1476 = vpack.c.b16 %v1194, %v1192
  %v1477 = vpack.c.b16 %v1197, %v1195
  %v1478 = vpack.c.b16 %v1198, %v1196
  %v1479 = vpack.c.b16 %v1201, %v1199
  %v1480 = vpack.c.b16 %v1202, %v1200
  %v1481 = vpack.c.b16 %v1205, %v1203
  %v1482 = vpack.c.b16 %v1206, %v1204
  %v1483 = vpack.c.b16 %v1209, %v1207
  %v1484 = vpack.c.b16 %v1210, %v1208
  %v1485 = vpack.c.b16 %v1213, %v1211
  %v1486 = vpack.c.b16 %v1214, %v1212
  %v1487 = vpack.c.b16 %v1217, %v1215
  %v1488 = vpack.c.b16 %v1218, %v1216
  %v1489 = vpack.c.b16 %v1221, %v1219
  %v1490 = vpack.c.b16 %v1222, %v1220
  %v1491 = vpack.c.b16 %v1225, %v1223
  %v1492 = vpack.c.b16 %v1226, %v1224
  %v1493 = vpack.c.b16 %v1229, %v1227
  %v1494 = vpack.c.b16 %v1230, %v1228
  %v1495 = vpack.c.b16 %v1233, %v1231
  %v1496 = vpack.c.b16 %v1234, %v1232
  %v1497 = vpack.c.b16 %v1237, %v1235
  %v1498 = vpack.c.b16 %v1238, %v1236
  %v1499 = vpack.c.b16 %v1241, %v1239
  %v1500 = vpack.c.b16 %v1242, %v1240
  %v1501 = vpack.c.b16 %v1245, %v1243
  %v1502 = vpack.c.b16 %v1246, %v1244
  %1759 = vmatprep.subr.bf16.mxu0 %v1262
  %1760 = vmatpush1.bf16.msra.mxu0 %v1261
  %1761 = vmatprep.subr.bf16.mxu0 %v1260
  %1762 = vmatpush1.bf16.msra.mxu0 %v1259
  %1763 = vmatprep.subr.bf16.mxu0 %v1258
  %1764 = vmatpush1.bf16.msra.mxu0 %v1257
  %1765 = vmatprep.subr.bf16.mxu0 %v1256
  %1766 = vmatpush1.bf16.msra.mxu0 %v1255
  %1767 = vmatprep.subr.bf16.mxu0 %v1254
  %1768 = vmatpush1.bf16.msra.mxu0 %v1253
  %1769 = vmatprep.subr.bf16.mxu0 %v1252
  %1770 = vmatpush1.bf16.msra.mxu0 %v1251
  %1771 = vmatprep.subr.bf16.mxu0 %v1250
  %1772 = vmatpush1.bf16.msra.mxu0 %v1249
  %1773 = vmatprep.subr.bf16.mxu0 %v1248
  %1774 = vmatpush1.bf16.msra.mxu0 %v1247
  %1775 = vmatprep.subr.bf16.mxu0 %v1278
  %1776 = vmatpush2.bf16.msra.mxu0 %v1277
  %1777 = vmatprep.subr.bf16.mxu0 %v1276
  %1778 = vmatpush2.bf16.msra.mxu0 %v1275
  %1779 = vmatprep.subr.bf16.mxu0 %v1274
  %1780 = vmatpush2.bf16.msra.mxu0 %v1273
  %1781 = vmatprep.subr.bf16.mxu0 %v1272
  %1782 = vmatpush2.bf16.msra.mxu0 %v1271
  %1783 = vmatprep.subr.bf16.mxu0 %v1270
  %1784 = vmatpush2.bf16.msra.mxu0 %v1269
  %1785 = vmatprep.subr.bf16.mxu0 %v1268
  %1786 = vmatpush2.bf16.msra.mxu0 %v1267
  %1787 = vmatprep.subr.bf16.mxu0 %v1266
  %1788 = vmatpush2.bf16.msra.mxu0 %v1265
  %1789 = vmatprep.subr.bf16.mxu0 %v1264
  %1790 = vmatpush2.bf16.msra.mxu0 %v1263
  %1791 = vmatprep.mubr.bf16.mxu0 %v416
  %1792 = vmatmul.mubr.bf16.gmra.mxu0 %v415
  %v1793 = vpop.f32.mrf.mxu0
  %v1794 = vadd.f32 %v312, %v1793
  %v1795 = vpop.f32.mrf.mxu0
  %v1796 = vadd.f32 %v316, %v1795
  %v1797 = vpop.f32.mrf.mxu0
  %v1798 = vadd.f32 %v312, %v1797
  %v1799 = vpop.f32.mrf.mxu0
  %v1800 = vadd.f32 %v316, %v1799
  %1801 = vmatprep.mubr.bf16.mxu0 %v432
  %1802 = vmatmul.mubr.bf16.gmra.mxu0 %v431
  %v1803 = vpop.f32.mrf.mxu0
  %v1804 = vadd.f32 %v312, %v1803
  %v1805 = vpop.f32.mrf.mxu0
  %v1806 = vadd.f32 %v316, %v1805
  %v1807 = vpop.f32.mrf.mxu0
  %v1808 = vadd.f32 %v312, %v1807
  %v1809 = vpop.f32.mrf.mxu0
  %v1810 = vadd.f32 %v316, %v1809
  %1811 = vdwg.mxu0
  %1812 = vmatprep.subr.bf16.mxu0 %v1294
  %1813 = vmatpush1.bf16.msra.mxu0 %v1293
  %1814 = vmatprep.subr.bf16.mxu0 %v1292
  %1815 = vmatpush1.bf16.msra.mxu0 %v1291
  %1816 = vmatprep.subr.bf16.mxu0 %v1290
  %1817 = vmatpush1.bf16.msra.mxu0 %v1289
  %1818 = vmatprep.subr.bf16.mxu0 %v1288
  %1819 = vmatpush1.bf16.msra.mxu0 %v1287
  %1820 = vmatprep.subr.bf16.mxu0 %v1286
  %1821 = vmatpush1.bf16.msra.mxu0 %v1285
  %1822 = vmatprep.subr.bf16.mxu0 %v1284
  %1823 = vmatpush1.bf16.msra.mxu0 %v1283
  %1824 = vmatprep.subr.bf16.mxu0 %v1282
  %1825 = vmatpush1.bf16.msra.mxu0 %v1281
  %1826 = vmatprep.subr.bf16.mxu0 %v1280
  %1827 = vmatpush1.bf16.msra.mxu0 %v1279
  %1828 = vmatprep.subr.bf16.mxu0 %v1310
  %1829 = vmatpush2.bf16.msra.mxu0 %v1309
  %1830 = vmatprep.subr.bf16.mxu0 %v1308
  %1831 = vmatpush2.bf16.msra.mxu0 %v1307
  %1832 = vmatprep.subr.bf16.mxu0 %v1306
  %1833 = vmatpush2.bf16.msra.mxu0 %v1305
  %1834 = vmatprep.subr.bf16.mxu0 %v1304
  %1835 = vmatpush2.bf16.msra.mxu0 %v1303
  %1836 = vmatprep.subr.bf16.mxu0 %v1302
  %1837 = vmatpush2.bf16.msra.mxu0 %v1301
  %1838 = vmatprep.subr.bf16.mxu0 %v1300
  %1839 = vmatpush2.bf16.msra.mxu0 %v1299
  %1840 = vmatprep.subr.bf16.mxu0 %v1298
  %1841 = vmatpush2.bf16.msra.mxu0 %v1297
  %1842 = vmatprep.subr.bf16.mxu0 %v1296
  %1843 = vmatpush2.bf16.msra.mxu0 %v1295
  %1844 = vmatprep.mubr.bf16.mxu0 %v418
  %1845 = vmatmul.mubr.bf16.gmra.mxu0 %v417
  %v1846 = vpop.f32.mrf.mxu0
  %v1847 = vadd.f32 %v1794, %v1846
  %v1848 = vpop.f32.mrf.mxu0
  %v1849 = vadd.f32 %v1796, %v1848
  %v1850 = vpop.f32.mrf.mxu0
  %v1851 = vadd.f32 %v1798, %v1850
  %v1852 = vpop.f32.mrf.mxu0
  %v1853 = vadd.f32 %v1800, %v1852
  %1854 = vmatprep.mubr.bf16.mxu0 %v434
  %1855 = vmatmul.mubr.bf16.gmra.mxu0 %v433
  %v1856 = vpop.f32.mrf.mxu0
  %v1857 = vadd.f32 %v1804, %v1856
  %v1858 = vpop.f32.mrf.mxu0
  %v1859 = vadd.f32 %v1806, %v1858
  %v1860 = vpop.f32.mrf.mxu0
  %v1861 = vadd.f32 %v1808, %v1860
  %v1862 = vpop.f32.mrf.mxu0
  %v1863 = vadd.f32 %v1810, %v1862
  %1864 = vdwg.mxu0
  %1865 = vmatprep.subr.bf16.mxu0 %v1326
  %1866 = vmatpush1.bf16.msra.mxu0 %v1325
  %1867 = vmatprep.subr.bf16.mxu0 %v1324
  %1868 = vmatpush1.bf16.msra.mxu0 %v1323
  %1869 = vmatprep.subr.bf16.mxu0 %v1322
  %1870 = vmatpush1.bf16.msra.mxu0 %v1321
  %1871 = vmatprep.subr.bf16.mxu0 %v1320
  %1872 = vmatpush1.bf16.msra.mxu0 %v1319
  %1873 = vmatprep.subr.bf16.mxu0 %v1318
  %1874 = vmatpush1.bf16.msra.mxu0 %v1317
  %1875 = vmatprep.subr.bf16.mxu0 %v1316
  %1876 = vmatpush1.bf16.msra.mxu0 %v1315
  %1877 = vmatprep.subr.bf16.mxu0 %v1314
  %1878 = vmatpush1.bf16.msra.mxu0 %v1313
  %1879 = vmatprep.subr.bf16.mxu0 %v1312
  %1880 = vmatpush1.bf16.msra.mxu0 %v1311
  %1881 = vmatprep.subr.bf16.mxu0 %v1342
  %1882 = vmatpush2.bf16.msra.mxu0 %v1341
  %1883 = vmatprep.subr.bf16.mxu0 %v1340
  %1884 = vmatpush2.bf16.msra.mxu0 %v1339
  %1885 = vmatprep.subr.bf16.mxu0 %v1338
  %1886 = vmatpush2.bf16.msra.mxu0 %v1337
  %1887 = vmatprep.subr.bf16.mxu0 %v1336
  %1888 = vmatpush2.bf16.msra.mxu0 %v1335
  %1889 = vmatprep.subr.bf16.mxu0 %v1334
  %1890 = vmatpush2.bf16.msra.mxu0 %v1333
  %1891 = vmatprep.subr.bf16.mxu0 %v1332
  %1892 = vmatpush2.bf16.msra.mxu0 %v1331
  %1893 = vmatprep.subr.bf16.mxu0 %v1330
  %1894 = vmatpush2.bf16.msra.mxu0 %v1329
  %1895 = vmatprep.subr.bf16.mxu0 %v1328
  %1896 = vmatpush2.bf16.msra.mxu0 %v1327
  %1897 = vmatprep.mubr.bf16.mxu0 %v420
  %1898 = vmatmul.mubr.bf16.gmra.mxu0 %v419
  %v1899 = vpop.f32.mrf.mxu0
  %v1900 = vadd.f32 %v1847, %v1899
  %v1901 = vpop.f32.mrf.mxu0
  %v1902 = vadd.f32 %v1849, %v1901
  %v1903 = vpop.f32.mrf.mxu0
  %v1904 = vadd.f32 %v1851, %v1903
  %v1905 = vpop.f32.mrf.mxu0
  %v1906 = vadd.f32 %v1853, %v1905
  %1907 = vmatprep.mubr.bf16.mxu0 %v436
  %1908 = vmatmul.mubr.bf16.gmra.mxu0 %v435
  %v1909 = vpop.f32.mrf.mxu0
  %v1910 = vadd.f32 %v1857, %v1909
  %v1911 = vpop.f32.mrf.mxu0
  %v1912 = vadd.f32 %v1859, %v1911
  %v1913 = vpop.f32.mrf.mxu0
  %v1914 = vadd.f32 %v1861, %v1913
  %v1915 = vpop.f32.mrf.mxu0
  %v1916 = vadd.f32 %v1863, %v1915
  %1917 = vdwg.mxu0
  %1918 = vmatprep.subr.bf16.mxu0 %v1358
  %1919 = vmatpush1.bf16.msra.mxu0 %v1357
  %1920 = vmatprep.subr.bf16.mxu0 %v1356
  %1921 = vmatpush1.bf16.msra.mxu0 %v1355
  %1922 = vmatprep.subr.bf16.mxu0 %v1354
  %1923 = vmatpush1.bf16.msra.mxu0 %v1353
  %1924 = vmatprep.subr.bf16.mxu0 %v1352
  %1925 = vmatpush1.bf16.msra.mxu0 %v1351
  %1926 = vmatprep.subr.bf16.mxu0 %v1350
  %1927 = vmatpush1.bf16.msra.mxu0 %v1349
  %1928 = vmatprep.subr.bf16.mxu0 %v1348
  %1929 = vmatpush1.bf16.msra.mxu0 %v1347
  %1930 = vmatprep.subr.bf16.mxu0 %v1346
  %1931 = vmatpush1.bf16.msra.mxu0 %v1345
  %1932 = vmatprep.subr.bf16.mxu0 %v1344
  %1933 = vmatpush1.bf16.msra.mxu0 %v1343
  %1934 = vmatprep.subr.bf16.mxu0 %v1374
  %1935 = vmatpush2.bf16.msra.mxu0 %v1373
  %1936 = vmatprep.subr.bf16.mxu0 %v1372
  %1937 = vmatpush2.bf16.msra.mxu0 %v1371
  %1938 = vmatprep.subr.bf16.mxu0 %v1370
  %1939 = vmatpush2.bf16.msra.mxu0 %v1369
  %1940 = vmatprep.subr.bf16.mxu0 %v1368
  %1941 = vmatpush2.bf16.msra.mxu0 %v1367
  %1942 = vmatprep.subr.bf16.mxu0 %v1366
  %1943 = vmatpush2.bf16.msra.mxu0 %v1365
  %1944 = vmatprep.subr.bf16.mxu0 %v1364
  %1945 = vmatpush2.bf16.msra.mxu0 %v1363
  %1946 = vmatprep.subr.bf16.mxu0 %v1362
  %1947 = vmatpush2.bf16.msra.mxu0 %v1361
  %1948 = vmatprep.subr.bf16.mxu0 %v1360
  %1949 = vmatpush2.bf16.msra.mxu0 %v1359
  %1950 = vmatprep.mubr.bf16.mxu0 %v422
  %1951 = vmatmul.mubr.bf16.gmra.mxu0 %v421
  %v1952 = vpop.f32.mrf.mxu0
  %v1953 = vadd.f32 %v1900, %v1952
  %v1954 = vpop.f32.mrf.mxu0
  %v1955 = vadd.f32 %v1902, %v1954
  %v1956 = vpop.f32.mrf.mxu0
  %v1957 = vadd.f32 %v1904, %v1956
  %v1958 = vpop.f32.mrf.mxu0
  %v1959 = vadd.f32 %v1906, %v1958
  %1960 = vmatprep.mubr.bf16.mxu0 %v438
  %1961 = vmatmul.mubr.bf16.gmra.mxu0 %v437
  %v1962 = vpop.f32.mrf.mxu0
  %v1963 = vadd.f32 %v1910, %v1962
  %v1964 = vpop.f32.mrf.mxu0
  %v1965 = vadd.f32 %v1912, %v1964
  %v1966 = vpop.f32.mrf.mxu0
  %v1967 = vadd.f32 %v1914, %v1966
  %v1968 = vpop.f32.mrf.mxu0
  %v1969 = vadd.f32 %v1916, %v1968
  %1970 = vdwg.mxu0
  %1971 = vmatprep.subr.bf16.mxu0 %v1390
  %1972 = vmatpush1.bf16.msra.mxu0 %v1389
  %1973 = vmatprep.subr.bf16.mxu0 %v1388
  %1974 = vmatpush1.bf16.msra.mxu0 %v1387
  %1975 = vmatprep.subr.bf16.mxu0 %v1386
  %1976 = vmatpush1.bf16.msra.mxu0 %v1385
  %1977 = vmatprep.subr.bf16.mxu0 %v1384
  %1978 = vmatpush1.bf16.msra.mxu0 %v1383
  %1979 = vmatprep.subr.bf16.mxu0 %v1382
  %1980 = vmatpush1.bf16.msra.mxu0 %v1381
  %1981 = vmatprep.subr.bf16.mxu0 %v1380
  %1982 = vmatpush1.bf16.msra.mxu0 %v1379
  %1983 = vmatprep.subr.bf16.mxu0 %v1378
  %1984 = vmatpush1.bf16.msra.mxu0 %v1377
  %1985 = vmatprep.subr.bf16.mxu0 %v1376
  %1986 = vmatpush1.bf16.msra.mxu0 %v1375
  %1987 = vmatprep.subr.bf16.mxu0 %v1406
  %1988 = vmatpush2.bf16.msra.mxu0 %v1405
  %1989 = vmatprep.subr.bf16.mxu0 %v1404
  %1990 = vmatpush2.bf16.msra.mxu0 %v1403
  %1991 = vmatprep.subr.bf16.mxu0 %v1402
  %1992 = vmatpush2.bf16.msra.mxu0 %v1401
  %1993 = vmatprep.subr.bf16.mxu0 %v1400
  %1994 = vmatpush2.bf16.msra.mxu0 %v1399
  %1995 = vmatprep.subr.bf16.mxu0 %v1398
  %1996 = vmatpush2.bf16.msra.mxu0 %v1397
  %1997 = vmatprep.subr.bf16.mxu0 %v1396
  %1998 = vmatpush2.bf16.msra.mxu0 %v1395
  %1999 = vmatprep.subr.bf16.mxu0 %v1394
  %2000 = vmatpush2.bf16.msra.mxu0 %v1393
  %2001 = vmatprep.subr.bf16.mxu0 %v1392
  %2002 = vmatpush2.bf16.msra.mxu0 %v1391
  %2003 = vmatprep.mubr.bf16.mxu0 %v424
  %2004 = vmatmul.mubr.bf16.gmra.mxu0 %v423
  %v2005 = vpop.f32.mrf.mxu0
  %v2006 = vadd.f32 %v1953, %v2005
  %v2007 = vpop.f32.mrf.mxu0
  %v2008 = vadd.f32 %v1955, %v2007
  %v2009 = vpop.f32.mrf.mxu0
  %v2010 = vadd.f32 %v1957, %v2009
  %v2011 = vpop.f32.mrf.mxu0
  %v2012 = vadd.f32 %v1959, %v2011
  %2013 = vmatprep.mubr.bf16.mxu0 %v440
  %2014 = vmatmul.mubr.bf16.gmra.mxu0 %v439
  %v2015 = vpop.f32.mrf.mxu0
  %v2016 = vadd.f32 %v1963, %v2015
  %v2017 = vpop.f32.mrf.mxu0
  %v2018 = vadd.f32 %v1965, %v2017
  %v2019 = vpop.f32.mrf.mxu0
  %v2020 = vadd.f32 %v1967, %v2019
  %v2021 = vpop.f32.mrf.mxu0
  %v2022 = vadd.f32 %v1969, %v2021
  %2023 = vdwg.mxu0
  %2024 = vmatprep.subr.bf16.mxu0 %v1422
  %2025 = vmatpush1.bf16.msra.mxu0 %v1421
  %2026 = vmatprep.subr.bf16.mxu0 %v1420
  %2027 = vmatpush1.bf16.msra.mxu0 %v1419
  %2028 = vmatprep.subr.bf16.mxu0 %v1418
  %2029 = vmatpush1.bf16.msra.mxu0 %v1417
  %2030 = vmatprep.subr.bf16.mxu0 %v1416
  %2031 = vmatpush1.bf16.msra.mxu0 %v1415
  %2032 = vmatprep.subr.bf16.mxu0 %v1414
  %2033 = vmatpush1.bf16.msra.mxu0 %v1413
  %2034 = vmatprep.subr.bf16.mxu0 %v1412
  %2035 = vmatpush1.bf16.msra.mxu0 %v1411
  %2036 = vmatprep.subr.bf16.mxu0 %v1410
  %2037 = vmatpush1.bf16.msra.mxu0 %v1409
  %2038 = vmatprep.subr.bf16.mxu0 %v1408
  %2039 = vmatpush1.bf16.msra.mxu0 %v1407
  %2040 = vmatprep.subr.bf16.mxu0 %v1438
  %2041 = vmatpush2.bf16.msra.mxu0 %v1437
  %2042 = vmatprep.subr.bf16.mxu0 %v1436
  %2043 = vmatpush2.bf16.msra.mxu0 %v1435
  %2044 = vmatprep.subr.bf16.mxu0 %v1434
  %2045 = vmatpush2.bf16.msra.mxu0 %v1433
  %2046 = vmatprep.subr.bf16.mxu0 %v1432
  %2047 = vmatpush2.bf16.msra.mxu0 %v1431
  %2048 = vmatprep.subr.bf16.mxu0 %v1430
  %2049 = vmatpush2.bf16.msra.mxu0 %v1429
  %2050 = vmatprep.subr.bf16.mxu0 %v1428
  %2051 = vmatpush2.bf16.msra.mxu0 %v1427
  %2052 = vmatprep.subr.bf16.mxu0 %v1426
  %2053 = vmatpush2.bf16.msra.mxu0 %v1425
  %2054 = vmatprep.subr.bf16.mxu0 %v1424
  %2055 = vmatpush2.bf16.msra.mxu0 %v1423
  %2056 = vmatprep.mubr.bf16.mxu0 %v426
  %2057 = vmatmul.mubr.bf16.gmra.mxu0 %v425
  %v2058 = vpop.f32.mrf.mxu0
  %v2059 = vadd.f32 %v2006, %v2058
  %v2060 = vpop.f32.mrf.mxu0
  %v2061 = vadd.f32 %v2008, %v2060
  %v2062 = vpop.f32.mrf.mxu0
  %v2063 = vadd.f32 %v2010, %v2062
  %v2064 = vpop.f32.mrf.mxu0
  %v2065 = vadd.f32 %v2012, %v2064
  %2066 = vmatprep.mubr.bf16.mxu0 %v442
  %2067 = vmatmul.mubr.bf16.gmra.mxu0 %v441
  %v2068 = vpop.f32.mrf.mxu0
  %v2069 = vadd.f32 %v2016, %v2068
  %v2070 = vpop.f32.mrf.mxu0
  %v2071 = vadd.f32 %v2018, %v2070
  %v2072 = vpop.f32.mrf.mxu0
  %v2073 = vadd.f32 %v2020, %v2072
  %v2074 = vpop.f32.mrf.mxu0
  %v2075 = vadd.f32 %v2022, %v2074
  %2076 = vdwg.mxu0
  %2077 = vmatprep.subr.bf16.mxu0 %v1454
  %2078 = vmatpush1.bf16.msra.mxu0 %v1453
  %2079 = vmatprep.subr.bf16.mxu0 %v1452
  %2080 = vmatpush1.bf16.msra.mxu0 %v1451
  %2081 = vmatprep.subr.bf16.mxu0 %v1450
  %2082 = vmatpush1.bf16.msra.mxu0 %v1449
  %2083 = vmatprep.subr.bf16.mxu0 %v1448
  %2084 = vmatpush1.bf16.msra.mxu0 %v1447
  %2085 = vmatprep.subr.bf16.mxu0 %v1446
  %2086 = vmatpush1.bf16.msra.mxu0 %v1445
  %2087 = vmatprep.subr.bf16.mxu0 %v1444
  %2088 = vmatpush1.bf16.msra.mxu0 %v1443
  %2089 = vmatprep.subr.bf16.mxu0 %v1442
  %2090 = vmatpush1.bf16.msra.mxu0 %v1441
  %2091 = vmatprep.subr.bf16.mxu0 %v1440
  %2092 = vmatpush1.bf16.msra.mxu0 %v1439
  %2093 = vmatprep.subr.bf16.mxu0 %v1470
  %2094 = vmatpush2.bf16.msra.mxu0 %v1469
  %2095 = vmatprep.subr.bf16.mxu0 %v1468
  %2096 = vmatpush2.bf16.msra.mxu0 %v1467
  %2097 = vmatprep.subr.bf16.mxu0 %v1466
  %2098 = vmatpush2.bf16.msra.mxu0 %v1465
  %2099 = vmatprep.subr.bf16.mxu0 %v1464
  %2100 = vmatpush2.bf16.msra.mxu0 %v1463
  %2101 = vmatprep.subr.bf16.mxu0 %v1462
  %2102 = vmatpush2.bf16.msra.mxu0 %v1461
  %2103 = vmatprep.subr.bf16.mxu0 %v1460
  %2104 = vmatpush2.bf16.msra.mxu0 %v1459
  %2105 = vmatprep.subr.bf16.mxu0 %v1458
  %2106 = vmatpush2.bf16.msra.mxu0 %v1457
  %2107 = vmatprep.subr.bf16.mxu0 %v1456
  %2108 = vmatpush2.bf16.msra.mxu0 %v1455
  %2109 = vmatprep.mubr.bf16.mxu0 %v428
  %2110 = vmatmul.mubr.bf16.gmra.mxu0 %v427
  %v2111 = vpop.f32.mrf.mxu0
  %v2112 = vadd.f32 %v2059, %v2111
  %v2113 = vpop.f32.mrf.mxu0
  %v2114 = vadd.f32 %v2061, %v2113
  %v2115 = vpop.f32.mrf.mxu0
  %v2116 = vadd.f32 %v2063, %v2115
  %v2117 = vpop.f32.mrf.mxu0
  %v2118 = vadd.f32 %v2065, %v2117
  %2119 = vmatprep.mubr.bf16.mxu0 %v444
  %2120 = vmatmul.mubr.bf16.gmra.mxu0 %v443
  %v2121 = vpop.f32.mrf.mxu0
  %v2122 = vadd.f32 %v2069, %v2121
  %v2123 = vpop.f32.mrf.mxu0
  %v2124 = vadd.f32 %v2071, %v2123
  %v2125 = vpop.f32.mrf.mxu0
  %v2126 = vadd.f32 %v2073, %v2125
  %v2127 = vpop.f32.mrf.mxu0
  %v2128 = vadd.f32 %v2075, %v2127
  %2129 = vdwg.mxu0
  %2130 = vmatprep.subr.bf16.mxu0 %v1486
  %2131 = vmatpush1.bf16.msra.mxu0 %v1485
  %2132 = vmatprep.subr.bf16.mxu0 %v1484
  %2133 = vmatpush1.bf16.msra.mxu0 %v1483
  %2134 = vmatprep.subr.bf16.mxu0 %v1482
  %2135 = vmatpush1.bf16.msra.mxu0 %v1481
  %2136 = vmatprep.subr.bf16.mxu0 %v1480
  %2137 = vmatpush1.bf16.msra.mxu0 %v1479
  %2138 = vmatprep.subr.bf16.mxu0 %v1478
  %2139 = vmatpush1.bf16.msra.mxu0 %v1477
  %2140 = vmatprep.subr.bf16.mxu0 %v1476
  %2141 = vmatpush1.bf16.msra.mxu0 %v1475
  %2142 = vmatprep.subr.bf16.mxu0 %v1474
  %2143 = vmatpush1.bf16.msra.mxu0 %v1473
  %2144 = vmatprep.subr.bf16.mxu0 %v1472
  %2145 = vmatpush1.bf16.msra.mxu0 %v1471
  %2146 = vmatprep.subr.bf16.mxu0 %v1502
  %2147 = vmatpush2.bf16.msra.mxu0 %v1501
  %2148 = vmatprep.subr.bf16.mxu0 %v1500
  %2149 = vmatpush2.bf16.msra.mxu0 %v1499
  %2150 = vmatprep.subr.bf16.mxu0 %v1498
  %2151 = vmatpush2.bf16.msra.mxu0 %v1497
  %2152 = vmatprep.subr.bf16.mxu0 %v1496
  %2153 = vmatpush2.bf16.msra.mxu0 %v1495
  %2154 = vmatprep.subr.bf16.mxu0 %v1494
  %2155 = vmatpush2.bf16.msra.mxu0 %v1493
  %2156 = vmatprep.subr.bf16.mxu0 %v1492
  %2157 = vmatpush2.bf16.msra.mxu0 %v1491
  %2158 = vmatprep.subr.bf16.mxu0 %v1490
  %2159 = vmatpush2.bf16.msra.mxu0 %v1489
  %2160 = vmatprep.subr.bf16.mxu0 %v1488
  %2161 = vmatpush2.bf16.msra.mxu0 %v1487
  %2162 = vmatprep.mubr.bf16.mxu0 %v430
  %2163 = vmatmul.mubr.bf16.gmra.mxu0 %v429
  %v2164 = vpop.f32.mrf.mxu0
  %v2165 = vadd.f32 %v2112, %v2164
  %v2166 = vpop.f32.mrf.mxu0
  %v2167 = vadd.f32 %v2114, %v2166
  %v2168 = vpop.f32.mrf.mxu0
  %v2169 = vadd.f32 %v2116, %v2168
  %v2170 = vpop.f32.mrf.mxu0
  %v2171 = vadd.f32 %v2118, %v2170
  %2172 = vmatprep.mubr.bf16.mxu0 %v446
  %2173 = vmatmul.mubr.bf16.gmra.mxu0 %v445
  %v2174 = vpop.f32.mrf.mxu0
  %v2175 = vadd.f32 %v2122, %v2174
  %v2176 = vpop.f32.mrf.mxu0
  %v2177 = vadd.f32 %v2124, %v2176
  %v2178 = vpop.f32.mrf.mxu0
  %v2179 = vadd.f32 %v2126, %v2178
  %v2180 = vpop.f32.mrf.mxu0
  %v2181 = vadd.f32 %v2128, %v2180
  %2182 = vdwg.mxu0
  %v2183 = vmul.f32 %v2165, 0.2
  %v2184 = vmul.f32 %v2167, 0.2
  %v2185 = vmul.f32 %v2169, 0.2
  %v2186 = vmul.f32 %v2171, 0.2
  %v2187 = vmul.f32 %v2175, 0.2
  %v2188 = vmul.f32 %v2177, 0.2
  %v2189 = vmul.f32 %v2179, 0.2
  %v2190 = vmul.f32 %v2181, 0.2
  %v2191 = vmax.f32 %v2165, %v2183
  %v2192 = vmax.f32 %v2167, %v2184
  %v2193 = vmax.f32 %v2169, %v2185
  %v2194 = vmax.f32 %v2171, %v2186
  %v2195 = vmax.f32 %v2175, %v2187
  %v2196 = vmax.f32 %v2177, %v2188
  %v2197 = vmax.f32 %v2179, %v2189
  %v2198 = vmax.f32 %v2181, %v2190
  %v2199 = vld [vmem:[%s3] sm:$0xff]
  %v2200 = vld [vmem:[%s3 + $0x8] sm:$0xff]
  %v2201 = vld [vmem:[%s3 + $0x10] sm:$0xff]
  %v2202 = vld [vmem:[%s3 + $0x18] sm:$0xff]
  %v2203 = vmax.f32 %v2191, %v2193
  %v2204 = vrot.slane %v2203, 4
  %v2205 = vmax.f32 %v2203, %v2204
  %v2206 = vrot.slane %v2205, 2
  %v2207 = vmax.f32 %v2205, %v2206
  %v2208 = vrot.slane %v2207, 1
  %v2209 = vmax.f32 %v2207, %v2208
  %v2210 = vmax.f32 %v2192, %v2194
  %v2211 = vrot.slane %v2210, 4
  %v2212 = vmax.f32 %v2210, %v2211
  %v2213 = vrot.slane %v2212, 2
  %v2214 = vmax.f32 %v2212, %v2213
  %v2215 = vrot.slane %v2214, 1
  %v2216 = vmax.f32 %v2214, %v2215
  %v2219 = vcombine.low %v2209, %v2216
  %v2221 = vunpack.c.l.s4 1966171168
  %v2222 = vunpack.c.0.s8 %v2221
  %v2223 = vlaneseq
  %v2224 = vshrl.u32 %v2223, 7
  %v2225 = vsub.s32 %v2222, %v2224
  %v2226 = vrot.slane %v2219, %v2225
  %v2228 = vunpack.c.l.s4 1966171168
  %v2229 = vunpack.c.0.s8 %v2228
  %v2230 = vlaneseq
  %v2231 = vshrl.u32 %v2230, 7
  %v2232 = vsub.s32 %v2229, %v2231
  %v2233 = vrot.slane %v2226, %v2232
  %v2235 = vlaneseq
  %vm2236 = vcmp.ge.s32.totalorder %v2235, 0
  %vm2237 = vcmp.lt.s32.totalorder %v2235, 256
  %vm2238 = vmand %vm2236, %vm2237
  %2239 = vst.msk [vmem:[%s5] ss:$2 sm:$0x3] %vm2238, %v2233
  %v2240 = vmul.f32 %v2191, %v2199
  %v2241 = vmul.f32 %v2192, %v2200
  %v2242 = vmul.f32 %v2193, %v2201
  %v2243 = vmul.f32 %v2194, %v2202
  %v2244 = vadd.f32 %v2240, %v2241
  %2245 = vadd.xlane.f32.xlu0 %v2244
  %v2246 = vpop.xlane.xlu0 %2245
  %v2247 = vadd.f32 %v2242, %v2243
  %2248 = vadd.xlane.f32.xlu0 %v2247
  %v2249 = vpop.xlane.xlu0 %2248
  %v2250 = vadd.f32 %v2246, %v2249
  %v2251 = vrot.slane %v2250, 4
  %v2252 = vadd.f32 %v2250, %v2251
  %v2253 = vrot.slane %v2252, 2
  %v2254 = vadd.f32 %v2252, %v2253
  %v2255 = vrot.slane %v2254, 1
  %v2256 = vadd.f32 %v2254, %v2255
  %v2257 = vmul.f32 %v2256, 0.5
  %v2258 = vtanh.pop %v2257
  %v2259 = vadd.f32 %v2258, 1.0
  %v2260 = vmul.f32 %v2259, 0.5
  %vm2261 = vcmask 0
  %2262 = vst.msk [vmem:[%s4] sm:$0x1] %vm2261, %v2260
  %v2263 = vmax.f32 %v2195, %v2197
  %v2264 = vrot.slane %v2263, 4
  %v2265 = vmax.f32 %v2263, %v2264
  %v2266 = vrot.slane %v2265, 2
  %v2267 = vmax.f32 %v2265, %v2266
  %v2268 = vrot.slane %v2267, 1
  %v2269 = vmax.f32 %v2267, %v2268
  %v2270 = vmax.f32 %v2196, %v2198
  %v2271 = vrot.slane %v2270, 4
  %v2272 = vmax.f32 %v2270, %v2271
  %v2273 = vrot.slane %v2272, 2
  %v2274 = vmax.f32 %v2272, %v2273
  %v2275 = vrot.slane %v2274, 1
  %v2276 = vmax.f32 %v2274, %v2275
  %v2279 = vcombine.low %v2269, %v2276
  %v2281 = vunpack.c.l.s4 1966171168
  %v2282 = vunpack.c.0.s8 %v2281
  %v2283 = vlaneseq
  %v2284 = vshrl.u32 %v2283, 7
  %v2285 = vsub.s32 %v2282, %v2284
  %v2286 = vrot.slane %v2279, %v2285
  %v2288 = vunpack.c.l.s4 1966171168
  %v2289 = vunpack.c.0.s8 %v2288
  %v2290 = vlaneseq
  %v2291 = vshrl.u32 %v2290, 7
  %v2292 = vsub.s32 %v2289, %v2291
  %v2293 = vrot.slane %v2286, %v2292
  %s2295 = scalar_lea.vmem %s5, 1
  %2296 = vst.msk [vmem:[%s2295] ss:$2 sm:$0x3] %vm2238, %v2293
  %v2297 = vmul.f32 %v2195, %v2199
  %v2298 = vmul.f32 %v2196, %v2200
  %v2299 = vmul.f32 %v2197, %v2201
  %v2300 = vmul.f32 %v2198, %v2202
  %v2301 = vadd.f32 %v2297, %v2298
  %2302 = vadd.xlane.f32.xlu0 %v2301
  %v2303 = vpop.xlane.xlu0 %2302
  %v2304 = vadd.f32 %v2299, %v2300
  %2305 = vadd.xlane.f32.xlu0 %v2304
  %v2306 = vpop.xlane.xlu0 %2305
  %v2307 = vadd.f32 %v2303, %v2306
  %v2308 = vrot.slane %v2307, 4
  %v2309 = vadd.f32 %v2307, %v2308
  %v2310 = vrot.slane %v2309, 2
  %v2311 = vadd.f32 %v2309, %v2310
  %v2312 = vrot.slane %v2311, 1
  %v2313 = vadd.f32 %v2311, %v2312
  %v2314 = vmul.f32 %v2313, 0.5
  %v2315 = vtanh.pop %v2314
  %v2316 = vadd.f32 %v2315, 1.0
  %v2317 = vmul.f32 %v2316, 0.5
  %2318 = vst.msk [vmem:[%s4 + $0x1] sm:$0x1] %vm2261, %v2317
  // Predicated region
  $region18: #{discriminator_forward.7} parent=0 // pred_check
    _
  $region19: #{discriminator_forward.7} parent=0 // pred_check_branch
    %2320 = sbr.rel (0) target = $region21
  $region20: #{discriminator_forward.7} parent=0 // pred_region
    _
  $region21: #{discriminator_forward.7} parent=0 // pred_fallthru
    _
  // Predicated region
  $region22: #{discriminator_forward.7} parent=0 // pred_check
    _
  $region23: #{discriminator_forward.7} parent=0 // pred_check_branch
    %2322 = sbr.rel (0) target = $region25
  $region24: #{discriminator_forward.7} parent=0 // pred_region
    _
  $region25: #{discriminator_forward.7} parent=0 // pred_fallthru
    _
  // Predicated region
  $region26: #{discriminator_forward.7} parent=0 // pred_check
    _
  $region27: #{discriminator_forward.7} parent=0 // pred_check_branch
    %2324 = sbr.rel (0) target = $region29
  $region28: #{discriminator_forward.7} parent=0 // pred_region
    _
  $region29: #{discriminator_forward.7} parent=0 // pred_fallthru
    _
  // Predicated region
  $region30: #{discriminator_forward.7} parent=0 // pred_check
    _
  $region31: #{discriminator_forward.7} parent=0 // pred_check_branch
    %2326 = sbr.rel (0) target = $region33
  $region32: #{discriminator_forward.7} parent=0 // pred_region
    _
  $region33: #{discriminator_forward.7} parent=0 // pred_fallthru
    _

</llo_original>
